<compile_context>
chip_gen: v7x
topology: tpu7x:2x2x1
jax: 0.10.0
libtpu: 0.0.40
codegen_flags: <defaults>
</compile_context>

<pallas_src>
import functools

import jax
import jax.numpy as jnp
from jax import lax
from jax.experimental import pallas as pl
from jax.experimental.pallas import tpu as pltpu


# ----------------------------------------------------------------------------
# Tiling helpers
# ----------------------------------------------------------------------------
def _m_tiling(m):
    """Pick a lane-tile size (multiple of 128, <=512) and the padded M."""
    m_pad = (m + 127) // 128 * 128
    for tl in (512, 256, 128):
        if m_pad % tl == 0 and m_pad // tl >= 2:
            return tl, m_pad
    return m_pad, m_pad  # single 128-wide tile (toy sizes only)


# ----------------------------------------------------------------------------
# Pallas kernels
# ----------------------------------------------------------------------------
def _matmul_kernel(*refs, affine, want_stats, m_valid, tl):
    """One M-tile of  y = W @ f(P) + bias  with optional fused rhs affine+ReLU and
    optional masked partial BN statistics (sum / sum-of-squares over valid columns)."""
    if affine:
        w_ref, p_ref, b_ref, sc_ref, sh_ref, *outs = refs
    else:
        w_ref, p_ref, b_ref, *outs = refs
    if want_stats:
        y_ref, ssum_ref, ssq_ref = outs
    else:
        (y_ref,) = outs

    p = p_ref[...]
    if affine:  # fused BN-apply + ReLU on the rhs (ResBlock 1x1 conv path), in f32
        p = jnp.maximum(p * sc_ref[...] + sh_ref[...], 0.0)

    y = jnp.dot(w_ref[...], p.astype(jnp.bfloat16),
                preferred_element_type=jnp.float32) + b_ref[...]
    y_ref[...] = y

    if want_stats:
        co = y.shape[0]
        col = lax.broadcasted_iota(jnp.int32, y.shape, 1) + pl.program_id(0) * tl
        ym = jnp.where(col < m_valid, y, 0.0)
        ssum_ref[...] = jnp.sum(ym, axis=1, keepdims=True).reshape(1, co, 1)
        ssq_ref[...] = jnp.sum(ym * ym, axis=1, keepdims=True).reshape(1, co, 1)


def _bn_apply_kernel(*refs, relu, has_res):
    """One M-tile of  out = y*scale + shift (+ residual) (+ ReLU)."""
    if has_res:
        y_ref, sc_ref, sh_ref, r_ref, o_ref = refs
    else:
        y_ref, sc_ref, sh_ref, o_ref = refs
    out = y_ref[...] * sc_ref[...] + sh_ref[...]
    if has_res:
        out = out + r_ref[...]
    if relu:
        out = jnp.maximum(out, 0.0)
    o_ref[...] = out


# ----------------------------------------------------------------------------
# pallas_call wrappers
# ----------------------------------------------------------------------------
def conv_matmul(w_mat, patches, bias, *, m_valid, rhs_affine=None, want_stats=False):
    """w_mat: (Co, K) bf16, patches: (K, M) bf16/f32, bias: (Co,) f32.
    Returns y (Co, M_pad) f32 and, if want_stats, per-channel [sum, sumsq] (Co, 2)."""
    co, k = w_mat.shape
    kp, m_in = patches.shape
    assert k == kp
    tl, m_pad = _m_tiling(m_valid)
    if m_in < m_pad:
        patches = jnp.pad(patches, ((0, 0), (0, m_pad - m_in)))
    grid_m = m_pad // tl

    in_specs = [
        pl.BlockSpec((co, k), lambda i: (0, 0)),
        pl.BlockSpec((k, tl), lambda i: (0, i)),
        pl.BlockSpec((co, 1), lambda i: (0, 0)),
    ]
    args = [w_mat, patches, bias.reshape(co, 1)]
    if rhs_affine is not None:
        sc, sh = rhs_affine
        in_specs += [pl.BlockSpec((k, 1), lambda i: (0, 0)),
                     pl.BlockSpec((k, 1), lambda i: (0, 0))]
        args += [sc, sh]

    out_shape = jax.ShapeDtypeStruct((co, m_pad), jnp.float32)
    out_specs = pl.BlockSpec((co, tl), lambda i: (0, i))
    if want_stats:
        out_shape = (out_shape,
                     jax.ShapeDtypeStruct((grid_m, co, 1), jnp.float32),
                     jax.ShapeDtypeStruct((grid_m, co, 1), jnp.float32))
        out_specs = (out_specs,
                     pl.BlockSpec((1, co, 1), lambda i: (i, 0, 0)),
                     pl.BlockSpec((1, co, 1), lambda i: (i, 0, 0)))

    kernel = functools.partial(_matmul_kernel, affine=rhs_affine is not None,
                               want_stats=want_stats, m_valid=m_valid, tl=tl)
    res = pl.pallas_call(
        kernel,
        out_shape=out_shape,
        grid=(grid_m,),
        in_specs=in_specs,
        out_specs=out_specs,
        compiler_params=pltpu.CompilerParams(dimension_semantics=("parallel",)),
    )(*args)

    if want_stats:
        y, ssum, ssq = res
        stats = jnp.concatenate([ssum.sum(axis=0), ssq.sum(axis=0)], axis=1)  # (Co, 2)
        return y, stats
    return res


def bn_apply(y, scale, shift, *, relu, residual=None):
    """y: (C, M_pad) f32; scale/shift: (C, 1) f32; tiled over M lanes."""
    c, m_pad = y.shape
    tl, mp2 = _m_tiling(m_pad)
    assert mp2 == m_pad
    grid_m = m_pad // tl
    in_specs = [pl.BlockSpec((c, tl), lambda i: (0, i)),
                pl.BlockSpec((c, 1), lambda i: (0, 0)),
                pl.BlockSpec((c, 1), lambda i: (0, 0))]
    args = [y, scale, shift]
    if residual is not None:
        in_specs.append(pl.BlockSpec((c, tl), lambda i: (0, i)))
        args.append(residual)
    kernel = functools.partial(_bn_apply_kernel, relu=relu,
                               has_res=residual is not None)
    return pl.pallas_call(
        kernel,
        out_shape=jax.ShapeDtypeStruct((c, m_pad), jnp.float32),
        grid=(grid_m,),
        in_specs=in_specs,
        out_specs=pl.BlockSpec((c, tl), lambda i: (0, i)),
        compiler_params=pltpu.CompilerParams(dimension_semantics=("parallel",)),
    )(*args)


def bn_scale_shift(stats, count, gamma, beta, eps=1e-5):
    """stats: (C, 2) [sum, sumsq] over `count` elements -> (scale, shift) each (C, 1)."""
    mean = stats[:, 0] / count
    var = jnp.maximum(stats[:, 1] / count - mean * mean, 0.0)  # biased var (PyTorch BN)
    scale = gamma * lax.rsqrt(var + eps)
    shift = beta - mean * scale
    return scale[:, None], shift[:, None]


# ----------------------------------------------------------------------------
# JAX glue: patches (channels-first), polyphase interleave, weight packing
# ----------------------------------------------------------------------------
def _patches_3x3(img_cnhw):
    """img: (C, N, H, W) -> (C*9, N*H*W), K ordered (c, r, s); spatial zero pad = 1."""
    c, n, h, w = img_cnhw.shape
    xp = jnp.pad(img_cnhw, ((0, 0), (0, 0), (1, 1), (1, 1)))
    taps = [xp[:, :, r:r + h, s:s + w] for r in range(3) for s in range(3)]
    p = jnp.stack(taps, axis=1)          # (C, 9, N, H, W)
    return p.reshape(c * 9, n * h * w)


def _interleave_phases(y, co, n, h, w):
    """y: (4*co, N*H*W) with row order (a, b, co) -> upsampled image (co, N, 2H, 2W)."""
    y = y.reshape(2, 2, co, n, h, w)
    y = y.transpose(2, 3, 4, 0, 5, 1)    # (co, N, H, a, W, b)
    return y.reshape(co, n, 2 * h, 2 * w)


def conv_w_lhs(w):
    """PyTorch Conv2d weight (O, I, KH, KW) -> matmul lhs (O, I*KH*KW) in bf16."""
    return w.reshape(w.shape[0], -1).astype(jnp.bfloat16)


def convT_poly_lhs(w):
    """PyTorch ConvTranspose2d weight (I, O, 4, 4) -> polyphase lhs (4*O, I*9) bf16.
    Row order (a, b, o): output pixel (2y+a, 2x+b); column order (i, r, s) matches
    _patches_3x3 on the pad-1 input."""
    i_ch, o_ch = w.shape[0], w.shape[1]
    mat = jnp.zeros((2, 2, o_ch, i_ch, 3, 3), jnp.float32)
    tapmap = {0: ((0, 3), (1, 1)), 1: ((1, 2), (2, 0))}   # phase -> ((window r, kh), ...)
    for a in (0, 1):
        for b in (0, 1):
            for r, kh in tapmap[a]:
                for s, kw in tapmap[b]:
                    mat = mat.at[a, b, :, :, r, s].set(w[:, :, kh, kw].T)
    return mat.reshape(4 * o_ch, i_ch * 9).astype(jnp.bfloat16)


# ----------------------------------------------------------------------------
# Decoder: parameters + forward
# ----------------------------------------------------------------------------
def _normal(key, shape, scale=0.1):
    return scale * jax.random.normal(key, shape, dtype=jnp.float32)


def init_decoder_params(key, in_dim, out_dim, dim, stride):
    ks = iter(jax.random.split(key, 40))
    nxt = lambda: next(ks)
    p = {}
    p["conv1_w"] = conv_w_lhs(_normal(nxt(), (dim, in_dim, 3, 3)))
    p["conv1_b"] = _normal(nxt(), (dim,))
    d4 = dim // 4
    for name in ("rb1", "rb2"):
        p[name] = dict(
            w1=conv_w_lhs(_normal(nxt(), (d4, dim, 3, 3))),
            b1=_normal(nxt(), (d4,)),
            g1=1.0 + _normal(nxt(), (d4,)),
            be1=_normal(nxt(), (d4,)),
            w2=conv_w_lhs(_normal(nxt(), (dim, d4, 1, 1))),
            b2=_normal(nxt(), (dim,)),
            g2=1.0 + _normal(nxt(), (dim,)),
            be2=_normal(nxt(), (dim,)),
        )
    if stride == 4:
        d2 = dim // 2
        p["ct1_w"] = convT_poly_lhs(_normal(nxt(), (dim, d2, 4, 4)))
        p["ct1_b"] = _normal(nxt(), (d2,))
        p["ct1_g"] = 1.0 + _normal(nxt(), (d2,))
        p["ct1_be"] = _normal(nxt(), (d2,))
        p["ct2_w"] = convT_poly_lhs(_normal(nxt(), (d2, out_dim, 4, 4)))
        p["ct2_b"] = _normal(nxt(), (out_dim,))
        p["ct2_g"] = 1.0 + _normal(nxt(), (out_dim,))
        p["ct2_be"] = _normal(nxt(), (out_dim,))
    else:  # stride == 2
        p["ct1_w"] = convT_poly_lhs(_normal(nxt(), (dim, out_dim, 4, 4)))
        p["ct1_b"] = _normal(nxt(), (out_dim,))
    return p


def decoder_forward(x_nchw, p, *, stride):
    """x: NCHW f32. Returns NCHW (stride=2) or permute(0,2,1,3) of NCHW (stride=4)."""
    n, _, h, w = x_nchw.shape
    m = n * h * w
    img = x_nchw.transpose(1, 0, 2, 3)                       # CNHW

    # Conv2d(in_dim, dim, 3, 1, 1)
    pt = _patches_3x3(img).astype(jnp.bfloat16)
    cur = conv_matmul(p["conv1_w"], pt, p["conv1_b"], m_valid=m)   # (dim, Mp)
    dim = cur.shape[0]

    # ResBlock x2:  x + BN2(Conv1x1(ReLU(BN1(Conv3x3(ReLU(x))))))
    for rb in (p["rb1"], p["rb2"]):
        img = jnp.maximum(cur[:, :m].reshape(dim, n, h, w), 0.0)   # ReLU once, pre-patch
        pt = _patches_3x3(img).astype(jnp.bfloat16)
        t, st1 = conv_matmul(rb["w1"], pt, rb["b1"], m_valid=m, want_stats=True)
        sc1, sh1 = bn_scale_shift(st1, m, rb["g1"], rb["be1"])
        # 1x1 conv with BN1-apply + ReLU fused into its rhs, BN2 stats fused in epilogue.
        u, st2 = conv_matmul(rb["w2"], t, rb["b2"], m_valid=m,
                             rhs_affine=(sc1, sh1), want_stats=True)
        sc2, sh2 = bn_scale_shift(st2, m, rb["g2"], rb["be2"])
        cur = bn_apply(u, sc2, sh2, relu=False, residual=cur)

    # ReLU before the first ConvTranspose
    img = jnp.maximum(cur[:, :m].reshape(dim, n, h, w), 0.0)
    pt = _patches_3x3(img).astype(jnp.bfloat16)

    if stride == 2:
        # ConvTranspose2d(dim, out_dim, 4, 2, 1)
        out_dim = p["ct1_b"].shape[0]
        y = conv_matmul(p["ct1_w"], pt, jnp.tile(p["ct1_b"], 4), m_valid=m)
        out = _interleave_phases(y[:, :m], out_dim, n, h, w)       # (out_dim, N, 2H, 2W)
        return out.transpose(1, 0, 2, 3)                           # NCHW

    # stride == 4
    # ConvTranspose2d(dim, dim//2, 4, 2, 1) -> BN -> ReLU
    d2 = p["ct1_g"].shape[0]
    y, st = conv_matmul(p["ct1_w"], pt, jnp.tile(p["ct1_b"], 4), m_valid=m,
                        want_stats=True)
    st_c = st.reshape(4, d2, 2).sum(axis=0)                        # per-channel over phases
    sc, sh = bn_scale_shift(st_c, 4 * m, p["ct1_g"], p["ct1_be"])
    y = bn_apply(y, jnp.tile(sc, (4, 1)), jnp.tile(sh, (4, 1)), relu=True)
    h1, w1 = 2 * h, 2 * w
    m1 = n * h1 * w1
    img1 = _interleave_phases(y[:, :m], d2, n, h, w)               # (d2, N, 2H, 2W)

    # ConvTranspose2d(dim//2, out_dim, 4, 2, 1) -> BN -> ReLU
    out_dim = p["ct2_g"].shape[0]
    pt = _patches_3x3(img1).astype(jnp.bfloat16)
    y, st = conv_matmul(p["ct2_w"], pt, jnp.tile(p["ct2_b"], 4), m_valid=m1,
                        want_stats=True)
    st_c = st.reshape(4, out_dim, 2).sum(axis=0)
    sc, sh = bn_scale_shift(st_c, 4 * m1, p["ct2_g"], p["ct2_be"])
    y = bn_apply(y, jnp.tile(sc, (4, 1)), jnp.tile(sh, (4, 1)), relu=True)
    out = _interleave_phases(y[:, :m1], out_dim, n, h1, w1)        # (out_dim, N, 4H, 4W)

    # Transpose(): NCHW.permute(0, 2, 1, 3) -> (N, H, C, W)
    return out.transpose(1, 2, 0, 3)


# ----------------------------------------------------------------------------
if __name__ == "__main__":
    key = jax.random.PRNGKey(0)
    kp4, kp2, kx = jax.random.split(key, 3)

    in_dim, out_dim, dim = 4, 3, 8
    N, H, W = 2, 16, 16
    x = jax.random.normal(kx, (N, in_dim, H, W), dtype=jnp.float32)

    # stride = 4 configuration
    params4 = init_decoder_params(kp4, in_dim, out_dim, dim, stride=4)
    y4 = jax.jit(functools.partial(decoder_forward, stride=4))(x, params4)
    jax.block_until_ready(y4)
    assert y4.shape == (N, 4 * H, out_dim, 4 * W), y4.shape
    assert bool(jnp.isfinite(y4).all())

    # stride = 2 configuration
    params2 = init_decoder_params(kp2, in_dim, out_dim, dim, stride=2)
    y2 = jax.jit(functools.partial(decoder_forward, stride=2))(x, params2)
    jax.block_until_ready(y2)
    assert y2.shape == (N, out_dim, 2 * H, 2 * W), y2.shape
    assert bool(jnp.isfinite(y2).all())

    print("KERNEL_OK")
</pallas_src>

<mosaic_0001>
module attributes {stable_mosaic.version = 11 : i64} {
  func.func @_matmul_kernel(%arg0: i32, %arg1: memref<8x36xbf16, #tpu.memory_space<vmem>>, %arg2: memref<36x256xbf16, #tpu.memory_space<vmem>>, %arg3: memref<8x1xf32, #tpu.memory_space<vmem>>, %arg4: memref<8x256xf32, #tpu.memory_space<vmem>>) attributes {dimension_semantics = [#tpu.dimension_semantics<parallel>], iteration_bounds = array<i64: 2>, scalar_prefetch = 0 : i64, scratch_operands = 0 : i64, tpu.core_type = #tpu.core_type<tc>, window_params = [{pipeline_mode = #tpu.pipeline_mode<synchronous>, transform_indices = @transform_0, window_bounds = array<i64: 8, 36>}, {transform_indices = @transform_1, window_bounds = array<i64: 36, 256>}, {pipeline_mode = #tpu.pipeline_mode<synchronous>, transform_indices = @transform_2, window_bounds = array<i64: 8, 1>}, {transform_indices = @transform_3, window_bounds = array<i64: 8, 256>}]} {
    %c0 = arith.constant 0 : index
    %c0_0 = arith.constant 0 : index
    %0 = vector.load %arg2[%c0, %c0_0] : memref<36x256xbf16, #tpu.memory_space<vmem>>, vector<36x256xbf16>
    %c0_1 = arith.constant 0 : index
    %c0_2 = arith.constant 0 : index
    %1 = vector.load %arg1[%c0_1, %c0_2] : memref<8x36xbf16, #tpu.memory_space<vmem>>, vector<8x36xbf16>
    %cst = arith.constant dense<0.000000e+00> : vector<8x256xf32>
    %2 = tpu.matmul %1, %0, %cst {dimension_numbers = #tpu.dot_dimension_numbers<[1], [0], [0], [1], [0, 0, 1, 1], [], []>} : vector<8x36xbf16>, vector<36x256xbf16>, vector<8x256xf32> -> vector<8x256xf32>
    %c0_3 = arith.constant 0 : index
    %c0_4 = arith.constant 0 : index
    %3 = vector.load %arg3[%c0_3, %c0_4] : memref<8x1xf32, #tpu.memory_space<vmem>>, vector<8x1xf32>
    %4 = vector.broadcast %3 : vector<8x1xf32> to vector<8x256xf32>
    %5 = arith.addf %2, %4 : vector<8x256xf32>
    %c0_5 = arith.constant 0 : index
    %c0_6 = arith.constant 0 : index
    %6 = vector.load %arg4[%c0_5, %c0_6] : memref<8x256xf32, #tpu.memory_space<vmem>>, vector<8x256xf32>
    tpu.vector_store %arg4[%c0_5, %c0_6], %5 {strides = array<i32>} : memref<8x256xf32, #tpu.memory_space<vmem>>, vector<8x256xf32>,
    return
  }
  func.func @transform_0(%arg0: i32) -> (i32, i32) {
    %c0_i32 = arith.constant 0 : i32
    %c0_i32_0 = arith.constant 0 : i32
    %c0_i32_1 = arith.constant 0 : i32
    return %c0_i32, %c0_i32_0 : i32, i32
  }
  func.func @transform_1(%arg0: i32) -> (i32, i32) {
    %c0_i32 = arith.constant 0 : i32
    %c0_i32_0 = arith.constant 0 : i32
    return %c0_i32, %arg0 : i32, i32
  }
  func.func @transform_2(%arg0: i32) -> (i32, i32) {
    %c0_i32 = arith.constant 0 : i32
    %c0_i32_0 = arith.constant 0 : i32
    %c0_i32_1 = arith.constant 0 : i32
    return %c0_i32, %c0_i32_0 : i32, i32
  }
  func.func @transform_3(%arg0: i32) -> (i32, i32) {
    %c0_i32 = arith.constant 0 : i32
    %c0_i32_0 = arith.constant 0 : i32
    return %c0_i32, %arg0 : i32, i32
  }
}

module attributes {stable_mosaic.version = 11 : i64} {
  func.func @_matmul_kernel(%arg0: i32, %arg1: memref<2x72xbf16, #tpu.memory_space<vmem>>, %arg2: memref<72x256xbf16, #tpu.memory_space<vmem>>, %arg3: memref<2x1xf32, #tpu.memory_space<vmem>>, %arg4: memref<2x256xf32, #tpu.memory_space<vmem>>, %arg5: memref<1x2x1xf32, #tpu.memory_space<vmem>>, %arg6: memref<1x2x1xf32, #tpu.memory_space<vmem>>) attributes {dimension_semantics = [#tpu.dimension_semantics<parallel>], iteration_bounds = array<i64: 2>, scalar_prefetch = 0 : i64, scratch_operands = 0 : i64, tpu.core_type = #tpu.core_type<tc>, window_params = [{pipeline_mode = #tpu.pipeline_mode<synchronous>, transform_indices = @transform_0, window_bounds = array<i64: 2, 72>}, {transform_indices = @transform_1, window_bounds = array<i64: 72, 256>}, {pipeline_mode = #tpu.pipeline_mode<synchronous>, transform_indices = @transform_2, window_bounds = array<i64: 2, 1>}, {transform_indices = @transform_3, window_bounds = array<i64: 2, 256>}, {transform_indices = @transform_4, window_bounds = array<i64: 1, 2, 1>}, {transform_indices = @transform_5, window_bounds = array<i64: 1, 2, 1>}]} {
    %c0 = arith.constant 0 : index
    %c0_0 = arith.constant 0 : index
    %0 = vector.load %arg2[%c0, %c0_0] : memref<72x256xbf16, #tpu.memory_space<vmem>>, vector<72x256xbf16>
    %c0_1 = arith.constant 0 : index
    %c0_2 = arith.constant 0 : index
    %1 = vector.load %arg1[%c0_1, %c0_2] : memref<2x72xbf16, #tpu.memory_space<vmem>>, vector<2x72xbf16>
    %cst = arith.constant dense<0.000000e+00> : vector<2x256xf32>
    %2 = tpu.matmul %1, %0, %cst {dimension_numbers = #tpu.dot_dimension_numbers<[1], [0], [0], [1], [0, 0, 1, 1], [], []>} : vector<2x72xbf16>, vector<72x256xbf16>, vector<2x256xf32> -> vector<2x256xf32>
    %c0_3 = arith.constant 0 : index
    %c0_4 = arith.constant 0 : index
    %3 = vector.load %arg3[%c0_3, %c0_4] : memref<2x1xf32, #tpu.memory_space<vmem>>, vector<2x1xf32>
    %4 = vector.broadcast %3 : vector<2x1xf32> to vector<2x256xf32>
    %5 = arith.addf %2, %4 : vector<2x256xf32>
    %c0_5 = arith.constant 0 : index
    %c0_6 = arith.constant 0 : index
    %6 = vector.load %arg4[%c0_5, %c0_6] : memref<2x256xf32, #tpu.memory_space<vmem>>, vector<2x256xf32>
    tpu.vector_store %arg4[%c0_5, %c0_6], %5 {strides = array<i32>} : memref<2x256xf32, #tpu.memory_space<vmem>>, vector<2x256xf32>,
    %7 = tpu.iota {dimensions = array<i32: 1>} : vector<2x256xi32>
    %c256_i32 = arith.constant 256 : i32
    %8 = arith.muli %arg0, %c256_i32 : i32
    %9 = vector.broadcast %8 : i32 to vector<2x256xi32>
    %10 = arith.addi %7, %9 : vector<2x256xi32>
    %c512_i32 = arith.constant 512 : i32
    %11 = vector.broadcast %c512_i32 : i32 to vector<2x256xi32>
    %12 = arith.cmpi slt, %10, %11 : vector<2x256xi32>
    %cst_7 = arith.constant 0.000000e+00 : f32
    %13 = vector.broadcast %cst_7 : f32 to vector<2x256xf32>
    %14 = arith.select %12, %5, %13 : vector<2x256xi1>, vector<2x256xf32>
    %cst_8 = arith.constant dense<0.000000e+00> : vector<2xf32>
    %15 = vector.multi_reduction <add>, %14, %cst_8 [1] : vector<2x256xf32> to vector<2xf32>
    %16 = vector.shape_cast %15 : vector<2xf32> to vector<2x1xf32>
    %17 = vector.shape_cast %16 : vector<2x1xf32> to vector<1x2x1xf32>
    %c0_9 = arith.constant 0 : index
    %c0_10 = arith.constant 0 : index
    %c0_11 = arith.constant 0 : index
    %18 = vector.load %arg5[%c0_9, %c0_10, %c0_11] : memref<1x2x1xf32, #tpu.memory_space<vmem>>, vector<1x2x1xf32>
    tpu.vector_store %arg5[%c0_9, %c0_10, %c0_11], %17 {strides = array<i32>} : memref<1x2x1xf32, #tpu.memory_space<vmem>>, vector<1x2x1xf32>,
    %19 = arith.mulf %14, %14 : vector<2x256xf32>
    %cst_12 = arith.constant dense<0.000000e+00> : vector<2xf32>
    %20 = vector.multi_reduction <add>, %19, %cst_12 [1] : vector<2x256xf32> to vector<2xf32>
    %21 = vector.shape_cast %20 : vector<2xf32> to vector<2x1xf32>
    %22 = vector.shape_cast %21 : vector<2x1xf32> to vector<1x2x1xf32>
    %c0_13 = arith.constant 0 : index
    %c0_14 = arith.constant 0 : index
    %c0_15 = arith.constant 0 : index
    %23 = vector.load %arg6[%c0_13, %c0_14, %c0_15] : memref<1x2x1xf32, #tpu.memory_space<vmem>>, vector<1x2x1xf32>
    tpu.vector_store %arg6[%c0_13, %c0_14, %c0_15], %22 {strides = array<i32>} : memref<1x2x1xf32, #tpu.memory_space<vmem>>, vector<1x2x1xf32>,
    return
  }
  func.func @transform_0(%arg0: i32) -> (i32, i32) {
    %c0_i32 = arith.constant 0 : i32
    %c0_i32_0 = arith.constant 0 : i32
    %c0_i32_1 = arith.constant 0 : i32
    return %c0_i32, %c0_i32_0 : i32, i32
  }
  func.func @transform_1(%arg0: i32) -> (i32, i32) {
    %c0_i32 = arith.constant 0 : i32
    %c0_i32_0 = arith.constant 0 : i32
    return %c0_i32, %arg0 : i32, i32
  }
  func.func @transform_2(%arg0: i32) -> (i32, i32) {
    %c0_i32 = arith.constant 0 : i32
    %c0_i32_0 = arith.constant 0 : i32
    %c0_i32_1 = arith.constant 0 : i32
    return %c0_i32, %c0_i32_0 : i32, i32
  }
  func.func @transform_3(%arg0: i32) -> (i32, i32) {
    %c0_i32 = arith.constant 0 : i32
    %c0_i32_0 = arith.constant 0 : i32
    return %c0_i32, %arg0 : i32, i32
  }
  func.func @transform_4(%arg0: i32) -> (i32, i32, i32) {
    %c0_i32 = arith.constant 0 : i32
    %c0_i32_0 = arith.constant 0 : i32
    %c0_i32_1 = arith.constant 0 : i32
    return %arg0, %c0_i32, %c0_i32_0 : i32, i32, i32
  }
  func.func @transform_5(%arg0: i32) -> (i32, i32, i32) {
    %c0_i32 = arith.constant 0 : i32
    %c0_i32_0 = arith.constant 0 : i32
    %c0_i32_1 = arith.constant 0 : i32
    return %arg0, %c0_i32, %c0_i32_0 : i32, i32, i32
  }
}

module attributes {stable_mosaic.version = 11 : i64} {
  func.func @_matmul_kernel(%arg0: i32, %arg1: memref<8x2xbf16, #tpu.memory_space<vmem>>, %arg2: memref<2x256xf32, #tpu.memory_space<vmem>>, %arg3: memref<8x1xf32, #tpu.memory_space<vmem>>, %arg4: memref<2x1xf32, #tpu.memory_space<vmem>>, %arg5: memref<2x1xf32, #tpu.memory_space<vmem>>, %arg6: memref<8x256xf32, #tpu.memory_space<vmem>>, %arg7: memref<1x8x1xf32, #tpu.memory_space<vmem>>, %arg8: memref<1x8x1xf32, #tpu.memory_space<vmem>>) attributes {dimension_semantics = [#tpu.dimension_semantics<parallel>], iteration_bounds = array<i64: 2>, scalar_prefetch = 0 : i64, scratch_operands = 0 : i64, tpu.core_type = #tpu.core_type<tc>, window_params = [{pipeline_mode = #tpu.pipeline_mode<synchronous>, transform_indices = @transform_0, window_bounds = array<i64: 8, 2>}, {transform_indices = @transform_1, window_bounds = array<i64: 2, 256>}, {pipeline_mode = #tpu.pipeline_mode<synchronous>, transform_indices = @transform_2, window_bounds = array<i64: 8, 1>}, {pipeline_mode = #tpu.pipeline_mode<synchronous>, transform_indices = @transform_3, window_bounds = array<i64: 2, 1>}, {pipeline_mode = #tpu.pipeline_mode<synchronous>, transform_indices = @transform_4, window_bounds = array<i64: 2, 1>}, {transform_indices = @transform_5, window_bounds = array<i64: 8, 256>}, {transform_indices = @transform_6, window_bounds = array<i64: 1, 8, 1>}, {transform_indices = @transform_7, window_bounds = array<i64: 1, 8, 1>}]} {
    %c0 = arith.constant 0 : index
    %c0_0 = arith.constant 0 : index
    %0 = vector.load %arg2[%c0, %c0_0] : memref<2x256xf32, #tpu.memory_space<vmem>>, vector<2x256xf32>
    %c0_1 = arith.constant 0 : index
    %c0_2 = arith.constant 0 : index
    %1 = vector.load %arg4[%c0_1, %c0_2] : memref<2x1xf32, #tpu.memory_space<vmem>>, vector<2x1xf32>
    %2 = vector.broadcast %1 : vector<2x1xf32> to vector<2x256xf32>
    %3 = arith.mulf %0, %2 : vector<2x256xf32>
    %c0_3 = arith.constant 0 : index
    %c0_4 = arith.constant 0 : index
    %4 = vector.load %arg5[%c0_3, %c0_4] : memref<2x1xf32, #tpu.memory_space<vmem>>, vector<2x1xf32>
    %5 = vector.broadcast %4 : vector<2x1xf32> to vector<2x256xf32>
    %6 = arith.addf %3, %5 : vector<2x256xf32>
    %cst = arith.constant 0.000000e+00 : f32
    %7 = vector.broadcast %cst : f32 to vector<2x256xf32>
    %8 = arith.maximumf %6, %7 : vector<2x256xf32>
    %c0_5 = arith.constant 0 : index
    %c0_6 = arith.constant 0 : index
    %9 = vector.load %arg1[%c0_5, %c0_6] : memref<8x2xbf16, #tpu.memory_space<vmem>>, vector<8x2xbf16>
    %10 = arith.truncf %8 : vector<2x256xf32> to vector<2x256xbf16>
    %cst_7 = arith.constant dense<0.000000e+00> : vector<8x256xf32>
    %11 = tpu.matmul %9, %10, %cst_7 {dimension_numbers = #tpu.dot_dimension_numbers<[1], [0], [0], [1], [0, 0, 1, 1], [], []>} : vector<8x2xbf16>, vector<2x256xbf16>, vector<8x256xf32> -> vector<8x256xf32>
    %c0_8 = arith.constant 0 : index
    %c0_9 = arith.constant 0 : index
    %12 = vector.load %arg3[%c0_8, %c0_9] : memref<8x1xf32, #tpu.memory_space<vmem>>, vector<8x1xf32>
    %13 = vector.broadcast %12 : vector<8x1xf32> to vector<8x256xf32>
    %14 = arith.addf %11, %13 : vector<8x256xf32>
    %c0_10 = arith.constant 0 : index
    %c0_11 = arith.constant 0 : index
    %15 = vector.load %arg6[%c0_10, %c0_11] : memref<8x256xf32, #tpu.memory_space<vmem>>, vector<8x256xf32>
    tpu.vector_store %arg6[%c0_10, %c0_11], %14 {strides = array<i32>} : memref<8x256xf32, #tpu.memory_space<vmem>>, vector<8x256xf32>,
    %16 = tpu.iota {dimensions = array<i32: 1>} : vector<8x256xi32>
    %c256_i32 = arith.constant 256 : i32
    %17 = arith.muli %arg0, %c256_i32 : i32
    %18 = vector.broadcast %17 : i32 to vector<8x256xi32>
    %19 = arith.addi %16, %18 : vector<8x256xi32>
    %c512_i32 = arith.constant 512 : i32
    %20 = vector.broadcast %c512_i32 : i32 to vector<8x256xi32>
    %21 = arith.cmpi slt, %19, %20 : vector<8x256xi32>
    %cst_12 = arith.constant 0.000000e+00 : f32
    %22 = vector.broadcast %cst_12 : f32 to vector<8x256xf32>
    %23 = arith.select %21, %14, %22 : vector<8x256xi1>, vector<8x256xf32>
    %cst_13 = arith.constant dense<0.000000e+00> : vector<8xf32>
    %24 = vector.multi_reduction <add>, %23, %cst_13 [1] : vector<8x256xf32> to vector<8xf32>
    %25 = vector.shape_cast %24 : vector<8xf32> to vector<8x1xf32>
    %26 = vector.shape_cast %25 : vector<8x1xf32> to vector<1x8x1xf32>
    %c0_14 = arith.constant 0 : index
    %c0_15 = arith.constant 0 : index
    %c0_16 = arith.constant 0 : index
    %27 = vector.load %arg7[%c0_14, %c0_15, %c0_16] : memref<1x8x1xf32, #tpu.memory_space<vmem>>, vector<1x8x1xf32>
    tpu.vector_store %arg7[%c0_14, %c0_15, %c0_16], %26 {strides = array<i32>} : memref<1x8x1xf32, #tpu.memory_space<vmem>>, vector<1x8x1xf32>,
    %28 = arith.mulf %23, %23 : vector<8x256xf32>
    %cst_17 = arith.constant dense<0.000000e+00> : vector<8xf32>
    %29 = vector.multi_reduction <add>, %28, %cst_17 [1] : vector<8x256xf32> to vector<8xf32>
    %30 = vector.shape_cast %29 : vector<8xf32> to vector<8x1xf32>
    %31 = vector.shape_cast %30 : vector<8x1xf32> to vector<1x8x1xf32>
    %c0_18 = arith.constant 0 : index
    %c0_19 = arith.constant 0 : index
    %c0_20 = arith.constant 0 : index
    %32 = vector.load %arg8[%c0_18, %c0_19, %c0_20] : memref<1x8x1xf32, #tpu.memory_space<vmem>>, vector<1x8x1xf32>
    tpu.vector_store %arg8[%c0_18, %c0_19, %c0_20], %31 {strides = array<i32>} : memref<1x8x1xf32, #tpu.memory_space<vmem>>, vector<1x8x1xf32>,
    return
  }
  func.func @transform_0(%arg0: i32) -> (i32, i32) {
    %c0_i32 = arith.constant 0 : i32
    %c0_i32_0 = arith.constant 0 : i32
    %c0_i32_1 = arith.constant 0 : i32
    return %c0_i32, %c0_i32_0 : i32, i32
  }
  func.func @transform_1(%arg0: i32) -> (i32, i32) {
    %c0_i32 = arith.constant 0 : i32
    %c0_i32_0 = arith.constant 0 : i32
    return %c0_i32, %arg0 : i32, i32
  }
  func.func @transform_2(%arg0: i32) -> (i32, i32) {
    %c0_i32 = arith.constant 0 : i32
    %c0_i32_0 = arith.constant 0 : i32
    %c0_i32_1 = arith.constant 0 : i32
    return %c0_i32, %c0_i32_0 : i32, i32
  }
  func.func @transform_3(%arg0: i32) -> (i32, i32) {
    %c0_i32 = arith.constant 0 : i32
    %c0_i32_0 = arith.constant 0 : i32
    %c0_i32_1 = arith.constant 0 : i32
    return %c0_i32, %c0_i32_0 : i32, i32
  }
  func.func @transform_4(%arg0: i32) -> (i32, i32) {
    %c0_i32 = arith.constant 0 : i32
    %c0_i32_0 = arith.constant 0 : i32
    %c0_i32_1 = arith.constant 0 : i32
    return %c0_i32, %c0_i32_0 : i32, i32
  }
  func.func @transform_5(%arg0: i32) -> (i32, i32) {
    %c0_i32 = arith.constant 0 : i32
    %c0_i32_0 = arith.constant 0 : i32
    return %c0_i32, %arg0 : i32, i32
  }
  func.func @transform_6(%arg0: i32) -> (i32, i32, i32) {
    %c0_i32 = arith.constant 0 : i32
    %c0_i32_0 = arith.constant 0 : i32
    %c0_i32_1 = arith.constant 0 : i32
    return %arg0, %c0_i32, %c0_i32_0 : i32, i32, i32
  }
  func.func @transform_7(%arg0: i32) -> (i32, i32, i32) {
    %c0_i32 = arith.constant 0 : i32
    %c0_i32_0 = arith.constant 0 : i32
    %c0_i32_1 = arith.constant 0 : i32
    return %arg0, %c0_i32, %c0_i32_0 : i32, i32, i32
  }
}

module attributes {stable_mosaic.version = 11 : i64} {
  func.func @_bn_apply_kernel(%arg0: i32, %arg1: memref<8x256xf32, #tpu.memory_space<vmem>>, %arg2: memref<8x1xf32, #tpu.memory_space<vmem>>, %arg3: memref<8x1xf32, #tpu.memory_space<vmem>>, %arg4: memref<8x256xf32, #tpu.memory_space<vmem>>, %arg5: memref<8x256xf32, #tpu.memory_space<vmem>>) attributes {dimension_semantics = [#tpu.dimension_semantics<parallel>], iteration_bounds = array<i64: 2>, scalar_prefetch = 0 : i64, scratch_operands = 0 : i64, tpu.core_type = #tpu.core_type<tc>, window_params = [{transform_indices = @transform_0, window_bounds = array<i64: 8, 256>}, {pipeline_mode = #tpu.pipeline_mode<synchronous>, transform_indices = @transform_1, window_bounds = array<i64: 8, 1>}, {pipeline_mode = #tpu.pipeline_mode<synchronous>, transform_indices = @transform_2, window_bounds = array<i64: 8, 1>}, {transform_indices = @transform_3, window_bounds = array<i64: 8, 256>}, {transform_indices = @transform_4, window_bounds = array<i64: 8, 256>}]} {
    %c0 = arith.constant 0 : index
    %c0_0 = arith.constant 0 : index
    %0 = vector.load %arg1[%c0, %c0_0] : memref<8x256xf32, #tpu.memory_space<vmem>>, vector<8x256xf32>
    %c0_1 = arith.constant 0 : index
    %c0_2 = arith.constant 0 : index
    %1 = vector.load %arg2[%c0_1, %c0_2] : memref<8x1xf32, #tpu.memory_space<vmem>>, vector<8x1xf32>
    %2 = vector.broadcast %1 : vector<8x1xf32> to vector<8x256xf32>
    %3 = arith.mulf %0, %2 : vector<8x256xf32>
    %c0_3 = arith.constant 0 : index
    %c0_4 = arith.constant 0 : index
    %4 = vector.load %arg3[%c0_3, %c0_4] : memref<8x1xf32, #tpu.memory_space<vmem>>, vector<8x1xf32>
    %5 = vector.broadcast %4 : vector<8x1xf32> to vector<8x256xf32>
    %6 = arith.addf %3, %5 : vector<8x256xf32>
    %c0_5 = arith.constant 0 : index
    %c0_6 = arith.constant 0 : index
    %7 = vector.load %arg4[%c0_5, %c0_6] : memref<8x256xf32, #tpu.memory_space<vmem>>, vector<8x256xf32>
    %8 = arith.addf %6, %7 : vector<8x256xf32>
    %c0_7 = arith.constant 0 : index
    %c0_8 = arith.constant 0 : index
    %9 = vector.load %arg5[%c0_7, %c0_8] : memref<8x256xf32, #tpu.memory_space<vmem>>, vector<8x256xf32>
    tpu.vector_store %arg5[%c0_7, %c0_8], %8 {strides = array<i32>} : memref<8x256xf32, #tpu.memory_space<vmem>>, vector<8x256xf32>,
    return
  }
  func.func @transform_0(%arg0: i32) -> (i32, i32) {
    %c0_i32 = arith.constant 0 : i32
    %c0_i32_0 = arith.constant 0 : i32
    return %c0_i32, %arg0 : i32, i32
  }
  func.func @transform_1(%arg0: i32) -> (i32, i32) {
    %c0_i32 = arith.constant 0 : i32
    %c0_i32_0 = arith.constant 0 : i32
    %c0_i32_1 = arith.constant 0 : i32
    return %c0_i32, %c0_i32_0 : i32, i32
  }
  func.func @transform_2(%arg0: i32) -> (i32, i32) {
    %c0_i32 = arith.constant 0 : i32
    %c0_i32_0 = arith.constant 0 : i32
    %c0_i32_1 = arith.constant 0 : i32
    return %c0_i32, %c0_i32_0 : i32, i32
  }
  func.func @transform_3(%arg0: i32) -> (i32, i32) {
    %c0_i32 = arith.constant 0 : i32
    %c0_i32_0 = arith.constant 0 : i32
    return %c0_i32, %arg0 : i32, i32
  }
  func.func @transform_4(%arg0: i32) -> (i32, i32) {
    %c0_i32 = arith.constant 0 : i32
    %c0_i32_0 = arith.constant 0 : i32
    return %c0_i32, %arg0 : i32, i32
  }
}

module attributes {stable_mosaic.version = 11 : i64} {
  func.func @_matmul_kernel(%arg0: i32, %arg1: memref<2x72xbf16, #tpu.memory_space<vmem>>, %arg2: memref<72x256xbf16, #tpu.memory_space<vmem>>, %arg3: memref<2x1xf32, #tpu.memory_space<vmem>>, %arg4: memref<2x256xf32, #tpu.memory_space<vmem>>, %arg5: memref<1x2x1xf32, #tpu.memory_space<vmem>>, %arg6: memref<1x2x1xf32, #tpu.memory_space<vmem>>) attributes {dimension_semantics = [#tpu.dimension_semantics<parallel>], iteration_bounds = array<i64: 2>, scalar_prefetch = 0 : i64, scratch_operands = 0 : i64, tpu.core_type = #tpu.core_type<tc>, window_params = [{pipeline_mode = #tpu.pipeline_mode<synchronous>, transform_indices = @transform_0, window_bounds = array<i64: 2, 72>}, {transform_indices = @transform_1, window_bounds = array<i64: 72, 256>}, {pipeline_mode = #tpu.pipeline_mode<synchronous>, transform_indices = @transform_2, window_bounds = array<i64: 2, 1>}, {transform_indices = @transform_3, window_bounds = array<i64: 2, 256>}, {transform_indices = @transform_4, window_bounds = array<i64: 1, 2, 1>}, {transform_indices = @transform_5, window_bounds = array<i64: 1, 2, 1>}]} {
    %c0 = arith.constant 0 : index
    %c0_0 = arith.constant 0 : index
    %0 = vector.load %arg2[%c0, %c0_0] : memref<72x256xbf16, #tpu.memory_space<vmem>>, vector<72x256xbf16>
    %c0_1 = arith.constant 0 : index
    %c0_2 = arith.constant 0 : index
    %1 = vector.load %arg1[%c0_1, %c0_2] : memref<2x72xbf16, #tpu.memory_space<vmem>>, vector<2x72xbf16>
    %cst = arith.constant dense<0.000000e+00> : vector<2x256xf32>
    %2 = tpu.matmul %1, %0, %cst {dimension_numbers = #tpu.dot_dimension_numbers<[1], [0], [0], [1], [0, 0, 1, 1], [], []>} : vector<2x72xbf16>, vector<72x256xbf16>, vector<2x256xf32> -> vector<2x256xf32>
    %c0_3 = arith.constant 0 : index
    %c0_4 = arith.constant 0 : index
    %3 = vector.load %arg3[%c0_3, %c0_4] : memref<2x1xf32, #tpu.memory_space<vmem>>, vector<2x1xf32>
    %4 = vector.broadcast %3 : vector<2x1xf32> to vector<2x256xf32>
    %5 = arith.addf %2, %4 : vector<2x256xf32>
    %c0_5 = arith.constant 0 : index
    %c0_6 = arith.constant 0 : index
    %6 = vector.load %arg4[%c0_5, %c0_6] : memref<2x256xf32, #tpu.memory_space<vmem>>, vector<2x256xf32>
    tpu.vector_store %arg4[%c0_5, %c0_6], %5 {strides = array<i32>} : memref<2x256xf32, #tpu.memory_space<vmem>>, vector<2x256xf32>,
    %7 = tpu.iota {dimensions = array<i32: 1>} : vector<2x256xi32>
    %c256_i32 = arith.constant 256 : i32
    %8 = arith.muli %arg0, %c256_i32 : i32
    %9 = vector.broadcast %8 : i32 to vector<2x256xi32>
    %10 = arith.addi %7, %9 : vector<2x256xi32>
    %c512_i32 = arith.constant 512 : i32
    %11 = vector.broadcast %c512_i32 : i32 to vector<2x256xi32>
    %12 = arith.cmpi slt, %10, %11 : vector<2x256xi32>
    %cst_7 = arith.constant 0.000000e+00 : f32
    %13 = vector.broadcast %cst_7 : f32 to vector<2x256xf32>
    %14 = arith.select %12, %5, %13 : vector<2x256xi1>, vector<2x256xf32>
    %cst_8 = arith.constant dense<0.000000e+00> : vector<2xf32>
    %15 = vector.multi_reduction <add>, %14, %cst_8 [1] : vector<2x256xf32> to vector<2xf32>
    %16 = vector.shape_cast %15 : vector<2xf32> to vector<2x1xf32>
    %17 = vector.shape_cast %16 : vector<2x1xf32> to vector<1x2x1xf32>
    %c0_9 = arith.constant 0 : index
    %c0_10 = arith.constant 0 : index
    %c0_11 = arith.constant 0 : index
    %18 = vector.load %arg5[%c0_9, %c0_10, %c0_11] : memref<1x2x1xf32, #tpu.memory_space<vmem>>, vector<1x2x1xf32>
    tpu.vector_store %arg5[%c0_9, %c0_10, %c0_11], %17 {strides = array<i32>} : memref<1x2x1xf32, #tpu.memory_space<vmem>>, vector<1x2x1xf32>,
    %19 = arith.mulf %14, %14 : vector<2x256xf32>
    %cst_12 = arith.constant dense<0.000000e+00> : vector<2xf32>
    %20 = vector.multi_reduction <add>, %19, %cst_12 [1] : vector<2x256xf32> to vector<2xf32>
    %21 = vector.shape_cast %20 : vector<2xf32> to vector<2x1xf32>
    %22 = vector.shape_cast %21 : vector<2x1xf32> to vector<1x2x1xf32>
    %c0_13 = arith.constant 0 : index
    %c0_14 = arith.constant 0 : index
    %c0_15 = arith.constant 0 : index
    %23 = vector.load %arg6[%c0_13, %c0_14, %c0_15] : memref<1x2x1xf32, #tpu.memory_space<vmem>>, vector<1x2x1xf32>
    tpu.vector_store %arg6[%c0_13, %c0_14, %c0_15], %22 {strides = array<i32>} : memref<1x2x1xf32, #tpu.memory_space<vmem>>, vector<1x2x1xf32>,
    return
  }
  func.func @transform_0(%arg0: i32) -> (i32, i32) {
    %c0_i32 = arith.constant 0 : i32
    %c0_i32_0 = arith.constant 0 : i32
    %c0_i32_1 = arith.constant 0 : i32
    return %c0_i32, %c0_i32_0 : i32, i32
  }
  func.func @transform_1(%arg0: i32) -> (i32, i32) {
    %c0_i32 = arith.constant 0 : i32
    %c0_i32_0 = arith.constant 0 : i32
    return %c0_i32, %arg0 : i32, i32
  }
  func.func @transform_2(%arg0: i32) -> (i32, i32) {
    %c0_i32 = arith.constant 0 : i32
    %c0_i32_0 = arith.constant 0 : i32
    %c0_i32_1 = arith.constant 0 : i32
    return %c0_i32, %c0_i32_0 : i32, i32
  }
  func.func @transform_3(%arg0: i32) -> (i32, i32) {
    %c0_i32 = arith.constant 0 : i32
    %c0_i32_0 = arith.constant 0 : i32
    return %c0_i32, %arg0 : i32, i32
  }
  func.func @transform_4(%arg0: i32) -> (i32, i32, i32) {
    %c0_i32 = arith.constant 0 : i32
    %c0_i32_0 = arith.constant 0 : i32
    %c0_i32_1 = arith.constant 0 : i32
    return %arg0, %c0_i32, %c0_i32_0 : i32, i32, i32
  }
  func.func @transform_5(%arg0: i32) -> (i32, i32, i32) {
    %c0_i32 = arith.constant 0 : i32
    %c0_i32_0 = arith.constant 0 : i32
    %c0_i32_1 = arith.constant 0 : i32
    return %arg0, %c0_i32, %c0_i32_0 : i32, i32, i32
  }
}

module attributes {stable_mosaic.version = 11 : i64} {
  func.func @_matmul_kernel(%arg0: i32, %arg1: memref<16x72xbf16, #tpu.memory_space<vmem>>, %arg2: memref<72x256xbf16, #tpu.memory_space<vmem>>, %arg3: memref<16x1xf32, #tpu.memory_space<vmem>>, %arg4: memref<16x256xf32, #tpu.memory_space<vmem>>, %arg5: memref<1x16x1xf32, #tpu.memory_space<vmem>>, %arg6: memref<1x16x1xf32, #tpu.memory_space<vmem>>) attributes {dimension_semantics = [#tpu.dimension_semantics<parallel>], iteration_bounds = array<i64: 2>, scalar_prefetch = 0 : i64, scratch_operands = 0 : i64, tpu.core_type = #tpu.core_type<tc>, window_params = [{pipeline_mode = #tpu.pipeline_mode<synchronous>, transform_indices = @transform_0, window_bounds = array<i64: 16, 72>}, {transform_indices = @transform_1, window_bounds = array<i64: 72, 256>}, {pipeline_mode = #tpu.pipeline_mode<synchronous>, transform_indices = @transform_2, window_bounds = array<i64: 16, 1>}, {transform_indices = @transform_3, window_bounds = array<i64: 16, 256>}, {transform_indices = @transform_4, window_bounds = array<i64: 1, 16, 1>}, {transform_indices = @transform_5, window_bounds = array<i64: 1, 16, 1>}]} {
    %c0 = arith.constant 0 : index
    %c0_0 = arith.constant 0 : index
    %0 = vector.load %arg2[%c0, %c0_0] : memref<72x256xbf16, #tpu.memory_space<vmem>>, vector<72x256xbf16>
    %c0_1 = arith.constant 0 : index
    %c0_2 = arith.constant 0 : index
    %1 = vector.load %arg1[%c0_1, %c0_2] : memref<16x72xbf16, #tpu.memory_space<vmem>>, vector<16x72xbf16>
    %cst = arith.constant dense<0.000000e+00> : vector<16x256xf32>
    %2 = tpu.matmul %1, %0, %cst {dimension_numbers = #tpu.dot_dimension_numbers<[1], [0], [0], [1], [0, 0, 1, 1], [], []>} : vector<16x72xbf16>, vector<72x256xbf16>, vector<16x256xf32> -> vector<16x256xf32>
    %c0_3 = arith.constant 0 : index
    %c0_4 = arith.constant 0 : index
    %3 = vector.load %arg3[%c0_3, %c0_4] : memref<16x1xf32, #tpu.memory_space<vmem>>, vector<16x1xf32>
    %4 = vector.broadcast %3 : vector<16x1xf32> to vector<16x256xf32>
    %5 = arith.addf %2, %4 : vector<16x256xf32>
    %c0_5 = arith.constant 0 : index
    %c0_6 = arith.constant 0 : index
    %6 = vector.load %arg4[%c0_5, %c0_6] : memref<16x256xf32, #tpu.memory_space<vmem>>, vector<16x256xf32>
    tpu.vector_store %arg4[%c0_5, %c0_6], %5 {strides = array<i32>} : memref<16x256xf32, #tpu.memory_space<vmem>>, vector<16x256xf32>,
    %7 = tpu.iota {dimensions = array<i32: 1>} : vector<16x256xi32>
    %c256_i32 = arith.constant 256 : i32
    %8 = arith.muli %arg0, %c256_i32 : i32
    %9 = vector.broadcast %8 : i32 to vector<16x256xi32>
    %10 = arith.addi %7, %9 : vector<16x256xi32>
    %c512_i32 = arith.constant 512 : i32
    %11 = vector.broadcast %c512_i32 : i32 to vector<16x256xi32>
    %12 = arith.cmpi slt, %10, %11 : vector<16x256xi32>
    %cst_7 = arith.constant 0.000000e+00 : f32
    %13 = vector.broadcast %cst_7 : f32 to vector<16x256xf32>
    %14 = arith.select %12, %5, %13 : vector<16x256xi1>, vector<16x256xf32>
    %cst_8 = arith.constant dense<0.000000e+00> : vector<16xf32>
    %15 = vector.multi_reduction <add>, %14, %cst_8 [1] : vector<16x256xf32> to vector<16xf32>
    %16 = vector.shape_cast %15 : vector<16xf32> to vector<16x1xf32>
    %17 = vector.shape_cast %16 : vector<16x1xf32> to vector<1x16x1xf32>
    %c0_9 = arith.constant 0 : index
    %c0_10 = arith.constant 0 : index
    %c0_11 = arith.constant 0 : index
    %18 = vector.load %arg5[%c0_9, %c0_10, %c0_11] : memref<1x16x1xf32, #tpu.memory_space<vmem>>, vector<1x16x1xf32>
    tpu.vector_store %arg5[%c0_9, %c0_10, %c0_11], %17 {strides = array<i32>} : memref<1x16x1xf32, #tpu.memory_space<vmem>>, vector<1x16x1xf32>,
    %19 = arith.mulf %14, %14 : vector<16x256xf32>
    %cst_12 = arith.constant dense<0.000000e+00> : vector<16xf32>
    %20 = vector.multi_reduction <add>, %19, %cst_12 [1] : vector<16x256xf32> to vector<16xf32>
    %21 = vector.shape_cast %20 : vector<16xf32> to vector<16x1xf32>
    %22 = vector.shape_cast %21 : vector<16x1xf32> to vector<1x16x1xf32>
    %c0_13 = arith.constant 0 : index
    %c0_14 = arith.constant 0 : index
    %c0_15 = arith.constant 0 : index
    %23 = vector.load %arg6[%c0_13, %c0_14, %c0_15] : memref<1x16x1xf32, #tpu.memory_space<vmem>>, vector<1x16x1xf32>
    tpu.vector_store %arg6[%c0_13, %c0_14, %c0_15], %22 {strides = array<i32>} : memref<1x16x1xf32, #tpu.memory_space<vmem>>, vector<1x16x1xf32>,
    return
  }
  func.func @transform_0(%arg0: i32) -> (i32, i32) {
    %c0_i32 = arith.constant 0 : i32
    %c0_i32_0 = arith.constant 0 : i32
    %c0_i32_1 = arith.constant 0 : i32
    return %c0_i32, %c0_i32_0 : i32, i32
  }
  func.func @transform_1(%arg0: i32) -> (i32, i32) {
    %c0_i32 = arith.constant 0 : i32
    %c0_i32_0 = arith.constant 0 : i32
    return %c0_i32, %arg0 : i32, i32
  }
  func.func @transform_2(%arg0: i32) -> (i32, i32) {
    %c0_i32 = arith.constant 0 : i32
    %c0_i32_0 = arith.constant 0 : i32
    %c0_i32_1 = arith.constant 0 : i32
    return %c0_i32, %c0_i32_0 : i32, i32
  }
  func.func @transform_3(%arg0: i32) -> (i32, i32) {
    %c0_i32 = arith.constant 0 : i32
    %c0_i32_0 = arith.constant 0 : i32
    return %c0_i32, %arg0 : i32, i32
  }
  func.func @transform_4(%arg0: i32) -> (i32, i32, i32) {
    %c0_i32 = arith.constant 0 : i32
    %c0_i32_0 = arith.constant 0 : i32
    %c0_i32_1 = arith.constant 0 : i32
    return %arg0, %c0_i32, %c0_i32_0 : i32, i32, i32
  }
  func.func @transform_5(%arg0: i32) -> (i32, i32, i32) {
    %c0_i32 = arith.constant 0 : i32
    %c0_i32_0 = arith.constant 0 : i32
    %c0_i32_1 = arith.constant 0 : i32
    return %arg0, %c0_i32, %c0_i32_0 : i32, i32, i32
  }
}

module attributes {stable_mosaic.version = 11 : i64} {
  func.func @_bn_apply_kernel(%arg0: i32, %arg1: memref<16x256xf32, #tpu.memory_space<vmem>>, %arg2: memref<16x1xf32, #tpu.memory_space<vmem>>, %arg3: memref<16x1xf32, #tpu.memory_space<vmem>>, %arg4: memref<16x256xf32, #tpu.memory_space<vmem>>) attributes {dimension_semantics = [#tpu.dimension_semantics<parallel>], iteration_bounds = array<i64: 2>, scalar_prefetch = 0 : i64, scratch_operands = 0 : i64, tpu.core_type = #tpu.core_type<tc>, window_params = [{transform_indices = @transform_0, window_bounds = array<i64: 16, 256>}, {pipeline_mode = #tpu.pipeline_mode<synchronous>, transform_indices = @transform_1, window_bounds = array<i64: 16, 1>}, {pipeline_mode = #tpu.pipeline_mode<synchronous>, transform_indices = @transform_2, window_bounds = array<i64: 16, 1>}, {transform_indices = @transform_3, window_bounds = array<i64: 16, 256>}]} {
    %c0 = arith.constant 0 : index
    %c0_0 = arith.constant 0 : index
    %0 = vector.load %arg1[%c0, %c0_0] : memref<16x256xf32, #tpu.memory_space<vmem>>, vector<16x256xf32>
    %c0_1 = arith.constant 0 : index
    %c0_2 = arith.constant 0 : index
    %1 = vector.load %arg2[%c0_1, %c0_2] : memref<16x1xf32, #tpu.memory_space<vmem>>, vector<16x1xf32>
    %2 = vector.broadcast %1 : vector<16x1xf32> to vector<16x256xf32>
    %3 = arith.mulf %0, %2 : vector<16x256xf32>
    %c0_3 = arith.constant 0 : index
    %c0_4 = arith.constant 0 : index
    %4 = vector.load %arg3[%c0_3, %c0_4] : memref<16x1xf32, #tpu.memory_space<vmem>>, vector<16x1xf32>
    %5 = vector.broadcast %4 : vector<16x1xf32> to vector<16x256xf32>
    %6 = arith.addf %3, %5 : vector<16x256xf32>
    %cst = arith.constant 0.000000e+00 : f32
    %7 = vector.broadcast %cst : f32 to vector<16x256xf32>
    %8 = arith.maximumf %6, %7 : vector<16x256xf32>
    %c0_5 = arith.constant 0 : index
    %c0_6 = arith.constant 0 : index
    %9 = vector.load %arg4[%c0_5, %c0_6] : memref<16x256xf32, #tpu.memory_space<vmem>>, vector<16x256xf32>
    tpu.vector_store %arg4[%c0_5, %c0_6], %8 {strides = array<i32>} : memref<16x256xf32, #tpu.memory_space<vmem>>, vector<16x256xf32>,
    return
  }
  func.func @transform_0(%arg0: i32) -> (i32, i32) {
    %c0_i32 = arith.constant 0 : i32
    %c0_i32_0 = arith.constant 0 : i32
    return %c0_i32, %arg0 : i32, i32
  }
  func.func @transform_1(%arg0: i32) -> (i32, i32) {
    %c0_i32 = arith.constant 0 : i32
    %c0_i32_0 = arith.constant 0 : i32
    %c0_i32_1 = arith.constant 0 : i32
    return %c0_i32, %c0_i32_0 : i32, i32
  }
  func.func @transform_2(%arg0: i32) -> (i32, i32) {
    %c0_i32 = arith.constant 0 : i32
    %c0_i32_0 = arith.constant 0 : i32
    %c0_i32_1 = arith.constant 0 : i32
    return %c0_i32, %c0_i32_0 : i32, i32
  }
  func.func @transform_3(%arg0: i32) -> (i32, i32) {
    %c0_i32 = arith.constant 0 : i32
    %c0_i32_0 = arith.constant 0 : i32
    return %c0_i32, %arg0 : i32, i32
  }
}

module attributes {stable_mosaic.version = 11 : i64} {
  func.func @_matmul_kernel(%arg0: i32, %arg1: memref<12x36xbf16, #tpu.memory_space<vmem>>, %arg2: memref<36x512xbf16, #tpu.memory_space<vmem>>, %arg3: memref<12x1xf32, #tpu.memory_space<vmem>>, %arg4: memref<12x512xf32, #tpu.memory_space<vmem>>, %arg5: memref<1x12x1xf32, #tpu.memory_space<vmem>>, %arg6: memref<1x12x1xf32, #tpu.memory_space<vmem>>) attributes {dimension_semantics = [#tpu.dimension_semantics<parallel>], iteration_bounds = array<i64: 4>, scalar_prefetch = 0 : i64, scratch_operands = 0 : i64, tpu.core_type = #tpu.core_type<tc>, window_params = [{pipeline_mode = #tpu.pipeline_mode<synchronous>, transform_indices = @transform_0, window_bounds = array<i64: 12, 36>}, {transform_indices = @transform_1, window_bounds = array<i64: 36, 512>}, {pipeline_mode = #tpu.pipeline_mode<synchronous>, transform_indices = @transform_2, window_bounds = array<i64: 12, 1>}, {transform_indices = @transform_3, window_bounds = array<i64: 12, 512>}, {transform_indices = @transform_4, window_bounds = array<i64: 1, 12, 1>}, {transform_indices = @transform_5, window_bounds = array<i64: 1, 12, 1>}]} {
    %c0 = arith.constant 0 : index
    %c0_0 = arith.constant 0 : index
    %0 = vector.load %arg2[%c0, %c0_0] : memref<36x512xbf16, #tpu.memory_space<vmem>>, vector<36x512xbf16>
    %c0_1 = arith.constant 0 : index
    %c0_2 = arith.constant 0 : index
    %1 = vector.load %arg1[%c0_1, %c0_2] : memref<12x36xbf16, #tpu.memory_space<vmem>>, vector<12x36xbf16>
    %cst = arith.constant dense<0.000000e+00> : vector<12x512xf32>
    %2 = tpu.matmul %1, %0, %cst {dimension_numbers = #tpu.dot_dimension_numbers<[1], [0], [0], [1], [0, 0, 1, 1], [], []>} : vector<12x36xbf16>, vector<36x512xbf16>, vector<12x512xf32> -> vector<12x512xf32>
    %c0_3 = arith.constant 0 : index
    %c0_4 = arith.constant 0 : index
    %3 = vector.load %arg3[%c0_3, %c0_4] : memref<12x1xf32, #tpu.memory_space<vmem>>, vector<12x1xf32>
    %4 = vector.broadcast %3 : vector<12x1xf32> to vector<12x512xf32>
    %5 = arith.addf %2, %4 : vector<12x512xf32>
    %c0_5 = arith.constant 0 : index
    %c0_6 = arith.constant 0 : index
    %6 = vector.load %arg4[%c0_5, %c0_6] : memref<12x512xf32, #tpu.memory_space<vmem>>, vector<12x512xf32>
    tpu.vector_store %arg4[%c0_5, %c0_6], %5 {strides = array<i32>} : memref<12x512xf32, #tpu.memory_space<vmem>>, vector<12x512xf32>,
    %7 = tpu.iota {dimensions = array<i32: 1>} : vector<12x512xi32>
    %c512_i32 = arith.constant 512 : i32
    %8 = arith.muli %arg0, %c512_i32 : i32
    %9 = vector.broadcast %8 : i32 to vector<12x512xi32>
    %10 = arith.addi %7, %9 : vector<12x512xi32>
    %c2048_i32 = arith.constant 2048 : i32
    %11 = vector.broadcast %c2048_i32 : i32 to vector<12x512xi32>
    %12 = arith.cmpi slt, %10, %11 : vector<12x512xi32>
    %cst_7 = arith.constant 0.000000e+00 : f32
    %13 = vector.broadcast %cst_7 : f32 to vector<12x512xf32>
    %14 = arith.select %12, %5, %13 : vector<12x512xi1>, vector<12x512xf32>
    %cst_8 = arith.constant dense<0.000000e+00> : vector<12xf32>
    %15 = vector.multi_reduction <add>, %14, %cst_8 [1] : vector<12x512xf32> to vector<12xf32>
    %16 = vector.shape_cast %15 : vector<12xf32> to vector<12x1xf32>
    %17 = vector.shape_cast %16 : vector<12x1xf32> to vector<1x12x1xf32>
    %c0_9 = arith.constant 0 : index
    %c0_10 = arith.constant 0 : index
    %c0_11 = arith.constant 0 : index
    %18 = vector.load %arg5[%c0_9, %c0_10, %c0_11] : memref<1x12x1xf32, #tpu.memory_space<vmem>>, vector<1x12x1xf32>
    tpu.vector_store %arg5[%c0_9, %c0_10, %c0_11], %17 {strides = array<i32>} : memref<1x12x1xf32, #tpu.memory_space<vmem>>, vector<1x12x1xf32>,
    %19 = arith.mulf %14, %14 : vector<12x512xf32>
    %cst_12 = arith.constant dense<0.000000e+00> : vector<12xf32>
    %20 = vector.multi_reduction <add>, %19, %cst_12 [1] : vector<12x512xf32> to vector<12xf32>
    %21 = vector.shape_cast %20 : vector<12xf32> to vector<12x1xf32>
    %22 = vector.shape_cast %21 : vector<12x1xf32> to vector<1x12x1xf32>
    %c0_13 = arith.constant 0 : index
    %c0_14 = arith.constant 0 : index
    %c0_15 = arith.constant 0 : index
    %23 = vector.load %arg6[%c0_13, %c0_14, %c0_15] : memref<1x12x1xf32, #tpu.memory_space<vmem>>, vector<1x12x1xf32>
    tpu.vector_store %arg6[%c0_13, %c0_14, %c0_15], %22 {strides = array<i32>} : memref<1x12x1xf32, #tpu.memory_space<vmem>>, vector<1x12x1xf32>,
    return
  }
  func.func @transform_0(%arg0: i32) -> (i32, i32) {
    %c0_i32 = arith.constant 0 : i32
    %c0_i32_0 = arith.constant 0 : i32
    %c0_i32_1 = arith.constant 0 : i32
    return %c0_i32, %c0_i32_0 : i32, i32
  }
  func.func @transform_1(%arg0: i32) -> (i32, i32) {
    %c0_i32 = arith.constant 0 : i32
    %c0_i32_0 = arith.constant 0 : i32
    return %c0_i32, %arg0 : i32, i32
  }
  func.func @transform_2(%arg0: i32) -> (i32, i32) {
    %c0_i32 = arith.constant 0 : i32
    %c0_i32_0 = arith.constant 0 : i32
    %c0_i32_1 = arith.constant 0 : i32
    return %c0_i32, %c0_i32_0 : i32, i32
  }
  func.func @transform_3(%arg0: i32) -> (i32, i32) {
    %c0_i32 = arith.constant 0 : i32
    %c0_i32_0 = arith.constant 0 : i32
    return %c0_i32, %arg0 : i32, i32
  }
  func.func @transform_4(%arg0: i32) -> (i32, i32, i32) {
    %c0_i32 = arith.constant 0 : i32
    %c0_i32_0 = arith.constant 0 : i32
    %c0_i32_1 = arith.constant 0 : i32
    return %arg0, %c0_i32, %c0_i32_0 : i32, i32, i32
  }
  func.func @transform_5(%arg0: i32) -> (i32, i32, i32) {
    %c0_i32 = arith.constant 0 : i32
    %c0_i32_0 = arith.constant 0 : i32
    %c0_i32_1 = arith.constant 0 : i32
    return %arg0, %c0_i32, %c0_i32_0 : i32, i32, i32
  }
}

module attributes {stable_mosaic.version = 11 : i64} {
  func.func @_bn_apply_kernel(%arg0: i32, %arg1: memref<12x512xf32, #tpu.memory_space<vmem>>, %arg2: memref<12x1xf32, #tpu.memory_space<vmem>>, %arg3: memref<12x1xf32, #tpu.memory_space<vmem>>, %arg4: memref<12x512xf32, #tpu.memory_space<vmem>>) attributes {dimension_semantics = [#tpu.dimension_semantics<parallel>], iteration_bounds = array<i64: 4>, scalar_prefetch = 0 : i64, scratch_operands = 0 : i64, tpu.core_type = #tpu.core_type<tc>, window_params = [{transform_indices = @transform_0, window_bounds = array<i64: 12, 512>}, {pipeline_mode = #tpu.pipeline_mode<synchronous>, transform_indices = @transform_1, window_bounds = array<i64: 12, 1>}, {pipeline_mode = #tpu.pipeline_mode<synchronous>, transform_indices = @transform_2, window_bounds = array<i64: 12, 1>}, {transform_indices = @transform_3, window_bounds = array<i64: 12, 512>}]} {
    %c0 = arith.constant 0 : index
    %c0_0 = arith.constant 0 : index
    %0 = vector.load %arg1[%c0, %c0_0] : memref<12x512xf32, #tpu.memory_space<vmem>>, vector<12x512xf32>
    %c0_1 = arith.constant 0 : index
    %c0_2 = arith.constant 0 : index
    %1 = vector.load %arg2[%c0_1, %c0_2] : memref<12x1xf32, #tpu.memory_space<vmem>>, vector<12x1xf32>
    %2 = vector.broadcast %1 : vector<12x1xf32> to vector<12x512xf32>
    %3 = arith.mulf %0, %2 : vector<12x512xf32>
    %c0_3 = arith.constant 0 : index
    %c0_4 = arith.constant 0 : index
    %4 = vector.load %arg3[%c0_3, %c0_4] : memref<12x1xf32, #tpu.memory_space<vmem>>, vector<12x1xf32>
    %5 = vector.broadcast %4 : vector<12x1xf32> to vector<12x512xf32>
    %6 = arith.addf %3, %5 : vector<12x512xf32>
    %cst = arith.constant 0.000000e+00 : f32
    %7 = vector.broadcast %cst : f32 to vector<12x512xf32>
    %8 = arith.maximumf %6, %7 : vector<12x512xf32>
    %c0_5 = arith.constant 0 : index
    %c0_6 = arith.constant 0 : index
    %9 = vector.load %arg4[%c0_5, %c0_6] : memref<12x512xf32, #tpu.memory_space<vmem>>, vector<12x512xf32>
    tpu.vector_store %arg4[%c0_5, %c0_6], %8 {strides = array<i32>} : memref<12x512xf32, #tpu.memory_space<vmem>>, vector<12x512xf32>,
    return
  }
  func.func @transform_0(%arg0: i32) -> (i32, i32) {
    %c0_i32 = arith.constant 0 : i32
    %c0_i32_0 = arith.constant 0 : i32
    return %c0_i32, %arg0 : i32, i32
  }
  func.func @transform_1(%arg0: i32) -> (i32, i32) {
    %c0_i32 = arith.constant 0 : i32
    %c0_i32_0 = arith.constant 0 : i32
    %c0_i32_1 = arith.constant 0 : i32
    return %c0_i32, %c0_i32_0 : i32, i32
  }
  func.func @transform_2(%arg0: i32) -> (i32, i32) {
    %c0_i32 = arith.constant 0 : i32
    %c0_i32_0 = arith.constant 0 : i32
    %c0_i32_1 = arith.constant 0 : i32
    return %c0_i32, %c0_i32_0 : i32, i32
  }
  func.func @transform_3(%arg0: i32) -> (i32, i32) {
    %c0_i32 = arith.constant 0 : i32
    %c0_i32_0 = arith.constant 0 : i32
    return %c0_i32, %arg0 : i32, i32
  }
}

</mosaic_0001>

<llo_original>
// kernel: tile.29
$region0: #{tile.29}
  #allocation2 [shape = 's32[1]{0}', space=sflag, size = 0x4, scoped, tag = 'scoped memory for tile.29']
  %s0 = inlined_call_operand.hbm [shape: f32[4], index: 0, kind: input, shape index: {}]
  %s1 = inlined_call_operand.vmem [shape: f32[4,4], index: 1, kind: output, shape index: {}]
  $region1: #{tile.29} parent=0
    #allocation0 [shape = 'u8[512]{0}', space=vmem, size = 0x400, scoped, tag = 'operand span for operand 0']
    #allocation1 [shape = 's32[1]{0}', space=sflag, size = 0x4, scoped, tag = 'scoped memory for tile.29']
    %2 = vsyncpa [#allocation1], 0
    // Predicated region
    $region2: #{tile.29} parent=1 // pred_check
      _
    $region3: #{tile.29} parent=1 // pred_check_branch
      %4 = sbr.rel (0) target = $region5
    $region4: #{tile.29} parent=1 // pred_region
      %s6 = ssub.s32 16, 16
      %7 = vsyncadd [#allocation1], %s6
      %s9 = sshll.u32 [#allocation0], 4
      %s10 = int_to_ptr.vmem [resolvable:$true] %s9
      %12 = dma.hbm_to_vmem [thread:$0]  %s0, 16, %s10, [#allocation1]
    $region5: #{tile.29} parent=1 // pred_fallthru
      _
    // Predicated region
    $region6: #{tile.29} parent=1 // pred_check
      _
    $region7: #{tile.29} parent=1 // pred_check_branch
      %14 = sbr.rel (0) target = $region9
    $region8: #{tile.29} parent=1 // pred_region
      %15 = dma.done [#allocation1], 16
    $region9: #{tile.29} parent=1 // pred_fallthru
      _
    %v16 = vld [vmem:[#allocation0] ss:$0 sm:$0xff]
    %17 = vst [vmem:[%s1] sm:$0xf] %v16
    %18 = vsyncpa [#allocation1], 1

// kernel: tile.42
$region0: #{tile.42}
  #allocation2 [shape = 's32[1]{0}', space=sflag, size = 0x4, scoped, tag = 'scoped memory for tile.42']
  %s0 = inlined_call_operand.hbm [shape: f32[3], index: 0, kind: input, shape index: {}]
  %s1 = inlined_call_operand.vmem [shape: f32[4,3], index: 1, kind: output, shape index: {}]
  $region1: #{tile.42} parent=0
    #allocation0 [shape = 'u8[512]{0}', space=vmem, size = 0x400, scoped, tag = 'operand span for operand 0']
    #allocation1 [shape = 's32[1]{0}', space=sflag, size = 0x4, scoped, tag = 'scoped memory for tile.42']
    %2 = vsyncpa [#allocation1], 0
    // Predicated region
    $region2: #{tile.42} parent=1 // pred_check
      _
    $region3: #{tile.42} parent=1 // pred_check_branch
      %4 = sbr.rel (0) target = $region5
    $region4: #{tile.42} parent=1 // pred_region
      %s6 = ssub.s32 16, 16
      %7 = vsyncadd [#allocation1], %s6
      %s9 = sshll.u32 [#allocation0], 4
      %s10 = int_to_ptr.vmem [resolvable:$true] %s9
      %12 = dma.hbm_to_vmem [thread:$0]  %s0, 16, %s10, [#allocation1]
    $region5: #{tile.42} parent=1 // pred_fallthru
      _
    // Predicated region
    $region6: #{tile.42} parent=1 // pred_check
      _
    $region7: #{tile.42} parent=1 // pred_check_branch
      %14 = sbr.rel (0) target = $region9
    $region8: #{tile.42} parent=1 // pred_region
      %15 = dma.done [#allocation1], 16
    $region9: #{tile.42} parent=1 // pred_fallthru
      _
    %v16 = vld [vmem:[#allocation0] ss:$0 sm:$0xff]
    %17 = vst [vmem:[%s1] sm:$0xf] %v16
    %18 = vsyncpa [#allocation1], 1

// kernel: tile.1
$region0: #{tile.1}
  %s0 = inlined_call_operand.vmem [shape: f32[4,3], index: 0, kind: input, shape index: {}]
  %s1 = inlined_call_operand.vmem [shape: f32[12,1], index: 1, kind: output, shape index: {}]
  $region1: #{tile.1} parent=0
    #allocation0 [shape = 'u8[4096]{0}', space=vmem, size = 0x1000, scoped, tag = 'scoped mem for input reshape']
    %s3 = sshllo.u32 0, 4
    %v4 = vld [vmem:[%s0] sm:%s3]
    %5 = vst [vmem:[#allocation0] sm:%s3] %v4
    %v6 = vld [vmem:[#allocation0] sm:$0xf]
    %vm7 = vcmask 7168
    %8 = vst.msk [vmem:[%s1] ss:$3 sm:$0xf] %vm7, %v6
    %v9 = vld [vmem:[#allocation0] sm:$0xf]
    %10 = vrot.lane.b32.xlu0 %v9, 127
    %v11 = vpop.permute.xlu0 %10
    %vm12 = vcmask 7168
    %s13 = scalar_lea.vmem %s1, 1
    %14 = vst.msk [vmem:[%s13] ss:$3 sm:$0xf] %vm12, %v11
    %v15 = vld [vmem:[#allocation0] sm:$0xf]
    %16 = vrot.lane.b32.xlu0 %v15, 126
    %v17 = vpop.permute.xlu0 %16
    %vm18 = vcmask 7168
    %s19 = scalar_lea.vmem %s1, 2
    %20 = vst.msk [vmem:[%s19] ss:$3 sm:$0xf] %vm18, %v17

// kernel: tile.0
$region0: #{tile.0}
  %s0 = inlined_call_operand.vmem [shape: f32[4,4], index: 0, kind: input, shape index: {}]
  %s1 = inlined_call_operand.vmem [shape: f32[16,1], index: 1, kind: output, shape index: {}]
  $region1: #{tile.0} parent=0
    #allocation0 [shape = 'u8[4096]{0}', space=vmem, size = 0x1000, scoped, tag = 'scoped mem for input reshape']
    %s3 = sshllo.u32 0, 4
    %v4 = vld [vmem:[%s0] sm:%s3]
    %5 = vst [vmem:[#allocation0] sm:%s3] %v4
    %v6 = vld [vmem:[#allocation0] sm:$0xf]
    %vm7 = vcmask 7168
    %8 = vst.msk [vmem:[%s1] ss:$4 sm:$0xf] %vm7, %v6
    %v9 = vld [vmem:[#allocation0] sm:$0xf]
    %10 = vrot.lane.b32.xlu0 %v9, 127
    %v11 = vpop.permute.xlu0 %10
    %vm12 = vcmask 7168
    %s13 = scalar_lea.vmem %s1, 1
    %14 = vst.msk [vmem:[%s13] ss:$4 sm:$0xf] %vm12, %v11
    %v15 = vld [vmem:[#allocation0] sm:$0xf]
    %16 = vrot.lane.b32.xlu0 %v15, 126
    %v17 = vpop.permute.xlu0 %16
    %vm18 = vcmask 7168
    %s19 = scalar_lea.vmem %s1, 2
    %20 = vst.msk [vmem:[%s19] ss:$4 sm:$0xf] %vm18, %v17
    %v21 = vld [vmem:[#allocation0] sm:$0xf]
    %22 = vrot.lane.b32.xlu0 %v21, 125
    %v23 = vpop.permute.xlu0 %22
    %vm24 = vcmask 7168
    %s25 = scalar_lea.vmem %s1, 3
    %26 = vst.msk [vmem:[%s25] ss:$4 sm:$0xf] %vm24, %v23

// kernel: decoder_forward.11
$region0: #{decoder_forward.11}
  #allocation0 [shape = 'u32[]', space=smem, size = 0x4, offset = 0x4, fixed_abs, tag = 'smem constant byte address 0x4 - core index']
  #allocation1 [shape = 'u32[144,128]{1,0:T(1,128)}', space=vmem, size = 0x12000, scoped, tag = 'internal scratch']
  %s0 = inlined_call_operand.hbm [shape: bf16[8,36], index: 0, kind: input, shape index: {}]
  %s1 = inlined_call_operand.vmem [shape: bf16[36,512], index: 1, kind: input, shape index: {}]
  %s2 = inlined_call_operand.vmem [shape: f32[8,1], index: 2, kind: input, shape index: {}]
  %s3 = inlined_call_operand.vmem [shape: f32[8,512], index: 3, kind: output, shape index: {}]
  %s4 = sld [smem:[#allocation0]]
  $region87: #{decoder_forward.11} parent=0
    _
  %s6 = ssub.s32 1, %s4
  %s7 = scalar_select 0, %s6, %s4
  $region1: #{decoder_forward.11} parent=0
    #allocation2 [shape = 'u8[2048]{0}', space=vmem, size = 0x800, scoped, tag = 'input window, operand 0, single buffered']
    #allocation3 [shape = 's32[2]{0}', space=sflag, size = 0x8, scoped, tag = 'scoped memory for decoder_forward.11']
    #allocation4 [shape = 'u8[40960]{0}', space=vmem, size = 0xa000, scoped, tag = 'input window, operand 1']
    %8 = vsyncpa [#allocation3], 0
    loop: start=0, step=1, limit=4
    $region2: #{decoder_forward.11} parent=1 // loop_pre_header
      _
    $region3: #{decoder_forward.11} parent=1 // loop_header
      %s10 = sphi 0, %s14
      %p11 = scmp.ge.s32.totalorder %s10, 4
      %s18 = sphi 0, %s18
      %s20 = sphi 0, %s18
      %s21 = sphi 0, %s20
      %s35 = sphi 0, %s21
      %s41 = sphi 0, %s43
      %s44 = sphi 0, %s41
      %s45 = sphi 0, %s44
      %s61 = sphi 0, %s45
      %s65 = sphi 0, %s65
      %s67 = sphi 0, %s65
      %s68 = sphi 0, %s67
      %s82 = sphi 0, %s68
      %s88 = sphi 0, %s90
      %s91 = sphi 0, %s88
      %s92 = sphi 0, %s91
      %s108 = sphi 0, %s92
    $region4: #{decoder_forward.11} parent=1 // loop_header_branch
      %13 = sbr.rel (%p11) target = $region8
    $region5: #{decoder_forward.11} parent=1 // loop_body
      %s15 = ssub.s32 %s10, 1
      %s16 = ssub.s32 %s10, 2
      %s17 = sadd.s32 %s10, 1
      %s19 = sadd.s32 %s18, 1
      %p22 = scmp.eq.s32.totalorder %s10, 1
      %p23 = scmp.ne.s32.totalorder %s18, %s20
      %p24 = scmp.eq.s32.totalorder %s10, 0
      %p25 = por %p23, %p24
      %p26 = scmp.ne.s32.totalorder %s18, %s20
      %p27 = scmp.eq.s32.totalorder %s15, 1
      %p28 = por %p26, %p27
      %p29 = scmp.ne.s32.totalorder %s20, %s21
      %p30 = scmp.eq.s32.totalorder %s15, 0
      %p31 = por %p29, %p30
      %p32 = scmp.ne.s32.totalorder %s20, %s21
      %p33 = scmp.eq.s32.totalorder %s16, 1
      %p34 = por %p32, %p33
      %p36 = scmp.ne.s32.totalorder %s21, %s35
      %p37 = scmp.eq.s32.totalorder %s16, 0
      %p38 = por %p36, %p37
      %s39 = ssub.s32 %s10, %s17
      %p40 = scmp.eq.s32.totalorder %s39, 0
      %s42 = sadd.s32 %s41, 1
      %s43 = scalar_select %p40, %s41, %s42
      %p46 = pneg %p40
      %p47 = scmp.eq.s32.totalorder %s10, 1
      %p48 = por %p46, %p47
      %p49 = scmp.ne.s32.totalorder %s41, %s44
      %p50 = scmp.eq.s32.totalorder %s10, 0
      %p51 = por %p49, %p50
      %p52 = scmp.ne.s32.totalorder %s41, %s44
      %p53 = scmp.eq.s32.totalorder %s15, 1
      %p54 = por %p52, %p53
      %p55 = scmp.ne.s32.totalorder %s44, %s45
      %p56 = scmp.eq.s32.totalorder %s15, 0
      %p57 = por %p55, %p56
      %p58 = scmp.ne.s32.totalorder %s44, %s45
      %p59 = scmp.eq.s32.totalorder %s16, 1
      %p60 = por %p58, %p59
      %p62 = scmp.ne.s32.totalorder %s45, %s61
      %p63 = scmp.eq.s32.totalorder %s16, 0
      %p64 = por %p62, %p63
      %s66 = sadd.s32 %s65, 1
      %p69 = scmp.eq.s32.totalorder %s10, 1
      %p70 = scmp.ne.s32.totalorder %s65, %s67
      %p71 = scmp.eq.s32.totalorder %s10, 0
      %p72 = por %p70, %p71
      %p73 = scmp.ne.s32.totalorder %s65, %s67
      %p74 = scmp.eq.s32.totalorder %s15, 1
      %p75 = por %p73, %p74
      %p76 = scmp.ne.s32.totalorder %s67, %s68
      %p77 = scmp.eq.s32.totalorder %s15, 0
      %p78 = por %p76, %p77
      %p79 = scmp.ne.s32.totalorder %s67, %s68
      %p80 = scmp.eq.s32.totalorder %s16, 1
      %p81 = por %p79, %p80
      %p83 = scmp.ne.s32.totalorder %s68, %s82
      %p84 = scmp.eq.s32.totalorder %s16, 0
      %p85 = por %p83, %p84
      %s86 = ssub.s32 %s10, %s17
      %p87 = scmp.eq.s32.totalorder %s86, 0
      %s89 = sadd.s32 %s88, 1
      %s90 = scalar_select %p87, %s88, %s89
      %p93 = pneg %p87
      %p94 = scmp.eq.s32.totalorder %s10, 1
      %p95 = por %p93, %p94
      %p96 = scmp.ne.s32.totalorder %s88, %s91
      %p97 = scmp.eq.s32.totalorder %s10, 0
      %p98 = por %p96, %p97
      %p99 = scmp.ne.s32.totalorder %s88, %s91
      %p100 = scmp.eq.s32.totalorder %s15, 1
      %p101 = por %p99, %p100
      %p102 = scmp.ne.s32.totalorder %s91, %s92
      %p103 = scmp.eq.s32.totalorder %s15, 0
      %p104 = por %p102, %p103
      %p105 = scmp.ne.s32.totalorder %s91, %s92
      %p106 = scmp.eq.s32.totalorder %s16, 1
      %p107 = por %p105, %p106
      %p109 = scmp.ne.s32.totalorder %s92, %s108
      %p110 = scmp.eq.s32.totalorder %s16, 0
      %p111 = por %p109, %p110
      %p112 = scmp.le.s32.totalorder 1, %s10
      %p113 = scmp.lt.s32.totalorder %s10, 3
      %p114 = pnand %p112, %p113
      %p115 = pneg %p114
      // Predicated region
      $region9: #{decoder_forward.11} parent=5 // pred_check
        _
      $region10: #{decoder_forward.11} parent=5 // pred_check_branch
        %117 = sbr.rel (%p114) target = $region12
      $region11: #{decoder_forward.11} parent=5 // pred_region
        %s118 = ssub.s32 %s10, 1
        // Predicated region
        $region13: #{decoder_forward.11} parent=11 // pred_check
          %p119 = pneg %p31
        $region14: #{decoder_forward.11} parent=11 // pred_check_branch
          %121 = sbr.rel (%p119) target = $region16
        $region15: #{decoder_forward.11} parent=11 // pred_region
          %s123 = ssub.s32 64, 64
          %124 = vsyncadd [#allocation3], %s123
          %s126 = sshll.u32 [#allocation2], 4
          %s127 = int_to_ptr.vmem [resolvable:$true] %s126
          %129 = dma.hbm_to_vmem [thread:$0]  %s0, 64, %s127, [#allocation3]
        $region16: #{decoder_forward.11} parent=11 // pred_fallthru
          _
        // Predicated region
        $region17: #{decoder_forward.11} parent=11 // pred_check
          %p130 = pneg %p78
        $region18: #{decoder_forward.11} parent=11 // pred_check_branch
          %132 = sbr.rel (%p130) target = $region20
        $region19: #{decoder_forward.11} parent=11 // pred_region
          _
        $region20: #{decoder_forward.11} parent=11 // pred_fallthru
          _
      $region12: #{decoder_forward.11} parent=5 // pred_fallthru
        _
      %p133 = scmp.lt.s32.totalorder %s10, 2
      // Predicated region
      $region21: #{decoder_forward.11} parent=5 // pred_check
        %p134 = pneg %p133
      $region22: #{decoder_forward.11} parent=5 // pred_check_branch
        %136 = sbr.rel (%p134) target = $region24
      $region23: #{decoder_forward.11} parent=5 // pred_region
        // Predicated region
        $region25: #{decoder_forward.11} parent=23 // pred_check
          %p137 = pneg %p51
        $region26: #{decoder_forward.11} parent=23 // pred_check_branch
          %139 = sbr.rel (%p137) target = $region28
        $region27: #{decoder_forward.11} parent=23 // pred_region
          %s140 = sand.u32 %s41, 1
          %s141 = sand.u32 %s41, 1
          %s142 = smul.addr %s141, 40
          %s143 = scalar_lea.vmem [#allocation4], %s142
          %s144 = smul.u32 2, %s10
          %s145 = smul.addr %s144, 4
          %s146 = scalar_lea.vmem %s1, %s145
          // Predicated region
          $region29: #{decoder_forward.11} parent=27 // pred_check
            _
          $region30: #{decoder_forward.11} parent=27 // pred_check_branch
            %148 = sbr.rel (0) target = $region32
          $region31: #{decoder_forward.11} parent=27 // pred_region
            // Predicated region
            $region33: #{decoder_forward.11} parent=31 // pred_check
              _
            $region34: #{decoder_forward.11} parent=31 // pred_check_branch
              %150 = sbr.rel (0) target = $region36
            $region35: #{decoder_forward.11} parent=31 // pred_region
              // Predicated region
              $region48: #{decoder_forward.11} parent=35 // pred_check
                _
              $region49: #{decoder_forward.11} parent=35 // pred_check_branch
                %173 = sbr.rel (0) target = $region51
              $region50: #{decoder_forward.11} parent=35 // pred_region
                loop: start=0, step=1, limit=1
                $region52: #{decoder_forward.11} parent=50 // loop_pre_header
                  _
                $region53: #{decoder_forward.11} parent=50 // loop_header
                  %s175 = sphi 0, %s179
                  %p176 = scmp.ge.s32.totalorder %s175, 1
                  %s180 = sphi %s146, %s146
                  %s181 = sphi %s143, %s143
                $region54: #{decoder_forward.11} parent=50 // loop_header_branch
                  %178 = sbr.rel (%p176) target = $region58
                $region55: #{decoder_forward.11} parent=50 // loop_body
                  %v182 = vld [vmem:[%s180] sm:$0xff]
                  %183 = vst [vmem:[%s181] sm:$0xff] %v182
                  %v184 = vld [vmem:[%s180 + $0x10] sm:$0xff]
                  %185 = vst [vmem:[%s181 + $0x8] sm:$0xff] %v184
                  %v186 = vld [vmem:[%s180 + $0x20] sm:$0xff]
                  %187 = vst [vmem:[%s181 + $0x10] sm:$0xff] %v186
                  %v188 = vld [vmem:[%s180 + $0x30] sm:$0xff]
                  %189 = vst [vmem:[%s181 + $0x18] sm:$0xff] %v188
                  %v190 = vld [vmem:[%s180 + $0x40] sm:$0xff]
                  %191 = vst [vmem:[%s181 + $0x20] sm:$0xff] %v190
                $region56: #{decoder_forward.11} parent=50 // loop_footer
                  %s179 = sadd.s32 1, %s175
                $region57: #{decoder_forward.11} parent=50 // loop_footer_branch
                  %174 = sbr.rel target = $region53
                $region58: #{decoder_forward.11} parent=50 // loop_exit
                  _
              $region51: #{decoder_forward.11} parent=35 // pred_fallthru
                _
              // Predicated region
              $region59: #{decoder_forward.11} parent=35 // pred_check
                _
              $region60: #{decoder_forward.11} parent=35 // pred_check_branch
                %193 = sbr.rel target = $region62
              $region61: #{decoder_forward.11} parent=35 // pred_region
                _
              $region62: #{decoder_forward.11} parent=35 // pred_fallthru
                _
            $region36: #{decoder_forward.11} parent=31 // pred_fallthru
              _
            // Predicated region
            $region37: #{decoder_forward.11} parent=31 // pred_check
              _
            $region38: #{decoder_forward.11} parent=31 // pred_check_branch
              %152 = sbr.rel target = $region40
            $region39: #{decoder_forward.11} parent=31 // pred_region
              loop: start=0, step=1, limit=1
              $region41: #{decoder_forward.11} parent=39 // loop_pre_header
                _
              $region42: #{decoder_forward.11} parent=39 // loop_header
                %s155 = sphi 0, %s159
                %p156 = scmp.ge.s32.totalorder %s155, 1
                %s160 = sphi %s146, %s146
                %s161 = sphi %s143, %s143
              $region43: #{decoder_forward.11} parent=39 // loop_header_branch
                %158 = sbr.rel (%p156) target = $region47
              $region44: #{decoder_forward.11} parent=39 // loop_body
                %v162 = vld [vmem:[%s160] sm:$0xff]
                %163 = vst [vmem:[%s161] sm:$0xff] %v162
                %v164 = vld [vmem:[%s160 + $0x10] sm:$0xff]
                %165 = vst [vmem:[%s161 + $0x8] sm:$0xff] %v164
                %v166 = vld [vmem:[%s160 + $0x20] sm:$0xff]
                %167 = vst [vmem:[%s161 + $0x10] sm:$0xff] %v166
                %v168 = vld [vmem:[%s160 + $0x30] sm:$0xff]
                %169 = vst [vmem:[%s161 + $0x18] sm:$0xff] %v168
                %v170 = vld [vmem:[%s160 + $0x40] sm:$0xff]
                %171 = vst [vmem:[%s161 + $0x20] sm:$0xff] %v170
              $region45: #{decoder_forward.11} parent=39 // loop_footer
                %s159 = sadd.s32 1, %s155
              $region46: #{decoder_forward.11} parent=39 // loop_footer_branch
                %154 = sbr.rel target = $region42
              $region47: #{decoder_forward.11} parent=39 // loop_exit
                _
            $region40: #{decoder_forward.11} parent=31 // pred_fallthru
              _
          $region32: #{decoder_forward.11} parent=27 // pred_fallthru
            _
          %194 = vnop
        $region28: #{decoder_forward.11} parent=23 // pred_fallthru
          _
      $region24: #{decoder_forward.11} parent=5 // pred_fallthru
        _
      %p195 = scmp.le.s32.totalorder 1, %s10
      %p196 = scmp.lt.s32.totalorder %s10, 3
      %p197 = pnand %p195, %p196
      %p198 = pneg %p197
      // Predicated region
      $region63: #{decoder_forward.11} parent=5 // pred_check
        _
      $region64: #{decoder_forward.11} parent=5 // pred_check_branch
        %200 = sbr.rel (%p197) target = $region66
      $region65: #{decoder_forward.11} parent=5 // pred_region
        %s201 = ssub.s32 %s10, 1
        // Predicated region
        $region67: #{decoder_forward.11} parent=65 // pred_check
          %p202 = pneg %p31
        $region68: #{decoder_forward.11} parent=65 // pred_check_branch
          %204 = sbr.rel (%p202) target = $region70
        $region69: #{decoder_forward.11} parent=65 // pred_region
          %205 = dma.done [#allocation3], 64
        $region70: #{decoder_forward.11} parent=65 // pred_fallthru
          _
        %s206 = sand.u32 %s44, 1
        %s207 = sand.u32 %s44, 1
        %s208 = smul.addr %s207, 40
        %s209 = scalar_lea.vmem [#allocation4], %s208
        // Predicated region
        $region71: #{decoder_forward.11} parent=65 // pred_check
          %p210 = pneg %p57
        $region72: #{decoder_forward.11} parent=65 // pred_check_branch
          %212 = sbr.rel (%p210) target = $region74
        $region73: #{decoder_forward.11} parent=65 // pred_region
          _
        $region74: #{decoder_forward.11} parent=65 // pred_fallthru
          _
        %p213 = pneg %p31
        %p214 = pneg %p28
        %s215 = sand.u32 %s44, 1
        %s216 = sand.u32 %s44, 1
        %s217 = smul.addr %s216, 40
        %s218 = scalar_lea.vmem [#allocation4], %s217
        %p219 = pneg %p57
        %p220 = pneg %p54
        %p221 = pneg %p78
        %p222 = pneg %p75
        %p223 = pneg %p104
        %p224 = pneg %p101
        %s225 = smul.u32 2, %s15
        %p226 = scmp.lt.s32.totalorder %s225, 3
        %s227 = scalar_select %p226, %s225, 3
        %s228 = smul.addr %s227, 8
        %s229 = scalar_lea.vmem %s3, %s228
        %s230 = smul.u32 2, %s15
        %s231 = smul.u32 2, %s15
        %p232 = scmp.lt.s32.totalorder %s231, 3
        %s233 = scalar_select %p232, %s231, 3
        %s234 = smul.addr %s233, 8
        %s235 = scalar_lea.vmem %s3, %s234
        %s236 = smul.u32 2, %s15
        %v238 = vld [vmem:[%s209] sm:$0xff]
        %v239 = vld [vmem:[%s209 + $0x8] sm:$0xff]
        %v240 = vld [vmem:[%s209 + $0x10] sm:$0xff]
        %v241 = vld [vmem:[%s209 + $0x18] sm:$0xff]
        %v242 = vld [vmem:[%s209 + $0x20] sm:$0x33]
        %v243 = vld [vmem:[#allocation2] sm:$0xf]
        %v244 = vld [vmem:[%s2] sm:$0xff]
        %246 = vset.pattern.permute.xlu0 0
        %247 = vperm.xlu0 %246, %v244
        %v248 = vpop.permute.xlu0 %247
        %v255 = vunpack.c.l.b16 %v238
        %v256 = vunpack.c.h.b16 %v238
        %v257 = vunpack.c.l.b16 %v239
        %v258 = vunpack.c.h.b16 %v239
        %v259 = vunpack.c.l.b16 %v240
        %v260 = vunpack.c.h.b16 %v240
        %v261 = vunpack.c.l.b16 %v241
        %v262 = vunpack.c.h.b16 %v241
        %v263 = vunpack.c.l.b16 %v242
        %v264 = vunpack.c.h.b16 %v242
        %v265 = vpack.c.b16 %v257, %v255
        %v266 = vpack.c.b16 %v258, %v256
        %v267 = vpack.c.b16 %v261, %v259
        %v268 = vpack.c.b16 %v262, %v260
        %v269 = vpack.c.b16 %v263, %v263
        %v270 = vpack.c.b16 %v264, %v264
        %vm275 = vcmask 293888
        %v277 = vsel %vm275, %v243, 0
        %vm279 = vcmask 1041408
        %v281 = vsel %vm279, %v269, 0
        %v284 = vsel %vm279, %v270, 0
        %286 = vmatprep.subr.bf16.mxu0 %v266
        %287 = vmatpush1.bf16.msra.mxu0 %v265
        %288 = vmatprep.subr.bf16.mxu0 %v268
        %289 = vmatpush1.bf16.msra.mxu0 %v267
        %290 = vmatprep.subr.bf16.mxu0 %v284
        %291 = vmatpush1.bf16.msra.mxu0 %v281
        %292 = vmatprep.subr.bf16.mxu0 0
        %293 = vmatpush1.bf16.msra.mxu0 0
        %294 = vmatprep.subr.bf16.mxu0 0
        %295 = vmatpush1.bf16.msra.mxu0 0
        %296 = vmatprep.subr.bf16.mxu0 0
        %297 = vmatpush1.bf16.msra.mxu0 0
        %298 = vmatprep.subr.bf16.mxu0 0
        %299 = vmatpush1.bf16.msra.mxu0 0
        %300 = vmatprep.subr.bf16.mxu0 0
        %301 = vmatpush1.bf16.msra.mxu0 0
        %302 = vmatprep.subr.bf16.mxu0 0
        %303 = vmatpush1.bf16.msra.mxu0 0
        %304 = vmatprep.subr.bf16.mxu0 0
        %305 = vmatpush1.bf16.msra.mxu0 0
        %306 = vmatprep.subr.bf16.mxu0 0
        %307 = vmatpush1.bf16.msra.mxu0 0
        %308 = vmatprep.subr.bf16.mxu0 0
        %309 = vmatpush1.bf16.msra.mxu0 0
        %310 = vmatprep.subr.bf16.mxu0 0
        %311 = vmatpush1.bf16.msra.mxu0 0
        %312 = vmatprep.subr.bf16.mxu0 0
        %313 = vmatpush1.bf16.msra.mxu0 0
        %314 = vmatprep.subr.bf16.mxu0 0
        %315 = vmatpush1.bf16.msra.mxu0 0
        %316 = vmatprep.subr.bf16.mxu0 0
        %317 = vmatpush1.bf16.msra.mxu0 0
        %318 = vmatprep.mubr.bf16.mxu0 0
        %319 = vmatmul.mubr.bf16.gmra.mrb[0].mxu0 %v277
        %v320 = vpop.f32.mrb[0].mxu0
        %v321 = vadd.f32 %v248, %v320
        %v322 = vpop.f32.mrb[0].mxu0
        %v323 = vadd.f32 %v248, %v322
        %v324 = vpop.f32.mrb[0].mxu0
        %v325 = vpop.f32.mrb[0].mxu0
        %326 = vdwg.mxu0
        %327 = vst [vmem:[%s235] sm:$0xff] %v321
        %328 = vst [vmem:[%s235 + $0x8] sm:$0xff] %v323
        %s329 = smul.u32 2, %s15
        %p330 = scmp.lt.s32.totalorder %s329, 3
        %s331 = scalar_select %p330, %s329, 3
        %s332 = smul.addr %s331, 8
        %s333 = scalar_lea.vmem %s3, %s332
        // Predicated region
        $region75: #{decoder_forward.11} parent=65 // pred_check
          %p334 = pneg %p101
        $region76: #{decoder_forward.11} parent=65 // pred_check_branch
          %336 = sbr.rel (%p334) target = $region78
        $region77: #{decoder_forward.11} parent=65 // pred_region
          %s337 = smul.u32 2, %s15
        $region78: #{decoder_forward.11} parent=65 // pred_fallthru
          _
      $region66: #{decoder_forward.11} parent=5 // pred_fallthru
        _
      %p338 = scmp.le.s32.totalorder 2, %s10
      // Predicated region
      $region79: #{decoder_forward.11} parent=5 // pred_check
        %p339 = pneg %p338
      $region80: #{decoder_forward.11} parent=5 // pred_check_branch
        %341 = sbr.rel (%p339) target = $region82
      $region81: #{decoder_forward.11} parent=5 // pred_region
        %s342 = ssub.s32 %s10, 2
        // Predicated region
        $region83: #{decoder_forward.11} parent=81 // pred_check
          %p343 = pneg %p107
        $region84: #{decoder_forward.11} parent=81 // pred_check_branch
          %345 = sbr.rel (%p343) target = $region86
        $region85: #{decoder_forward.11} parent=81 // pred_region
          %s346 = smul.u32 2, %s16
          %p347 = scmp.lt.s32.totalorder %s346, 3
          %s348 = scalar_select %p347, %s346, 3
          %s349 = smul.addr %s348, 8
          %s350 = scalar_lea.vmem %s3, %s349
        $region86: #{decoder_forward.11} parent=81 // pred_fallthru
          _
      $region82: #{decoder_forward.11} parent=5 // pred_fallthru
        _
    $region6: #{decoder_forward.11} parent=1 // loop_footer
      %s14 = sadd.s32 1, %s10
    $region7: #{decoder_forward.11} parent=1 // loop_footer_branch
      %9 = sbr.rel target = $region3
    $region8: #{decoder_forward.11} parent=1 // loop_exit
      _
    %351 = vsyncpa [#allocation3], 1
    %s352 = scalar_lea.sflag [#allocation3], 1
    %353 = vsyncpa %s352, 1

// kernel: decoder_forward.12
$region0: #{decoder_forward.12}
  #allocation0 [shape = 'u32[]', space=smem, size = 0x4, offset = 0x4, fixed_abs, tag = 'smem constant byte address 0x4 - core index']
  #allocation1 [shape = 'u32[144,128]{1,0:T(1,128)}', space=vmem, size = 0x12000, scoped, tag = 'internal scratch']
  %s0 = inlined_call_operand.hbm [shape: bf16[2,72], index: 0, kind: input, shape index: {}]
  %s1 = inlined_call_operand.vmem [shape: bf16[72,512], index: 1, kind: input, shape index: {}]
  %s2 = inlined_call_operand.vmem [shape: f32[2,1], index: 2, kind: input, shape index: {}]
  %s3 = inlined_call_operand.vmem [shape: f32[2,512], index: 3, kind: output, shape index: {0}]
  %s4 = inlined_call_operand.vmem [shape: f32[2,2,1], index: 4, kind: output, shape index: {1}]
  %s5 = inlined_call_operand.vmem [shape: f32[2,2,1], index: 5, kind: output, shape index: {2}]
  %6 = xla_tuple %s3, %s4, %s5
  %s7 = sld [smem:[#allocation0]]
  $region103: #{decoder_forward.12} parent=0
    _
  %s9 = ssub.s32 1, %s7
  %s10 = scalar_select 0, %s9, %s7
  $region1: #{decoder_forward.12} parent=0
    #allocation2 [shape = 'u8[512]{0}', space=vmem, size = 0x400, scoped, tag = 'input window, operand 0, single buffered']
    #allocation3 [shape = 's32[2]{0}', space=sflag, size = 0x8, scoped, tag = 'scoped memory for decoder_forward.12']
    #allocation4 [shape = 'u8[73728]{0}', space=vmem, size = 0x12000, scoped, tag = 'input window, operand 1']
    %11 = vsyncpa [#allocation3], 0
    loop: start=0, step=1, limit=4
    $region2: #{decoder_forward.12} parent=1 // loop_pre_header
      _
    $region3: #{decoder_forward.12} parent=1 // loop_header
      %s13 = sphi 0, %s17
      %p14 = scmp.ge.s32.totalorder %s13, 4
      %s21 = sphi 0, %s21
      %s23 = sphi 0, %s21
      %s24 = sphi 0, %s23
      %s38 = sphi 0, %s24
      %s44 = sphi 0, %s46
      %s47 = sphi 0, %s44
      %s48 = sphi 0, %s47
      %s64 = sphi 0, %s48
      %s68 = sphi 0, %s68
      %s70 = sphi 0, %s68
      %s71 = sphi 0, %s70
      %s85 = sphi 0, %s71
      %s91 = sphi 0, %s93
      %s94 = sphi 0, %s91
      %s95 = sphi 0, %s94
      %s111 = sphi 0, %s95
      %s117 = sphi 0, %s119
      %s120 = sphi 0, %s117
      %s121 = sphi 0, %s120
      %s137 = sphi 0, %s121
      %s143 = sphi 0, %s145
      %s146 = sphi 0, %s143
      %s147 = sphi 0, %s146
      %s163 = sphi 0, %s147
    $region4: #{decoder_forward.12} parent=1 // loop_header_branch
      %16 = sbr.rel (%p14) target = $region8
    $region5: #{decoder_forward.12} parent=1 // loop_body
      %s18 = ssub.s32 %s13, 1
      %s19 = ssub.s32 %s13, 2
      %s20 = sadd.s32 %s13, 1
      %s22 = sadd.s32 %s21, 1
      %p25 = scmp.eq.s32.totalorder %s13, 1
      %p26 = scmp.ne.s32.totalorder %s21, %s23
      %p27 = scmp.eq.s32.totalorder %s13, 0
      %p28 = por %p26, %p27
      %p29 = scmp.ne.s32.totalorder %s21, %s23
      %p30 = scmp.eq.s32.totalorder %s18, 1
      %p31 = por %p29, %p30
      %p32 = scmp.ne.s32.totalorder %s23, %s24
      %p33 = scmp.eq.s32.totalorder %s18, 0
      %p34 = por %p32, %p33
      %p35 = scmp.ne.s32.totalorder %s23, %s24
      %p36 = scmp.eq.s32.totalorder %s19, 1
      %p37 = por %p35, %p36
      %p39 = scmp.ne.s32.totalorder %s24, %s38
      %p40 = scmp.eq.s32.totalorder %s19, 0
      %p41 = por %p39, %p40
      %s42 = ssub.s32 %s13, %s20
      %p43 = scmp.eq.s32.totalorder %s42, 0
      %s45 = sadd.s32 %s44, 1
      %s46 = scalar_select %p43, %s44, %s45
      %p49 = pneg %p43
      %p50 = scmp.eq.s32.totalorder %s13, 1
      %p51 = por %p49, %p50
      %p52 = scmp.ne.s32.totalorder %s44, %s47
      %p53 = scmp.eq.s32.totalorder %s13, 0
      %p54 = por %p52, %p53
      %p55 = scmp.ne.s32.totalorder %s44, %s47
      %p56 = scmp.eq.s32.totalorder %s18, 1
      %p57 = por %p55, %p56
      %p58 = scmp.ne.s32.totalorder %s47, %s48
      %p59 = scmp.eq.s32.totalorder %s18, 0
      %p60 = por %p58, %p59
      %p61 = scmp.ne.s32.totalorder %s47, %s48
      %p62 = scmp.eq.s32.totalorder %s19, 1
      %p63 = por %p61, %p62
      %p65 = scmp.ne.s32.totalorder %s48, %s64
      %p66 = scmp.eq.s32.totalorder %s19, 0
      %p67 = por %p65, %p66
      %s69 = sadd.s32 %s68, 1
      %p72 = scmp.eq.s32.totalorder %s13, 1
      %p73 = scmp.ne.s32.totalorder %s68, %s70
      %p74 = scmp.eq.s32.totalorder %s13, 0
      %p75 = por %p73, %p74
      %p76 = scmp.ne.s32.totalorder %s68, %s70
      %p77 = scmp.eq.s32.totalorder %s18, 1
      %p78 = por %p76, %p77
      %p79 = scmp.ne.s32.totalorder %s70, %s71
      %p80 = scmp.eq.s32.totalorder %s18, 0
      %p81 = por %p79, %p80
      %p82 = scmp.ne.s32.totalorder %s70, %s71
      %p83 = scmp.eq.s32.totalorder %s19, 1
      %p84 = por %p82, %p83
      %p86 = scmp.ne.s32.totalorder %s71, %s85
      %p87 = scmp.eq.s32.totalorder %s19, 0
      %p88 = por %p86, %p87
      %s89 = ssub.s32 %s13, %s20
      %p90 = scmp.eq.s32.totalorder %s89, 0
      %s92 = sadd.s32 %s91, 1
      %s93 = scalar_select %p90, %s91, %s92
      %p96 = pneg %p90
      %p97 = scmp.eq.s32.totalorder %s13, 1
      %p98 = por %p96, %p97
      %p99 = scmp.ne.s32.totalorder %s91, %s94
      %p100 = scmp.eq.s32.totalorder %s13, 0
      %p101 = por %p99, %p100
      %p102 = scmp.ne.s32.totalorder %s91, %s94
      %p103 = scmp.eq.s32.totalorder %s18, 1
      %p104 = por %p102, %p103
      %p105 = scmp.ne.s32.totalorder %s94, %s95
      %p106 = scmp.eq.s32.totalorder %s18, 0
      %p107 = por %p105, %p106
      %p108 = scmp.ne.s32.totalorder %s94, %s95
      %p109 = scmp.eq.s32.totalorder %s19, 1
      %p110 = por %p108, %p109
      %p112 = scmp.ne.s32.totalorder %s95, %s111
      %p113 = scmp.eq.s32.totalorder %s19, 0
      %p114 = por %p112, %p113
      %s115 = ssub.s32 %s13, %s20
      %p116 = scmp.eq.s32.totalorder %s115, 0
      %s118 = sadd.s32 %s117, 1
      %s119 = scalar_select %p116, %s117, %s118
      %p122 = pneg %p116
      %p123 = scmp.eq.s32.totalorder %s13, 1
      %p124 = por %p122, %p123
      %p125 = scmp.ne.s32.totalorder %s117, %s120
      %p126 = scmp.eq.s32.totalorder %s13, 0
      %p127 = por %p125, %p126
      %p128 = scmp.ne.s32.totalorder %s117, %s120
      %p129 = scmp.eq.s32.totalorder %s18, 1
      %p130 = por %p128, %p129
      %p131 = scmp.ne.s32.totalorder %s120, %s121
      %p132 = scmp.eq.s32.totalorder %s18, 0
      %p133 = por %p131, %p132
      %p134 = scmp.ne.s32.totalorder %s120, %s121
      %p135 = scmp.eq.s32.totalorder %s19, 1
      %p136 = por %p134, %p135
      %p138 = scmp.ne.s32.totalorder %s121, %s137
      %p139 = scmp.eq.s32.totalorder %s19, 0
      %p140 = por %p138, %p139
      %s141 = ssub.s32 %s13, %s20
      %p142 = scmp.eq.s32.totalorder %s141, 0
      %s144 = sadd.s32 %s143, 1
      %s145 = scalar_select %p142, %s143, %s144
      %p148 = pneg %p142
      %p149 = scmp.eq.s32.totalorder %s13, 1
      %p150 = por %p148, %p149
      %p151 = scmp.ne.s32.totalorder %s143, %s146
      %p152 = scmp.eq.s32.totalorder %s13, 0
      %p153 = por %p151, %p152
      %p154 = scmp.ne.s32.totalorder %s143, %s146
      %p155 = scmp.eq.s32.totalorder %s18, 1
      %p156 = por %p154, %p155
      %p157 = scmp.ne.s32.totalorder %s146, %s147
      %p158 = scmp.eq.s32.totalorder %s18, 0
      %p159 = por %p157, %p158
      %p160 = scmp.ne.s32.totalorder %s146, %s147
      %p161 = scmp.eq.s32.totalorder %s19, 1
      %p162 = por %p160, %p161
      %p164 = scmp.ne.s32.totalorder %s147, %s163
      %p165 = scmp.eq.s32.totalorder %s19, 0
      %p166 = por %p164, %p165
      %p167 = scmp.le.s32.totalorder 1, %s13
      %p168 = scmp.lt.s32.totalorder %s13, 3
      %p169 = pnand %p167, %p168
      %p170 = pneg %p169
      // Predicated region
      $region9: #{decoder_forward.12} parent=5 // pred_check
        _
      $region10: #{decoder_forward.12} parent=5 // pred_check_branch
        %172 = sbr.rel (%p169) target = $region12
      $region11: #{decoder_forward.12} parent=5 // pred_region
        %s173 = ssub.s32 %s13, 1
        // Predicated region
        $region13: #{decoder_forward.12} parent=11 // pred_check
          %p174 = pneg %p34
        $region14: #{decoder_forward.12} parent=11 // pred_check_branch
          %176 = sbr.rel (%p174) target = $region16
        $region15: #{decoder_forward.12} parent=11 // pred_region
          %s178 = ssub.s32 16, 16
          %179 = vsyncadd [#allocation3], %s178
          %s181 = sshll.u32 [#allocation2], 4
          %s182 = int_to_ptr.vmem [resolvable:$true] %s181
          %184 = dma.hbm_to_vmem [thread:$0]  %s0, 16, %s182, [#allocation3]
        $region16: #{decoder_forward.12} parent=11 // pred_fallthru
          _
        // Predicated region
        $region17: #{decoder_forward.12} parent=11 // pred_check
          %p185 = pneg %p81
        $region18: #{decoder_forward.12} parent=11 // pred_check_branch
          %187 = sbr.rel (%p185) target = $region20
        $region19: #{decoder_forward.12} parent=11 // pred_region
          _
        $region20: #{decoder_forward.12} parent=11 // pred_fallthru
          _
      $region12: #{decoder_forward.12} parent=5 // pred_fallthru
        _
      %p188 = scmp.lt.s32.totalorder %s13, 2
      // Predicated region
      $region21: #{decoder_forward.12} parent=5 // pred_check
        %p189 = pneg %p188
      $region22: #{decoder_forward.12} parent=5 // pred_check_branch
        %191 = sbr.rel (%p189) target = $region24
      $region23: #{decoder_forward.12} parent=5 // pred_region
        // Predicated region
        $region25: #{decoder_forward.12} parent=23 // pred_check
          %p192 = pneg %p54
        $region26: #{decoder_forward.12} parent=23 // pred_check_branch
          %194 = sbr.rel (%p192) target = $region28
        $region27: #{decoder_forward.12} parent=23 // pred_region
          %s195 = sand.u32 %s44, 1
          %s196 = sand.u32 %s44, 1
          %s197 = smul.addr %s196, 72
          %s198 = scalar_lea.vmem [#allocation4], %s197
          %s199 = smul.u32 2, %s13
          %s200 = smul.addr %s199, 4
          %s201 = scalar_lea.vmem %s1, %s200
          // Predicated region
          $region29: #{decoder_forward.12} parent=27 // pred_check
            _
          $region30: #{decoder_forward.12} parent=27 // pred_check_branch
            %203 = sbr.rel (0) target = $region32
          $region31: #{decoder_forward.12} parent=27 // pred_region
            // Predicated region
            $region33: #{decoder_forward.12} parent=31 // pred_check
              _
            $region34: #{decoder_forward.12} parent=31 // pred_check_branch
              %205 = sbr.rel (0) target = $region36
            $region35: #{decoder_forward.12} parent=31 // pred_region
              // Predicated region
              $region48: #{decoder_forward.12} parent=35 // pred_check
                _
              $region49: #{decoder_forward.12} parent=35 // pred_check_branch
                %236 = sbr.rel (0) target = $region51
              $region50: #{decoder_forward.12} parent=35 // pred_region
                loop: start=0, step=1, limit=1
                $region52: #{decoder_forward.12} parent=50 // loop_pre_header
                  _
                $region53: #{decoder_forward.12} parent=50 // loop_header
                  %s238 = sphi 0, %s242
                  %p239 = scmp.ge.s32.totalorder %s238, 1
                  %s243 = sphi %s201, %s201
                  %s244 = sphi %s198, %s198
                $region54: #{decoder_forward.12} parent=50 // loop_header_branch
                  %241 = sbr.rel (%p239) target = $region58
                $region55: #{decoder_forward.12} parent=50 // loop_body
                  %v245 = vld [vmem:[%s243] sm:$0xff]
                  %246 = vst [vmem:[%s244] sm:$0xff] %v245
                  %v247 = vld [vmem:[%s243 + $0x10] sm:$0xff]
                  %248 = vst [vmem:[%s244 + $0x8] sm:$0xff] %v247
                  %v249 = vld [vmem:[%s243 + $0x20] sm:$0xff]
                  %250 = vst [vmem:[%s244 + $0x10] sm:$0xff] %v249
                  %v251 = vld [vmem:[%s243 + $0x30] sm:$0xff]
                  %252 = vst [vmem:[%s244 + $0x18] sm:$0xff] %v251
                  %v253 = vld [vmem:[%s243 + $0x40] sm:$0xff]
                  %254 = vst [vmem:[%s244 + $0x20] sm:$0xff] %v253
                  %v255 = vld [vmem:[%s243 + $0x50] sm:$0xff]
                  %256 = vst [vmem:[%s244 + $0x28] sm:$0xff] %v255
                  %v257 = vld [vmem:[%s243 + $0x60] sm:$0xff]
                  %258 = vst [vmem:[%s244 + $0x30] sm:$0xff] %v257
                  %v259 = vld [vmem:[%s243 + $0x70] sm:$0xff]
                  %260 = vst [vmem:[%s244 + $0x38] sm:$0xff] %v259
                  %v261 = vld [vmem:[%s243 + $0x80] sm:$0xff]
                  %262 = vst [vmem:[%s244 + $0x40] sm:$0xff] %v261
                $region56: #{decoder_forward.12} parent=50 // loop_footer
                  %s242 = sadd.s32 1, %s238
                $region57: #{decoder_forward.12} parent=50 // loop_footer_branch
                  %237 = sbr.rel target = $region53
                $region58: #{decoder_forward.12} parent=50 // loop_exit
                  _
              $region51: #{decoder_forward.12} parent=35 // pred_fallthru
                _
              // Predicated region
              $region59: #{decoder_forward.12} parent=35 // pred_check
                _
              $region60: #{decoder_forward.12} parent=35 // pred_check_branch
                %264 = sbr.rel target = $region62
              $region61: #{decoder_forward.12} parent=35 // pred_region
                _
              $region62: #{decoder_forward.12} parent=35 // pred_fallthru
                _
            $region36: #{decoder_forward.12} parent=31 // pred_fallthru
              _
            // Predicated region
            $region37: #{decoder_forward.12} parent=31 // pred_check
              _
            $region38: #{decoder_forward.12} parent=31 // pred_check_branch
              %207 = sbr.rel target = $region40
            $region39: #{decoder_forward.12} parent=31 // pred_region
              loop: start=0, step=1, limit=1
              $region41: #{decoder_forward.12} parent=39 // loop_pre_header
                _
              $region42: #{decoder_forward.12} parent=39 // loop_header
                %s210 = sphi 0, %s214
                %p211 = scmp.ge.s32.totalorder %s210, 1
                %s215 = sphi %s201, %s201
                %s216 = sphi %s198, %s198
              $region43: #{decoder_forward.12} parent=39 // loop_header_branch
                %213 = sbr.rel (%p211) target = $region47
              $region44: #{decoder_forward.12} parent=39 // loop_body
                %v217 = vld [vmem:[%s215] sm:$0xff]
                %218 = vst [vmem:[%s216] sm:$0xff] %v217
                %v219 = vld [vmem:[%s215 + $0x10] sm:$0xff]
                %220 = vst [vmem:[%s216 + $0x8] sm:$0xff] %v219
                %v221 = vld [vmem:[%s215 + $0x20] sm:$0xff]
                %222 = vst [vmem:[%s216 + $0x10] sm:$0xff] %v221
                %v223 = vld [vmem:[%s215 + $0x30] sm:$0xff]
                %224 = vst [vmem:[%s216 + $0x18] sm:$0xff] %v223
                %v225 = vld [vmem:[%s215 + $0x40] sm:$0xff]
                %226 = vst [vmem:[%s216 + $0x20] sm:$0xff] %v225
                %v227 = vld [vmem:[%s215 + $0x50] sm:$0xff]
                %228 = vst [vmem:[%s216 + $0x28] sm:$0xff] %v227
                %v229 = vld [vmem:[%s215 + $0x60] sm:$0xff]
                %230 = vst [vmem:[%s216 + $0x30] sm:$0xff] %v229
                %v231 = vld [vmem:[%s215 + $0x70] sm:$0xff]
                %232 = vst [vmem:[%s216 + $0x38] sm:$0xff] %v231
                %v233 = vld [vmem:[%s215 + $0x80] sm:$0xff]
                %234 = vst [vmem:[%s216 + $0x40] sm:$0xff] %v233
              $region45: #{decoder_forward.12} parent=39 // loop_footer
                %s214 = sadd.s32 1, %s210
              $region46: #{decoder_forward.12} parent=39 // loop_footer_branch
                %209 = sbr.rel target = $region42
              $region47: #{decoder_forward.12} parent=39 // loop_exit
                _
            $region40: #{decoder_forward.12} parent=31 // pred_fallthru
              _
          $region32: #{decoder_forward.12} parent=27 // pred_fallthru
            _
          %265 = vnop
        $region28: #{decoder_forward.12} parent=23 // pred_fallthru
          _
      $region24: #{decoder_forward.12} parent=5 // pred_fallthru
        _
      %p266 = scmp.le.s32.totalorder 1, %s13
      %p267 = scmp.lt.s32.totalorder %s13, 3
      %p268 = pnand %p266, %p267
      %p269 = pneg %p268
      // Predicated region
      $region63: #{decoder_forward.12} parent=5 // pred_check
        _
      $region64: #{decoder_forward.12} parent=5 // pred_check_branch
        %271 = sbr.rel (%p268) target = $region66
      $region65: #{decoder_forward.12} parent=5 // pred_region
        %s272 = ssub.s32 %s13, 1
        // Predicated region
        $region67: #{decoder_forward.12} parent=65 // pred_check
          %p273 = pneg %p34
        $region68: #{decoder_forward.12} parent=65 // pred_check_branch
          %275 = sbr.rel (%p273) target = $region70
        $region69: #{decoder_forward.12} parent=65 // pred_region
          %276 = dma.done [#allocation3], 16
        $region70: #{decoder_forward.12} parent=65 // pred_fallthru
          _
        %s277 = sand.u32 %s47, 1
        %s278 = sand.u32 %s47, 1
        %s279 = smul.addr %s278, 72
        %s280 = scalar_lea.vmem [#allocation4], %s279
        // Predicated region
        $region71: #{decoder_forward.12} parent=65 // pred_check
          %p281 = pneg %p60
        $region72: #{decoder_forward.12} parent=65 // pred_check_branch
          %283 = sbr.rel (%p281) target = $region74
        $region73: #{decoder_forward.12} parent=65 // pred_region
          _
        $region74: #{decoder_forward.12} parent=65 // pred_fallthru
          _
        %p284 = pneg %p34
        %p285 = pneg %p31
        %s286 = sand.u32 %s47, 1
        %s287 = sand.u32 %s47, 1
        %s288 = smul.addr %s287, 72
        %s289 = scalar_lea.vmem [#allocation4], %s288
        %p290 = pneg %p60
        %p291 = pneg %p57
        %p292 = pneg %p81
        %p293 = pneg %p78
        %p294 = pneg %p107
        %p295 = pneg %p104
        %s296 = smul.u32 2, %s18
        %p297 = scmp.lt.s32.totalorder %s296, 3
        %s298 = scalar_select %p297, %s296, 3
        %s299 = smul.addr %s298, 2
        %s300 = scalar_lea.vmem %s3, %s299
        %p301 = pneg %p133
        %p302 = pneg %p130
        %p303 = scmp.lt.s32.totalorder %s18, 1
        %s304 = scalar_select %p303, %s18, 1
        %s305 = smul.addr %s304, 2
        %s306 = scalar_lea.vmem %s4, %s305
        %p307 = pneg %p159
        %p308 = pneg %p156
        %p309 = scmp.lt.s32.totalorder %s18, 1
        %s310 = scalar_select %p309, %s18, 1
        %s311 = smul.addr %s310, 2
        %s312 = scalar_lea.vmem %s5, %s311
        %s313 = smul.u32 2, %s18
        %s314 = smul.u32 2, %s18
        %p315 = scmp.lt.s32.totalorder %s314, 3
        %s316 = scalar_select %p315, %s314, 3
        %s317 = smul.addr %s316, 2
        %s318 = scalar_lea.vmem %s3, %s317
        %s319 = smul.u32 2, %s18
        %p320 = scmp.lt.s32.totalorder %s18, 1
        %s321 = scalar_select %p320, %s18, 1
        %s322 = smul.addr %s321, 2
        %s323 = scalar_lea.vmem %s4, %s322
        %p324 = scmp.lt.s32.totalorder %s18, 1
        %s325 = scalar_select %p324, %s18, 1
        %s326 = smul.addr %s325, 2
        %s327 = scalar_lea.vmem %s5, %s326
        %v329 = vld [vmem:[%s280] sm:$0xff]
        %v330 = vld [vmem:[%s280 + $0x8] sm:$0xff]
        %v331 = vld [vmem:[%s280 + $0x10] sm:$0xff]
        %v332 = vld [vmem:[%s280 + $0x18] sm:$0xff]
        %v333 = vld [vmem:[%s280 + $0x20] sm:$0xff]
        %v334 = vld [vmem:[%s280 + $0x28] sm:$0xff]
        %v335 = vld [vmem:[%s280 + $0x30] sm:$0xff]
        %v336 = vld [vmem:[%s280 + $0x38] sm:$0xff]
        %v337 = vld [vmem:[%s280 + $0x40] sm:$0xff]
        %v338 = vld [vmem:[#allocation2] sm:$0x1]
        %v339 = vld [vmem:[%s2] sm:$0x3]
        %341 = vset.pattern.permute.xlu0 0
        %342 = vperm.xlu0 %341, %v339
        %v343 = vpop.permute.xlu0 %342
        %v354 = vunpack.c.l.b16 %v329
        %v355 = vunpack.c.h.b16 %v329
        %v356 = vunpack.c.l.b16 %v330
        %v357 = vunpack.c.h.b16 %v330
        %v358 = vunpack.c.l.b16 %v331
        %v359 = vunpack.c.h.b16 %v331
        %v360 = vunpack.c.l.b16 %v332
        %v361 = vunpack.c.h.b16 %v332
        %v362 = vunpack.c.l.b16 %v333
        %v363 = vunpack.c.h.b16 %v333
        %v364 = vunpack.c.l.b16 %v334
        %v365 = vunpack.c.h.b16 %v334
        %v366 = vunpack.c.l.b16 %v335
        %v367 = vunpack.c.h.b16 %v335
        %v368 = vunpack.c.l.b16 %v336
        %v369 = vunpack.c.h.b16 %v336
        %v370 = vunpack.c.l.b16 %v337
        %v371 = vunpack.c.h.b16 %v337
        %v372 = vpack.c.b16 %v356, %v354
        %v373 = vpack.c.b16 %v357, %v355
        %v374 = vpack.c.b16 %v360, %v358
        %v375 = vpack.c.b16 %v361, %v359
        %v376 = vpack.c.b16 %v364, %v362
        %v377 = vpack.c.b16 %v365, %v363
        %v378 = vpack.c.b16 %v368, %v366
        %v379 = vpack.c.b16 %v369, %v367
        %v380 = vpack.c.b16 %v370, %v370
        %v381 = vpack.c.b16 %v371, %v371
        %vm390 = vcmask 588800
        %v392 = vsel %vm390, %v338, 0
        %vm394 = vcmask 1043456
        %v396 = vsel %vm394, %v380, 0
        %v399 = vsel %vm394, %v381, 0
        %401 = vmatprep.subr.bf16.mxu0 %v373
        %402 = vmatpush1.bf16.msra.mxu0 %v372
        %403 = vmatprep.subr.bf16.mxu0 %v375
        %404 = vmatpush1.bf16.msra.mxu0 %v374
        %405 = vmatprep.subr.bf16.mxu0 %v377
        %406 = vmatpush1.bf16.msra.mxu0 %v376
        %407 = vmatprep.subr.bf16.mxu0 %v379
        %408 = vmatpush1.bf16.msra.mxu0 %v378
        %409 = vmatprep.subr.bf16.mxu0 %v399
        %410 = vmatpush1.bf16.msra.mxu0 %v396
        %411 = vmatprep.subr.bf16.mxu0 0
        %412 = vmatpush1.bf16.msra.mxu0 0
        %413 = vmatprep.subr.bf16.mxu0 0
        %414 = vmatpush1.bf16.msra.mxu0 0
        %415 = vmatprep.subr.bf16.mxu0 0
        %416 = vmatpush1.bf16.msra.mxu0 0
        %417 = vmatprep.subr.bf16.mxu0 0
        %418 = vmatpush1.bf16.msra.mxu0 0
        %419 = vmatprep.subr.bf16.mxu0 0
        %420 = vmatpush1.bf16.msra.mxu0 0
        %421 = vmatprep.subr.bf16.mxu0 0
        %422 = vmatpush1.bf16.msra.mxu0 0
        %423 = vmatprep.subr.bf16.mxu0 0
        %424 = vmatpush1.bf16.msra.mxu0 0
        %425 = vmatprep.subr.bf16.mxu0 0
        %426 = vmatpush1.bf16.msra.mxu0 0
        %427 = vmatprep.subr.bf16.mxu0 0
        %428 = vmatpush1.bf16.msra.mxu0 0
        %429 = vmatprep.subr.bf16.mxu0 0
        %430 = vmatpush1.bf16.msra.mxu0 0
        %431 = vmatprep.subr.bf16.mxu0 0
        %432 = vmatpush1.bf16.msra.mxu0 0
        %433 = vmatprep.mubr.bf16.mxu0 0
        %434 = vmatmul.mubr.bf16.gmra.mrb[0].mxu0 %v392
        %v435 = vpop.f32.mrb[0].mxu0
        %v436 = vadd.f32 %v343, %v435
        %v437 = vpop.f32.mrb[0].mxu0
        %v438 = vadd.f32 %v343, %v437
        %v439 = vpop.f32.mrb[0].mxu0
        %v440 = vpop.f32.mrb[0].mxu0
        %441 = vdwg.mxu0
        %v444 = vcombine.low %v436, %v438
        %v446 = vunpack.c.l.s4 1983009808
        %v447 = vunpack.c.0.s8 %v446
        %v448 = vlaneseq
        %v449 = vshrl.u32 %v448, 7
        %v450 = vsub.s32 %v447, %v449
        %v451 = vrot.slane %v444, %v450
        %453 = vst [vmem:[%s318] sm:$0xf] %v451
        %v454 = vlaneseq
        %v455 = vand.u32 %v454, 127
        %v456 = vadd.s32 %v455, 128
        %s457 = smul.u32 %s18, 256
        %v458 = vstv %s457
        %v459 = vadd.s32 %v455, %v458
        %v460 = vadd.s32 %v456, %v458
        %vm461 = vcmp.lt.s32.totalorder %v459, 512
        %vm462 = vcmp.lt.s32.totalorder %v460, 512
        %v463 = vsel %vm461, %v436, 0.0
        %v464 = vsel %vm462, %v438, 0.0
        %vm465 = vcmask 1041408
        %v466 = vsel %vm465, %v463, 0.0
        %v467 = vsel %vm465, %v464, 0.0
        %v468 = vadd.f32 %v466, %v467
        %469 = vadd.xlane.f32.xlu0 %v468
        %v470 = vpop.xlane.xlu0 %469
        %vm471 = vcmask 1024
        %472 = vst.msk [vmem:[%s323] sm:$0x3] %vm471, %v470
        %v473 = vmul.f32 %v463, %v463
        %v474 = vmul.f32 %v464, %v464
        %v475 = vsel %vm465, %v473, 0.0
        %v476 = vsel %vm465, %v474, 0.0
        %v477 = vadd.f32 %v475, %v476
        %478 = vadd.xlane.f32.xlu0 %v477
        %v479 = vpop.xlane.xlu0 %478
        %480 = vst.msk [vmem:[%s327] sm:$0x3] %vm471, %v479
        %s481 = smul.u32 2, %s18
        %p482 = scmp.lt.s32.totalorder %s481, 3
        %s483 = scalar_select %p482, %s481, 3
        %s484 = smul.addr %s483, 2
        %s485 = scalar_lea.vmem %s3, %s484
        %p486 = scmp.lt.s32.totalorder %s18, 1
        %s487 = scalar_select %p486, %s18, 1
        %s488 = smul.addr %s487, 2
        %s489 = scalar_lea.vmem %s4, %s488
        %p490 = scmp.lt.s32.totalorder %s18, 1
        %s491 = scalar_select %p490, %s18, 1
        %s492 = smul.addr %s491, 2
        %s493 = scalar_lea.vmem %s5, %s492
        // Predicated region
        $region75: #{decoder_forward.12} parent=65 // pred_check
          %p494 = pneg %p104
        $region76: #{decoder_forward.12} parent=65 // pred_check_branch
          %496 = sbr.rel (%p494) target = $region78
        $region77: #{decoder_forward.12} parent=65 // pred_region
          %s497 = smul.u32 2, %s18
        $region78: #{decoder_forward.12} parent=65 // pred_fallthru
          _
        // Predicated region
        $region79: #{decoder_forward.12} parent=65 // pred_check
          %p498 = pneg %p130
        $region80: #{decoder_forward.12} parent=65 // pred_check_branch
          %500 = sbr.rel (%p498) target = $region82
        $region81: #{decoder_forward.12} parent=65 // pred_region
          _
        $region82: #{decoder_forward.12} parent=65 // pred_fallthru
          _
        // Predicated region
        $region83: #{decoder_forward.12} parent=65 // pred_check
          %p501 = pneg %p156
        $region84: #{decoder_forward.12} parent=65 // pred_check_branch
          %503 = sbr.rel (%p501) target = $region86
        $region85: #{decoder_forward.12} parent=65 // pred_region
          _
        $region86: #{decoder_forward.12} parent=65 // pred_fallthru
          _
      $region66: #{decoder_forward.12} parent=5 // pred_fallthru
        _
      %p504 = scmp.le.s32.totalorder 2, %s13
      // Predicated region
      $region87: #{decoder_forward.12} parent=5 // pred_check
        %p505 = pneg %p504
      $region88: #{decoder_forward.12} parent=5 // pred_check_branch
        %507 = sbr.rel (%p505) target = $region90
      $region89: #{decoder_forward.12} parent=5 // pred_region
        %s508 = ssub.s32 %s13, 2
        // Predicated region
        $region91: #{decoder_forward.12} parent=89 // pred_check
          %p509 = pneg %p110
        $region92: #{decoder_forward.12} parent=89 // pred_check_branch
          %511 = sbr.rel (%p509) target = $region94
        $region93: #{decoder_forward.12} parent=89 // pred_region
          %s512 = smul.u32 2, %s19
          %p513 = scmp.lt.s32.totalorder %s512, 3
          %s514 = scalar_select %p513, %s512, 3
          %s515 = smul.addr %s514, 2
          %s516 = scalar_lea.vmem %s3, %s515
        $region94: #{decoder_forward.12} parent=89 // pred_fallthru
          _
        // Predicated region
        $region95: #{decoder_forward.12} parent=89 // pred_check
          %p517 = pneg %p136
        $region96: #{decoder_forward.12} parent=89 // pred_check_branch
          %519 = sbr.rel (%p517) target = $region98
        $region97: #{decoder_forward.12} parent=89 // pred_region
          %p520 = scmp.lt.s32.totalorder %s19, 1
          %s521 = scalar_select %p520, %s19, 1
          %s522 = smul.addr %s521, 2
          %s523 = scalar_lea.vmem %s4, %s522
        $region98: #{decoder_forward.12} parent=89 // pred_fallthru
          _
        // Predicated region
        $region99: #{decoder_forward.12} parent=89 // pred_check
          %p524 = pneg %p162
        $region100: #{decoder_forward.12} parent=89 // pred_check_branch
          %526 = sbr.rel (%p524) target = $region102
        $region101: #{decoder_forward.12} parent=89 // pred_region
          %p527 = scmp.lt.s32.totalorder %s19, 1
          %s528 = scalar_select %p527, %s19, 1
          %s529 = smul.addr %s528, 2
          %s530 = scalar_lea.vmem %s5, %s529
        $region102: #{decoder_forward.12} parent=89 // pred_fallthru
          _
      $region90: #{decoder_forward.12} parent=5 // pred_fallthru
        _
    $region6: #{decoder_forward.12} parent=1 // loop_footer
      %s17 = sadd.s32 1, %s13
    $region7: #{decoder_forward.12} parent=1 // loop_footer_branch
      %12 = sbr.rel target = $region3
    $region8: #{decoder_forward.12} parent=1 // loop_exit
      _
    %531 = vsyncpa [#allocation3], 1
    %s532 = scalar_lea.sflag [#allocation3], 1
    %533 = vsyncpa %s532, 1

// kernel: decoder_forward.13
$region0: #{decoder_forward.13}
  #allocation0 [shape = 'u32[]', space=smem, size = 0x4, offset = 0x4, fixed_abs, tag = 'smem constant byte address 0x4 - core index']
  #allocation1 [shape = 'u32[144,128]{1,0:T(1,128)}', space=vmem, size = 0x12000, scoped, tag = 'internal scratch']
  %s0 = inlined_call_operand.vmem [shape: bf16[8,2], index: 0, kind: input, shape index: {}]
  %s1 = inlined_call_operand.vmem [shape: f32[2,512], index: 1, kind: input, shape index: {}]
  %s2 = inlined_call_operand.vmem [shape: f32[8,1], index: 2, kind: input, shape index: {}]
  %s3 = inlined_call_operand.vmem [shape: f32[2,1], index: 3, kind: input, shape index: {}]
  %s4 = inlined_call_operand.vmem [shape: f32[2,1], index: 4, kind: input, shape index: {}]
  %s5 = inlined_call_operand.vmem [shape: f32[8,512], index: 5, kind: output, shape index: {0}]
  %s6 = inlined_call_operand.vmem [shape: f32[2,8,1], index: 6, kind: output, shape index: {1}]
  %s7 = inlined_call_operand.vmem [shape: f32[2,8,1], index: 7, kind: output, shape index: {2}]
  %8 = xla_tuple %s5, %s6, %s7
  %s9 = sld [smem:[#allocation0]]
  $region69: #{decoder_forward.13} parent=0
    _
  %s11 = ssub.s32 1, %s9
  %s12 = scalar_select 0, %s11, %s9
  loop: start=0, step=1, limit=4
  $region2: #{decoder_forward.13} parent=0 // loop_pre_header
    _
  $region3: #{decoder_forward.13} parent=0 // loop_header
    %s14 = sphi 0, %s18
    %p15 = scmp.ge.s32.totalorder %s14, 4
    %s22 = sphi 0, %s22
    %s24 = sphi 0, %s22
    %s25 = sphi 0, %s24
    %s39 = sphi 0, %s25
    %s45 = sphi 0, %s47
    %s48 = sphi 0, %s45
    %s49 = sphi 0, %s48
    %s65 = sphi 0, %s49
    %s69 = sphi 0, %s69
    %s71 = sphi 0, %s69
    %s72 = sphi 0, %s71
    %s86 = sphi 0, %s72
    %s90 = sphi 0, %s90
    %s92 = sphi 0, %s90
    %s93 = sphi 0, %s92
    %s107 = sphi 0, %s93
    %s111 = sphi 0, %s111
    %s113 = sphi 0, %s111
    %s114 = sphi 0, %s113
    %s128 = sphi 0, %s114
    %s134 = sphi 0, %s136
    %s137 = sphi 0, %s134
    %s138 = sphi 0, %s137
    %s154 = sphi 0, %s138
    %s160 = sphi 0, %s162
    %s163 = sphi 0, %s160
    %s164 = sphi 0, %s163
    %s180 = sphi 0, %s164
    %s186 = sphi 0, %s188
    %s189 = sphi 0, %s186
    %s190 = sphi 0, %s189
    %s206 = sphi 0, %s190
  $region4: #{decoder_forward.13} parent=0 // loop_header_branch
    %17 = sbr.rel (%p15) target = $region8
  $region5: #{decoder_forward.13} parent=0 // loop_body
    %s19 = ssub.s32 %s14, 1
    %s20 = ssub.s32 %s14, 2
    %s21 = sadd.s32 %s14, 1
    %s23 = sadd.s32 %s22, 1
    %p26 = scmp.eq.s32.totalorder %s14, 1
    %p27 = scmp.ne.s32.totalorder %s22, %s24
    %p28 = scmp.eq.s32.totalorder %s14, 0
    %p29 = por %p27, %p28
    %p30 = scmp.ne.s32.totalorder %s22, %s24
    %p31 = scmp.eq.s32.totalorder %s19, 1
    %p32 = por %p30, %p31
    %p33 = scmp.ne.s32.totalorder %s24, %s25
    %p34 = scmp.eq.s32.totalorder %s19, 0
    %p35 = por %p33, %p34
    %p36 = scmp.ne.s32.totalorder %s24, %s25
    %p37 = scmp.eq.s32.totalorder %s20, 1
    %p38 = por %p36, %p37
    %p40 = scmp.ne.s32.totalorder %s25, %s39
    %p41 = scmp.eq.s32.totalorder %s20, 0
    %p42 = por %p40, %p41
    %s43 = ssub.s32 %s14, %s21
    %p44 = scmp.eq.s32.totalorder %s43, 0
    %s46 = sadd.s32 %s45, 1
    %s47 = scalar_select %p44, %s45, %s46
    %p50 = pneg %p44
    %p51 = scmp.eq.s32.totalorder %s14, 1
    %p52 = por %p50, %p51
    %p53 = scmp.ne.s32.totalorder %s45, %s48
    %p54 = scmp.eq.s32.totalorder %s14, 0
    %p55 = por %p53, %p54
    %p56 = scmp.ne.s32.totalorder %s45, %s48
    %p57 = scmp.eq.s32.totalorder %s19, 1
    %p58 = por %p56, %p57
    %p59 = scmp.ne.s32.totalorder %s48, %s49
    %p60 = scmp.eq.s32.totalorder %s19, 0
    %p61 = por %p59, %p60
    %p62 = scmp.ne.s32.totalorder %s48, %s49
    %p63 = scmp.eq.s32.totalorder %s20, 1
    %p64 = por %p62, %p63
    %p66 = scmp.ne.s32.totalorder %s49, %s65
    %p67 = scmp.eq.s32.totalorder %s20, 0
    %p68 = por %p66, %p67
    %s70 = sadd.s32 %s69, 1
    %p73 = scmp.eq.s32.totalorder %s14, 1
    %p74 = scmp.ne.s32.totalorder %s69, %s71
    %p75 = scmp.eq.s32.totalorder %s14, 0
    %p76 = por %p74, %p75
    %p77 = scmp.ne.s32.totalorder %s69, %s71
    %p78 = scmp.eq.s32.totalorder %s19, 1
    %p79 = por %p77, %p78
    %p80 = scmp.ne.s32.totalorder %s71, %s72
    %p81 = scmp.eq.s32.totalorder %s19, 0
    %p82 = por %p80, %p81
    %p83 = scmp.ne.s32.totalorder %s71, %s72
    %p84 = scmp.eq.s32.totalorder %s20, 1
    %p85 = por %p83, %p84
    %p87 = scmp.ne.s32.totalorder %s72, %s86
    %p88 = scmp.eq.s32.totalorder %s20, 0
    %p89 = por %p87, %p88
    %s91 = sadd.s32 %s90, 1
    %p94 = scmp.eq.s32.totalorder %s14, 1
    %p95 = scmp.ne.s32.totalorder %s90, %s92
    %p96 = scmp.eq.s32.totalorder %s14, 0
    %p97 = por %p95, %p96
    %p98 = scmp.ne.s32.totalorder %s90, %s92
    %p99 = scmp.eq.s32.totalorder %s19, 1
    %p100 = por %p98, %p99
    %p101 = scmp.ne.s32.totalorder %s92, %s93
    %p102 = scmp.eq.s32.totalorder %s19, 0
    %p103 = por %p101, %p102
    %p104 = scmp.ne.s32.totalorder %s92, %s93
    %p105 = scmp.eq.s32.totalorder %s20, 1
    %p106 = por %p104, %p105
    %p108 = scmp.ne.s32.totalorder %s93, %s107
    %p109 = scmp.eq.s32.totalorder %s20, 0
    %p110 = por %p108, %p109
    %s112 = sadd.s32 %s111, 1
    %p115 = scmp.eq.s32.totalorder %s14, 1
    %p116 = scmp.ne.s32.totalorder %s111, %s113
    %p117 = scmp.eq.s32.totalorder %s14, 0
    %p118 = por %p116, %p117
    %p119 = scmp.ne.s32.totalorder %s111, %s113
    %p120 = scmp.eq.s32.totalorder %s19, 1
    %p121 = por %p119, %p120
    %p122 = scmp.ne.s32.totalorder %s113, %s114
    %p123 = scmp.eq.s32.totalorder %s19, 0
    %p124 = por %p122, %p123
    %p125 = scmp.ne.s32.totalorder %s113, %s114
    %p126 = scmp.eq.s32.totalorder %s20, 1
    %p127 = por %p125, %p126
    %p129 = scmp.ne.s32.totalorder %s114, %s128
    %p130 = scmp.eq.s32.totalorder %s20, 0
    %p131 = por %p129, %p130
    %s132 = ssub.s32 %s14, %s21
    %p133 = scmp.eq.s32.totalorder %s132, 0
    %s135 = sadd.s32 %s134, 1
    %s136 = scalar_select %p133, %s134, %s135
    %p139 = pneg %p133
    %p140 = scmp.eq.s32.totalorder %s14, 1
    %p141 = por %p139, %p140
    %p142 = scmp.ne.s32.totalorder %s134, %s137
    %p143 = scmp.eq.s32.totalorder %s14, 0
    %p144 = por %p142, %p143
    %p145 = scmp.ne.s32.totalorder %s134, %s137
    %p146 = scmp.eq.s32.totalorder %s19, 1
    %p147 = por %p145, %p146
    %p148 = scmp.ne.s32.totalorder %s137, %s138
    %p149 = scmp.eq.s32.totalorder %s19, 0
    %p150 = por %p148, %p149
    %p151 = scmp.ne.s32.totalorder %s137, %s138
    %p152 = scmp.eq.s32.totalorder %s20, 1
    %p153 = por %p151, %p152
    %p155 = scmp.ne.s32.totalorder %s138, %s154
    %p156 = scmp.eq.s32.totalorder %s20, 0
    %p157 = por %p155, %p156
    %s158 = ssub.s32 %s14, %s21
    %p159 = scmp.eq.s32.totalorder %s158, 0
    %s161 = sadd.s32 %s160, 1
    %s162 = scalar_select %p159, %s160, %s161
    %p165 = pneg %p159
    %p166 = scmp.eq.s32.totalorder %s14, 1
    %p167 = por %p165, %p166
    %p168 = scmp.ne.s32.totalorder %s160, %s163
    %p169 = scmp.eq.s32.totalorder %s14, 0
    %p170 = por %p168, %p169
    %p171 = scmp.ne.s32.totalorder %s160, %s163
    %p172 = scmp.eq.s32.totalorder %s19, 1
    %p173 = por %p171, %p172
    %p174 = scmp.ne.s32.totalorder %s163, %s164
    %p175 = scmp.eq.s32.totalorder %s19, 0
    %p176 = por %p174, %p175
    %p177 = scmp.ne.s32.totalorder %s163, %s164
    %p178 = scmp.eq.s32.totalorder %s20, 1
    %p179 = por %p177, %p178
    %p181 = scmp.ne.s32.totalorder %s164, %s180
    %p182 = scmp.eq.s32.totalorder %s20, 0
    %p183 = por %p181, %p182
    %s184 = ssub.s32 %s14, %s21
    %p185 = scmp.eq.s32.totalorder %s184, 0
    %s187 = sadd.s32 %s186, 1
    %s188 = scalar_select %p185, %s186, %s187
    %p191 = pneg %p185
    %p192 = scmp.eq.s32.totalorder %s14, 1
    %p193 = por %p191, %p192
    %p194 = scmp.ne.s32.totalorder %s186, %s189
    %p195 = scmp.eq.s32.totalorder %s14, 0
    %p196 = por %p194, %p195
    %p197 = scmp.ne.s32.totalorder %s186, %s189
    %p198 = scmp.eq.s32.totalorder %s19, 1
    %p199 = por %p197, %p198
    %p200 = scmp.ne.s32.totalorder %s189, %s190
    %p201 = scmp.eq.s32.totalorder %s19, 0
    %p202 = por %p200, %p201
    %p203 = scmp.ne.s32.totalorder %s189, %s190
    %p204 = scmp.eq.s32.totalorder %s20, 1
    %p205 = por %p203, %p204
    %p207 = scmp.ne.s32.totalorder %s190, %s206
    %p208 = scmp.eq.s32.totalorder %s20, 0
    %p209 = por %p207, %p208
    %p210 = scmp.le.s32.totalorder 1, %s14
    %p211 = scmp.lt.s32.totalorder %s14, 3
    %p212 = pnand %p210, %p211
    %p213 = pneg %p212
    // Predicated region
    $region9: #{decoder_forward.13} parent=5 // pred_check
      _
    $region10: #{decoder_forward.13} parent=5 // pred_check_branch
      %215 = sbr.rel (%p212) target = $region12
    $region11: #{decoder_forward.13} parent=5 // pred_region
      %s216 = ssub.s32 %s14, 1
      // Predicated region
      $region13: #{decoder_forward.13} parent=11 // pred_check
        %p217 = pneg %p35
      $region14: #{decoder_forward.13} parent=11 // pred_check_branch
        %219 = sbr.rel (%p217) target = $region16
      $region15: #{decoder_forward.13} parent=11 // pred_region
        _
      $region16: #{decoder_forward.13} parent=11 // pred_fallthru
        _
      // Predicated region
      $region17: #{decoder_forward.13} parent=11 // pred_check
        %p220 = pneg %p82
      $region18: #{decoder_forward.13} parent=11 // pred_check_branch
        %222 = sbr.rel (%p220) target = $region20
      $region19: #{decoder_forward.13} parent=11 // pred_region
        _
      $region20: #{decoder_forward.13} parent=11 // pred_fallthru
        _
      // Predicated region
      $region21: #{decoder_forward.13} parent=11 // pred_check
        %p223 = pneg %p103
      $region22: #{decoder_forward.13} parent=11 // pred_check_branch
        %225 = sbr.rel (%p223) target = $region24
      $region23: #{decoder_forward.13} parent=11 // pred_region
        _
      $region24: #{decoder_forward.13} parent=11 // pred_fallthru
        _
      // Predicated region
      $region25: #{decoder_forward.13} parent=11 // pred_check
        %p226 = pneg %p124
      $region26: #{decoder_forward.13} parent=11 // pred_check_branch
        %228 = sbr.rel (%p226) target = $region28
      $region27: #{decoder_forward.13} parent=11 // pred_region
        _
      $region28: #{decoder_forward.13} parent=11 // pred_fallthru
        _
    $region12: #{decoder_forward.13} parent=5 // pred_fallthru
      _
    %p229 = scmp.lt.s32.totalorder %s14, 2
    // Predicated region
    $region29: #{decoder_forward.13} parent=5 // pred_check
      %p230 = pneg %p229
    $region30: #{decoder_forward.13} parent=5 // pred_check_branch
      %232 = sbr.rel (%p230) target = $region32
    $region31: #{decoder_forward.13} parent=5 // pred_region
      // Predicated region
      $region33: #{decoder_forward.13} parent=31 // pred_check
        %p233 = pneg %p55
      $region34: #{decoder_forward.13} parent=31 // pred_check_branch
        %235 = sbr.rel (%p233) target = $region36
      $region35: #{decoder_forward.13} parent=31 // pred_region
        %s236 = smul.u32 2, %s14
        %p237 = scmp.lt.s32.totalorder %s236, 3
        %s238 = scalar_select %p237, %s236, 3
        %s239 = smul.addr %s238, 2
        %s240 = scalar_lea.vmem %s1, %s239
        %s241 = smul.u32 2, %s14
      $region36: #{decoder_forward.13} parent=31 // pred_fallthru
        _
    $region32: #{decoder_forward.13} parent=5 // pred_fallthru
      _
    %p242 = scmp.le.s32.totalorder 1, %s14
    %p243 = scmp.lt.s32.totalorder %s14, 3
    %p244 = pnand %p242, %p243
    %p245 = pneg %p244
    // Predicated region
    $region37: #{decoder_forward.13} parent=5 // pred_check
      _
    $region38: #{decoder_forward.13} parent=5 // pred_check_branch
      %247 = sbr.rel (%p244) target = $region40
    $region39: #{decoder_forward.13} parent=5 // pred_region
      %s248 = ssub.s32 %s14, 1
      %p249 = pneg %p35
      %p250 = pneg %p32
      %s251 = smul.u32 2, %s19
      %p252 = scmp.lt.s32.totalorder %s251, 3
      %s253 = scalar_select %p252, %s251, 3
      %s254 = smul.addr %s253, 2
      %s255 = scalar_lea.vmem %s1, %s254
      %p256 = pneg %p61
      %p257 = pneg %p58
      %p258 = pneg %p82
      %p259 = pneg %p79
      %p260 = pneg %p103
      %p261 = pneg %p100
      %p262 = pneg %p124
      %p263 = pneg %p121
      %p264 = pneg %p150
      %p265 = pneg %p147
      %s266 = smul.u32 2, %s19
      %p267 = scmp.lt.s32.totalorder %s266, 3
      %s268 = scalar_select %p267, %s266, 3
      %s269 = smul.addr %s268, 8
      %s270 = scalar_lea.vmem %s5, %s269
      %p271 = pneg %p176
      %p272 = pneg %p173
      %p273 = scmp.lt.s32.totalorder %s19, 1
      %s274 = scalar_select %p273, %s19, 1
      %s275 = smul.addr %s274, 8
      %s276 = scalar_lea.vmem %s6, %s275
      %p277 = pneg %p202
      %p278 = pneg %p199
      %p279 = scmp.lt.s32.totalorder %s19, 1
      %s280 = scalar_select %p279, %s19, 1
      %s281 = smul.addr %s280, 8
      %s282 = scalar_lea.vmem %s7, %s281
      %s283 = smul.u32 2, %s19
      %p284 = scmp.lt.s32.totalorder %s283, 3
      %s285 = scalar_select %p284, %s283, 3
      %s286 = smul.addr %s285, 2
      %s287 = scalar_lea.vmem %s1, %s286
      %s288 = smul.u32 2, %s19
      %s289 = smul.u32 2, %s19
      %p290 = scmp.lt.s32.totalorder %s289, 3
      %s291 = scalar_select %p290, %s289, 3
      %s292 = smul.addr %s291, 8
      %s293 = scalar_lea.vmem %s5, %s292
      %s294 = smul.u32 2, %s19
      %p295 = scmp.lt.s32.totalorder %s19, 1
      %s296 = scalar_select %p295, %s19, 1
      %s297 = smul.addr %s296, 8
      %s298 = scalar_lea.vmem %s6, %s297
      %p299 = scmp.lt.s32.totalorder %s19, 1
      %s300 = scalar_select %p299, %s19, 1
      %s301 = smul.addr %s300, 8
      %s302 = scalar_lea.vmem %s7, %s301
      %v304 = vld [vmem:[%s287] sm:$0xf]
      %v305 = vld [vmem:[%s3] sm:$0x3]
      %307 = vset.pattern.permute.xlu0 0
      %308 = vperm.xlu0 %307, %v305
      %v309 = vpop.permute.xlu0 %308
      %v311 = vunpack.c.l.s4 269488144
      %v312 = vunpack.c.0.s8 %v311
      %v313 = vlaneseq
      %v314 = vshrl.u32 %v313, 7
      %v315 = vsub.s32 %v312, %v314
      %v316 = vrot.slane %v309, %v315
      %v318 = vmul.f32 %v304, %v316
      %v319 = vld [vmem:[%s4] sm:$0x3]
      %321 = vset.pattern.permute.xlu0 0
      %322 = vperm.xlu0 %321, %v319
      %v323 = vpop.permute.xlu0 %322
      %v325 = vunpack.c.l.s4 269488144
      %v326 = vunpack.c.0.s8 %v325
      %v327 = vlaneseq
      %v328 = vshrl.u32 %v327, 7
      %v329 = vsub.s32 %v326, %v328
      %v330 = vrot.slane %v323, %v329
      %v332 = vadd.f32 %v318, %v330
      %v333 = vmax.f32 %v332, 0.0
      %v334 = vld [vmem:[%s0] sm:$0xf]
      %v337 = vunpack.c.l.s4 1983009808
      %v338 = vunpack.c.0.s8 %v337
      %v339 = vlaneseq
      %v340 = vshrl.u32 %v339, 7
      %v341 = vsub.s32 %v338, %v340
      %v342 = vrot.slane %v333, %v341
      %v343 = vcombine.high %v342, %v342
      %v346 = vpack.c.bf16 %v342, %v342
      %v347 = vpack.c.bf16 %v343, %v343
      %v348 = vld [vmem:[%s2] sm:$0xff]
      %350 = vset.pattern.permute.xlu0 0
      %351 = vperm.xlu0 %350, %v348
      %v352 = vpop.permute.xlu0 %351
      %vm354 = vcmask 15360
      %v356 = vsel %vm354, %v334, 0
      %vm358 = vcmask 1040384
      %v360 = vsel %vm358, %v346, 0
      %v363 = vsel %vm358, %v347, 0
      %365 = vmatprep.subr.bf16.mxu0 %v363
      %366 = vmatpush1.bf16.msra.mxu0 %v360
      %367 = vmatprep.subr.bf16.mxu0 0
      %368 = vmatpush1.bf16.msra.mxu0 0
      %369 = vmatprep.subr.bf16.mxu0 0
      %370 = vmatpush1.bf16.msra.mxu0 0
      %371 = vmatprep.subr.bf16.mxu0 0
      %372 = vmatpush1.bf16.msra.mxu0 0
      %373 = vmatprep.subr.bf16.mxu0 0
      %374 = vmatpush1.bf16.msra.mxu0 0
      %375 = vmatprep.subr.bf16.mxu0 0
      %376 = vmatpush1.bf16.msra.mxu0 0
      %377 = vmatprep.subr.bf16.mxu0 0
      %378 = vmatpush1.bf16.msra.mxu0 0
      %379 = vmatprep.subr.bf16.mxu0 0
      %380 = vmatpush1.bf16.msra.mxu0 0
      %381 = vmatprep.subr.bf16.mxu0 0
      %382 = vmatpush1.bf16.msra.mxu0 0
      %383 = vmatprep.subr.bf16.mxu0 0
      %384 = vmatpush1.bf16.msra.mxu0 0
      %385 = vmatprep.subr.bf16.mxu0 0
      %386 = vmatpush1.bf16.msra.mxu0 0
      %387 = vmatprep.subr.bf16.mxu0 0
      %388 = vmatpush1.bf16.msra.mxu0 0
      %389 = vmatprep.subr.bf16.mxu0 0
      %390 = vmatpush1.bf16.msra.mxu0 0
      %391 = vmatprep.subr.bf16.mxu0 0
      %392 = vmatpush1.bf16.msra.mxu0 0
      %393 = vmatprep.subr.bf16.mxu0 0
      %394 = vmatpush1.bf16.msra.mxu0 0
      %395 = vmatprep.subr.bf16.mxu0 0
      %396 = vmatpush1.bf16.msra.mxu0 0
      %397 = vmatprep.mubr.bf16.mxu0 0
      %398 = vmatmul.mubr.bf16.gmra.mrb[0].mxu0 %v356
      %v399 = vpop.f32.mrb[0].mxu0
      %v400 = vadd.f32 %v352, %v399
      %v401 = vpop.f32.mrb[0].mxu0
      %v402 = vadd.f32 %v352, %v401
      %v403 = vpop.f32.mrb[0].mxu0
      %v404 = vpop.f32.mrb[0].mxu0
      %405 = vdwg.mxu0
      %406 = vst [vmem:[%s293] sm:$0xff] %v400
      %407 = vst [vmem:[%s293 + $0x8] sm:$0xff] %v402
      %v408 = vlaneseq
      %v409 = vand.u32 %v408, 127
      %v410 = vadd.s32 %v409, 128
      %s411 = smul.u32 %s19, 256
      %v412 = vstv %s411
      %v413 = vadd.s32 %v409, %v412
      %v414 = vadd.s32 %v410, %v412
      %vm415 = vcmp.lt.s32.totalorder %v413, 512
      %vm416 = vcmp.lt.s32.totalorder %v414, 512
      %v417 = vsel %vm415, %v400, 0.0
      %v418 = vsel %vm416, %v402, 0.0
      %v419 = vadd.f32 %v417, %v418
      %420 = vadd.xlane.f32.xlu0 %v419
      %v421 = vpop.xlane.xlu0 %420
      %vm422 = vcmask 7168
      %423 = vst.msk [vmem:[%s298] sm:$0xff] %vm422, %v421
      %v424 = vmul.f32 %v417, %v417
      %v425 = vmul.f32 %v418, %v418
      %v426 = vadd.f32 %v424, %v425
      %427 = vadd.xlane.f32.xlu0 %v426
      %v428 = vpop.xlane.xlu0 %427
      %429 = vst.msk [vmem:[%s302] sm:$0xff] %vm422, %v428
      %s430 = smul.u32 2, %s19
      %p431 = scmp.lt.s32.totalorder %s430, 3
      %s432 = scalar_select %p431, %s430, 3
      %s433 = smul.addr %s432, 8
      %s434 = scalar_lea.vmem %s5, %s433
      %p435 = scmp.lt.s32.totalorder %s19, 1
      %s436 = scalar_select %p435, %s19, 1
      %s437 = smul.addr %s436, 8
      %s438 = scalar_lea.vmem %s6, %s437
      %p439 = scmp.lt.s32.totalorder %s19, 1
      %s440 = scalar_select %p439, %s19, 1
      %s441 = smul.addr %s440, 8
      %s442 = scalar_lea.vmem %s7, %s441
      // Predicated region
      $region41: #{decoder_forward.13} parent=39 // pred_check
        %p443 = pneg %p147
      $region42: #{decoder_forward.13} parent=39 // pred_check_branch
        %445 = sbr.rel (%p443) target = $region44
      $region43: #{decoder_forward.13} parent=39 // pred_region
        %s446 = smul.u32 2, %s19
      $region44: #{decoder_forward.13} parent=39 // pred_fallthru
        _
      // Predicated region
      $region45: #{decoder_forward.13} parent=39 // pred_check
        %p447 = pneg %p173
      $region46: #{decoder_forward.13} parent=39 // pred_check_branch
        %449 = sbr.rel (%p447) target = $region48
      $region47: #{decoder_forward.13} parent=39 // pred_region
        _
      $region48: #{decoder_forward.13} parent=39 // pred_fallthru
        _
      // Predicated region
      $region49: #{decoder_forward.13} parent=39 // pred_check
        %p450 = pneg %p199
      $region50: #{decoder_forward.13} parent=39 // pred_check_branch
        %452 = sbr.rel (%p450) target = $region52
      $region51: #{decoder_forward.13} parent=39 // pred_region
        _
      $region52: #{decoder_forward.13} parent=39 // pred_fallthru
        _
    $region40: #{decoder_forward.13} parent=5 // pred_fallthru
      _
    %p453 = scmp.le.s32.totalorder 2, %s14
    // Predicated region
    $region53: #{decoder_forward.13} parent=5 // pred_check
      %p454 = pneg %p453
    $region54: #{decoder_forward.13} parent=5 // pred_check_branch
      %456 = sbr.rel (%p454) target = $region56
    $region55: #{decoder_forward.13} parent=5 // pred_region
      %s457 = ssub.s32 %s14, 2
      // Predicated region
      $region57: #{decoder_forward.13} parent=55 // pred_check
        %p458 = pneg %p153
      $region58: #{decoder_forward.13} parent=55 // pred_check_branch
        %460 = sbr.rel (%p458) target = $region60
      $region59: #{decoder_forward.13} parent=55 // pred_region
        %s461 = smul.u32 2, %s20
        %p462 = scmp.lt.s32.totalorder %s461, 3
        %s463 = scalar_select %p462, %s461, 3
        %s464 = smul.addr %s463, 8
        %s465 = scalar_lea.vmem %s5, %s464
      $region60: #{decoder_forward.13} parent=55 // pred_fallthru
        _
      // Predicated region
      $region61: #{decoder_forward.13} parent=55 // pred_check
        %p466 = pneg %p179
      $region62: #{decoder_forward.13} parent=55 // pred_check_branch
        %468 = sbr.rel (%p466) target = $region64
      $region63: #{decoder_forward.13} parent=55 // pred_region
        %p469 = scmp.lt.s32.totalorder %s20, 1
        %s470 = scalar_select %p469, %s20, 1
        %s471 = smul.addr %s470, 8
        %s472 = scalar_lea.vmem %s6, %s471
      $region64: #{decoder_forward.13} parent=55 // pred_fallthru
        _
      // Predicated region
      $region65: #{decoder_forward.13} parent=55 // pred_check
        %p473 = pneg %p205
      $region66: #{decoder_forward.13} parent=55 // pred_check_branch
        %475 = sbr.rel (%p473) target = $region68
      $region67: #{decoder_forward.13} parent=55 // pred_region
        %p476 = scmp.lt.s32.totalorder %s20, 1
        %s477 = scalar_select %p476, %s20, 1
        %s478 = smul.addr %s477, 8
        %s479 = scalar_lea.vmem %s7, %s478
      $region68: #{decoder_forward.13} parent=55 // pred_fallthru
        _
    $region56: #{decoder_forward.13} parent=5 // pred_fallthru
      _
  $region6: #{decoder_forward.13} parent=0 // loop_footer
    %s18 = sadd.s32 1, %s14
  $region7: #{decoder_forward.13} parent=0 // loop_footer_branch
    %13 = sbr.rel target = $region3
  $region8: #{decoder_forward.13} parent=0 // loop_exit
    _

// kernel: decoder_forward.14
$region0: #{decoder_forward.14}
  #allocation0 [shape = 'u32[]', space=smem, size = 0x4, offset = 0x4, fixed_abs, tag = 'smem constant byte address 0x4 - core index']
  #allocation1 [shape = 'u32[144,128]{1,0:T(1,128)}', space=vmem, size = 0x12000, scoped, tag = 'internal scratch']
  %s0 = inlined_call_operand.vmem [shape: f32[8,512], index: 0, kind: input, shape index: {}]
  %s1 = inlined_call_operand.vmem [shape: f32[8,1], index: 1, kind: input, shape index: {}]
  %s2 = inlined_call_operand.vmem [shape: f32[8,1], index: 2, kind: input, shape index: {}]
  %s3 = inlined_call_operand.vmem [shape: f32[8,512], index: 3, kind: input, shape index: {}]
  %s4 = inlined_call_operand.vmem [shape: f32[8,512], index: 4, kind: output, shape index: {}]
  %s5 = sld [smem:[#allocation0]]
  $region49: #{decoder_forward.14} parent=0
    _
  %s7 = ssub.s32 1, %s5
  %s8 = scalar_select 0, %s7, %s5
  loop: start=0, step=1, limit=4
  $region2: #{decoder_forward.14} parent=0 // loop_pre_header
    _
  $region3: #{decoder_forward.14} parent=0 // loop_header
    %s10 = sphi 0, %s14
    %p11 = scmp.ge.s32.totalorder %s10, 4
    %s20 = sphi 0, %s22
    %s23 = sphi 0, %s20
    %s24 = sphi 0, %s23
    %s40 = sphi 0, %s24
    %s44 = sphi 0, %s44
    %s46 = sphi 0, %s44
    %s47 = sphi 0, %s46
    %s61 = sphi 0, %s47
    %s65 = sphi 0, %s65
    %s67 = sphi 0, %s65
    %s68 = sphi 0, %s67
    %s82 = sphi 0, %s68
    %s88 = sphi 0, %s90
    %s91 = sphi 0, %s88
    %s92 = sphi 0, %s91
    %s108 = sphi 0, %s92
    %s114 = sphi 0, %s116
    %s117 = sphi 0, %s114
    %s118 = sphi 0, %s117
    %s134 = sphi 0, %s118
  $region4: #{decoder_forward.14} parent=0 // loop_header_branch
    %13 = sbr.rel (%p11) target = $region8
  $region5: #{decoder_forward.14} parent=0 // loop_body
    %s15 = ssub.s32 %s10, 1
    %s16 = ssub.s32 %s10, 2
    %s17 = sadd.s32 %s10, 1
    %s18 = ssub.s32 %s10, %s17
    %p19 = scmp.eq.s32.totalorder %s18, 0
    %s21 = sadd.s32 %s20, 1
    %s22 = scalar_select %p19, %s20, %s21
    %p25 = pneg %p19
    %p26 = scmp.eq.s32.totalorder %s10, 1
    %p27 = por %p25, %p26
    %p28 = scmp.ne.s32.totalorder %s20, %s23
    %p29 = scmp.eq.s32.totalorder %s10, 0
    %p30 = por %p28, %p29
    %p31 = scmp.ne.s32.totalorder %s20, %s23
    %p32 = scmp.eq.s32.totalorder %s15, 1
    %p33 = por %p31, %p32
    %p34 = scmp.ne.s32.totalorder %s23, %s24
    %p35 = scmp.eq.s32.totalorder %s15, 0
    %p36 = por %p34, %p35
    %p37 = scmp.ne.s32.totalorder %s23, %s24
    %p38 = scmp.eq.s32.totalorder %s16, 1
    %p39 = por %p37, %p38
    %p41 = scmp.ne.s32.totalorder %s24, %s40
    %p42 = scmp.eq.s32.totalorder %s16, 0
    %p43 = por %p41, %p42
    %s45 = sadd.s32 %s44, 1
    %p48 = scmp.eq.s32.totalorder %s10, 1
    %p49 = scmp.ne.s32.totalorder %s44, %s46
    %p50 = scmp.eq.s32.totalorder %s10, 0
    %p51 = por %p49, %p50
    %p52 = scmp.ne.s32.totalorder %s44, %s46
    %p53 = scmp.eq.s32.totalorder %s15, 1
    %p54 = por %p52, %p53
    %p55 = scmp.ne.s32.totalorder %s46, %s47
    %p56 = scmp.eq.s32.totalorder %s15, 0
    %p57 = por %p55, %p56
    %p58 = scmp.ne.s32.totalorder %s46, %s47
    %p59 = scmp.eq.s32.totalorder %s16, 1
    %p60 = por %p58, %p59
    %p62 = scmp.ne.s32.totalorder %s47, %s61
    %p63 = scmp.eq.s32.totalorder %s16, 0
    %p64 = por %p62, %p63
    %s66 = sadd.s32 %s65, 1
    %p69 = scmp.eq.s32.totalorder %s10, 1
    %p70 = scmp.ne.s32.totalorder %s65, %s67
    %p71 = scmp.eq.s32.totalorder %s10, 0
    %p72 = por %p70, %p71
    %p73 = scmp.ne.s32.totalorder %s65, %s67
    %p74 = scmp.eq.s32.totalorder %s15, 1
    %p75 = por %p73, %p74
    %p76 = scmp.ne.s32.totalorder %s67, %s68
    %p77 = scmp.eq.s32.totalorder %s15, 0
    %p78 = por %p76, %p77
    %p79 = scmp.ne.s32.totalorder %s67, %s68
    %p80 = scmp.eq.s32.totalorder %s16, 1
    %p81 = por %p79, %p80
    %p83 = scmp.ne.s32.totalorder %s68, %s82
    %p84 = scmp.eq.s32.totalorder %s16, 0
    %p85 = por %p83, %p84
    %s86 = ssub.s32 %s10, %s17
    %p87 = scmp.eq.s32.totalorder %s86, 0
    %s89 = sadd.s32 %s88, 1
    %s90 = scalar_select %p87, %s88, %s89
    %p93 = pneg %p87
    %p94 = scmp.eq.s32.totalorder %s10, 1
    %p95 = por %p93, %p94
    %p96 = scmp.ne.s32.totalorder %s88, %s91
    %p97 = scmp.eq.s32.totalorder %s10, 0
    %p98 = por %p96, %p97
    %p99 = scmp.ne.s32.totalorder %s88, %s91
    %p100 = scmp.eq.s32.totalorder %s15, 1
    %p101 = por %p99, %p100
    %p102 = scmp.ne.s32.totalorder %s91, %s92
    %p103 = scmp.eq.s32.totalorder %s15, 0
    %p104 = por %p102, %p103
    %p105 = scmp.ne.s32.totalorder %s91, %s92
    %p106 = scmp.eq.s32.totalorder %s16, 1
    %p107 = por %p105, %p106
    %p109 = scmp.ne.s32.totalorder %s92, %s108
    %p110 = scmp.eq.s32.totalorder %s16, 0
    %p111 = por %p109, %p110
    %s112 = ssub.s32 %s10, %s17
    %p113 = scmp.eq.s32.totalorder %s112, 0
    %s115 = sadd.s32 %s114, 1
    %s116 = scalar_select %p113, %s114, %s115
    %p119 = pneg %p113
    %p120 = scmp.eq.s32.totalorder %s10, 1
    %p121 = por %p119, %p120
    %p122 = scmp.ne.s32.totalorder %s114, %s117
    %p123 = scmp.eq.s32.totalorder %s10, 0
    %p124 = por %p122, %p123
    %p125 = scmp.ne.s32.totalorder %s114, %s117
    %p126 = scmp.eq.s32.totalorder %s15, 1
    %p127 = por %p125, %p126
    %p128 = scmp.ne.s32.totalorder %s117, %s118
    %p129 = scmp.eq.s32.totalorder %s15, 0
    %p130 = por %p128, %p129
    %p131 = scmp.ne.s32.totalorder %s117, %s118
    %p132 = scmp.eq.s32.totalorder %s16, 1
    %p133 = por %p131, %p132
    %p135 = scmp.ne.s32.totalorder %s118, %s134
    %p136 = scmp.eq.s32.totalorder %s16, 0
    %p137 = por %p135, %p136
    %p138 = scmp.le.s32.totalorder 1, %s10
    %p139 = scmp.lt.s32.totalorder %s10, 3
    %p140 = pnand %p138, %p139
    %p141 = pneg %p140
    // Predicated region
    $region9: #{decoder_forward.14} parent=5 // pred_check
      _
    $region10: #{decoder_forward.14} parent=5 // pred_check_branch
      %143 = sbr.rel (%p140) target = $region12
    $region11: #{decoder_forward.14} parent=5 // pred_region
      %s144 = ssub.s32 %s10, 1
      // Predicated region
      $region13: #{decoder_forward.14} parent=11 // pred_check
        %p145 = pneg %p57
      $region14: #{decoder_forward.14} parent=11 // pred_check_branch
        %147 = sbr.rel (%p145) target = $region16
      $region15: #{decoder_forward.14} parent=11 // pred_region
        _
      $region16: #{decoder_forward.14} parent=11 // pred_fallthru
        _
      // Predicated region
      $region17: #{decoder_forward.14} parent=11 // pred_check
        %p148 = pneg %p78
      $region18: #{decoder_forward.14} parent=11 // pred_check_branch
        %150 = sbr.rel (%p148) target = $region20
      $region19: #{decoder_forward.14} parent=11 // pred_region
        _
      $region20: #{decoder_forward.14} parent=11 // pred_fallthru
        _
    $region12: #{decoder_forward.14} parent=5 // pred_fallthru
      _
    %p151 = scmp.lt.s32.totalorder %s10, 2
    // Predicated region
    $region21: #{decoder_forward.14} parent=5 // pred_check
      %p152 = pneg %p151
    $region22: #{decoder_forward.14} parent=5 // pred_check_branch
      %154 = sbr.rel (%p152) target = $region24
    $region23: #{decoder_forward.14} parent=5 // pred_region
      // Predicated region
      $region25: #{decoder_forward.14} parent=23 // pred_check
        %p155 = pneg %p30
      $region26: #{decoder_forward.14} parent=23 // pred_check_branch
        %157 = sbr.rel (%p155) target = $region28
      $region27: #{decoder_forward.14} parent=23 // pred_region
        %s158 = smul.u32 2, %s10
        %p159 = scmp.lt.s32.totalorder %s158, 3
        %s160 = scalar_select %p159, %s158, 3
        %s161 = smul.addr %s160, 8
        %s162 = scalar_lea.vmem %s0, %s161
        %s163 = smul.u32 2, %s10
      $region28: #{decoder_forward.14} parent=23 // pred_fallthru
        _
      // Predicated region
      $region29: #{decoder_forward.14} parent=23 // pred_check
        %p164 = pneg %p98
      $region30: #{decoder_forward.14} parent=23 // pred_check_branch
        %166 = sbr.rel (%p164) target = $region32
      $region31: #{decoder_forward.14} parent=23 // pred_region
        %s167 = smul.u32 2, %s10
        %p168 = scmp.lt.s32.totalorder %s167, 3
        %s169 = scalar_select %p168, %s167, 3
        %s170 = smul.addr %s169, 8
        %s171 = scalar_lea.vmem %s3, %s170
        %s172 = smul.u32 2, %s10
      $region32: #{decoder_forward.14} parent=23 // pred_fallthru
        _
    $region24: #{decoder_forward.14} parent=5 // pred_fallthru
      _
    %p173 = scmp.le.s32.totalorder 1, %s10
    %p174 = scmp.lt.s32.totalorder %s10, 3
    %p175 = pnand %p173, %p174
    %p176 = pneg %p175
    // Predicated region
    $region33: #{decoder_forward.14} parent=5 // pred_check
      _
    $region34: #{decoder_forward.14} parent=5 // pred_check_branch
      %178 = sbr.rel (%p175) target = $region36
    $region35: #{decoder_forward.14} parent=5 // pred_region
      %s179 = ssub.s32 %s10, 1
      %s180 = smul.u32 2, %s15
      %p181 = scmp.lt.s32.totalorder %s180, 3
      %s182 = scalar_select %p181, %s180, 3
      %s183 = smul.addr %s182, 8
      %s184 = scalar_lea.vmem %s0, %s183
      %p185 = pneg %p36
      %p186 = pneg %p33
      %p187 = pneg %p57
      %p188 = pneg %p54
      %p189 = pneg %p78
      %p190 = pneg %p75
      %s191 = smul.u32 2, %s15
      %p192 = scmp.lt.s32.totalorder %s191, 3
      %s193 = scalar_select %p192, %s191, 3
      %s194 = smul.addr %s193, 8
      %s195 = scalar_lea.vmem %s3, %s194
      %p196 = pneg %p104
      %p197 = pneg %p101
      %p198 = pneg %p130
      %p199 = pneg %p127
      %s200 = smul.u32 2, %s15
      %p201 = scmp.lt.s32.totalorder %s200, 3
      %s202 = scalar_select %p201, %s200, 3
      %s203 = smul.addr %s202, 8
      %s204 = scalar_lea.vmem %s4, %s203
      %s205 = smul.u32 2, %s15
      %p206 = scmp.lt.s32.totalorder %s205, 3
      %s207 = scalar_select %p206, %s205, 3
      %s208 = smul.addr %s207, 8
      %s209 = scalar_lea.vmem %s0, %s208
      %s210 = smul.u32 2, %s15
      %s211 = smul.u32 2, %s15
      %p212 = scmp.lt.s32.totalorder %s211, 3
      %s213 = scalar_select %p212, %s211, 3
      %s214 = smul.addr %s213, 8
      %s215 = scalar_lea.vmem %s3, %s214
      %s216 = smul.u32 2, %s15
      %s217 = smul.u32 2, %s15
      %p218 = scmp.lt.s32.totalorder %s217, 3
      %s219 = scalar_select %p218, %s217, 3
      %s220 = smul.addr %s219, 8
      %s221 = scalar_lea.vmem %s4, %s220
      %s222 = smul.u32 2, %s15
      %v223 = vld [vmem:[%s209] sm:$0xff]
      %v224 = vld [vmem:[%s209 + $0x8] sm:$0xff]
      %v225 = vld [vmem:[%s1] sm:$0xff]
      %227 = vset.pattern.permute.xlu0 0
      %228 = vperm.xlu0 %227, %v225
      %v229 = vpop.permute.xlu0 %228
      %v231 = vmul.f32 %v223, %v229
      %v232 = vmul.f32 %v224, %v229
      %v233 = vld [vmem:[%s2] sm:$0xff]
      %235 = vset.pattern.permute.xlu0 0
      %236 = vperm.xlu0 %235, %v233
      %v237 = vpop.permute.xlu0 %236
      %v239 = vadd.f32 %v231, %v237
      %v240 = vadd.f32 %v232, %v237
      %v241 = vld [vmem:[%s215] sm:$0xff]
      %v242 = vld [vmem:[%s215 + $0x8] sm:$0xff]
      %v243 = vadd.f32 %v239, %v241
      %v244 = vadd.f32 %v240, %v242
      %245 = vst [vmem:[%s221] sm:$0xff] %v243
      %246 = vst [vmem:[%s221 + $0x8] sm:$0xff] %v244
      %s247 = smul.u32 2, %s15
      %p248 = scmp.lt.s32.totalorder %s247, 3
      %s249 = scalar_select %p248, %s247, 3
      %s250 = smul.addr %s249, 8
      %s251 = scalar_lea.vmem %s4, %s250
      // Predicated region
      $region37: #{decoder_forward.14} parent=35 // pred_check
        %p252 = pneg %p127
      $region38: #{decoder_forward.14} parent=35 // pred_check_branch
        %254 = sbr.rel (%p252) target = $region40
      $region39: #{decoder_forward.14} parent=35 // pred_region
        %s255 = smul.u32 2, %s15
      $region40: #{decoder_forward.14} parent=35 // pred_fallthru
        _
    $region36: #{decoder_forward.14} parent=5 // pred_fallthru
      _
    %p256 = scmp.le.s32.totalorder 2, %s10
    // Predicated region
    $region41: #{decoder_forward.14} parent=5 // pred_check
      %p257 = pneg %p256
    $region42: #{decoder_forward.14} parent=5 // pred_check_branch
      %259 = sbr.rel (%p257) target = $region44
    $region43: #{decoder_forward.14} parent=5 // pred_region
      %s260 = ssub.s32 %s10, 2
      // Predicated region
      $region45: #{decoder_forward.14} parent=43 // pred_check
        %p261 = pneg %p133
      $region46: #{decoder_forward.14} parent=43 // pred_check_branch
        %263 = sbr.rel (%p261) target = $region48
      $region47: #{decoder_forward.14} parent=43 // pred_region
        %s264 = smul.u32 2, %s16
        %p265 = scmp.lt.s32.totalorder %s264, 3
        %s266 = scalar_select %p265, %s264, 3
        %s267 = smul.addr %s266, 8
        %s268 = scalar_lea.vmem %s4, %s267
      $region48: #{decoder_forward.14} parent=43 // pred_fallthru
        _
    $region44: #{decoder_forward.14} parent=5 // pred_fallthru
      _
  $region6: #{decoder_forward.14} parent=0 // loop_footer
    %s14 = sadd.s32 1, %s10
  $region7: #{decoder_forward.14} parent=0 // loop_footer_branch
    %9 = sbr.rel target = $region3
  $region8: #{decoder_forward.14} parent=0 // loop_exit
    _

// kernel: decoder_forward.15
$region0: #{decoder_forward.15}
  #allocation0 [shape = 'u32[]', space=smem, size = 0x4, offset = 0x4, fixed_abs, tag = 'smem constant byte address 0x4 - core index']
  #allocation1 [shape = 'u32[144,128]{1,0:T(1,128)}', space=vmem, size = 0x12000, scoped, tag = 'internal scratch']
  %s0 = inlined_call_operand.vmem [shape: bf16[2,72], index: 0, kind: input, shape index: {}]
  %s1 = inlined_call_operand.vmem [shape: bf16[72,512], index: 1, kind: input, shape index: {}]
  %s2 = inlined_call_operand.vmem [shape: f32[2,1], index: 2, kind: input, shape index: {}]
  %s3 = inlined_call_operand.vmem [shape: f32[2,512], index: 3, kind: output, shape index: {0}]
  %s4 = inlined_call_operand.vmem [shape: f32[2,2,1], index: 4, kind: output, shape index: {1}]
  %s5 = inlined_call_operand.vmem [shape: f32[2,2,1], index: 5, kind: output, shape index: {2}]
  %6 = xla_tuple %s3, %s4, %s5
  %s7 = sld [smem:[#allocation0]]
  $region99: #{decoder_forward.15} parent=0
    _
  %s9 = ssub.s32 1, %s7
  %s10 = scalar_select 0, %s9, %s7
  $region1: #{decoder_forward.15} parent=0
    #allocation2 [shape = 'u8[73728]{0}', space=vmem, size = 0x12000, scoped, tag = 'input window, operand 1']
    loop: start=0, step=1, limit=4
    $region2: #{decoder_forward.15} parent=1 // loop_pre_header
      _
    $region3: #{decoder_forward.15} parent=1 // loop_header
      %s12 = sphi 0, %s16
      %p13 = scmp.ge.s32.totalorder %s12, 4
      %s20 = sphi 0, %s20
      %s22 = sphi 0, %s20
      %s23 = sphi 0, %s22
      %s37 = sphi 0, %s23
      %s43 = sphi 0, %s45
      %s46 = sphi 0, %s43
      %s47 = sphi 0, %s46
      %s63 = sphi 0, %s47
      %s67 = sphi 0, %s67
      %s69 = sphi 0, %s67
      %s70 = sphi 0, %s69
      %s84 = sphi 0, %s70
      %s90 = sphi 0, %s92
      %s93 = sphi 0, %s90
      %s94 = sphi 0, %s93
      %s110 = sphi 0, %s94
      %s116 = sphi 0, %s118
      %s119 = sphi 0, %s116
      %s120 = sphi 0, %s119
      %s136 = sphi 0, %s120
      %s142 = sphi 0, %s144
      %s145 = sphi 0, %s142
      %s146 = sphi 0, %s145
      %s162 = sphi 0, %s146
    $region4: #{decoder_forward.15} parent=1 // loop_header_branch
      %15 = sbr.rel (%p13) target = $region8
    $region5: #{decoder_forward.15} parent=1 // loop_body
      %s17 = ssub.s32 %s12, 1
      %s18 = ssub.s32 %s12, 2
      %s19 = sadd.s32 %s12, 1
      %s21 = sadd.s32 %s20, 1
      %p24 = scmp.eq.s32.totalorder %s12, 1
      %p25 = scmp.ne.s32.totalorder %s20, %s22
      %p26 = scmp.eq.s32.totalorder %s12, 0
      %p27 = por %p25, %p26
      %p28 = scmp.ne.s32.totalorder %s20, %s22
      %p29 = scmp.eq.s32.totalorder %s17, 1
      %p30 = por %p28, %p29
      %p31 = scmp.ne.s32.totalorder %s22, %s23
      %p32 = scmp.eq.s32.totalorder %s17, 0
      %p33 = por %p31, %p32
      %p34 = scmp.ne.s32.totalorder %s22, %s23
      %p35 = scmp.eq.s32.totalorder %s18, 1
      %p36 = por %p34, %p35
      %p38 = scmp.ne.s32.totalorder %s23, %s37
      %p39 = scmp.eq.s32.totalorder %s18, 0
      %p40 = por %p38, %p39
      %s41 = ssub.s32 %s12, %s19
      %p42 = scmp.eq.s32.totalorder %s41, 0
      %s44 = sadd.s32 %s43, 1
      %s45 = scalar_select %p42, %s43, %s44
      %p48 = pneg %p42
      %p49 = scmp.eq.s32.totalorder %s12, 1
      %p50 = por %p48, %p49
      %p51 = scmp.ne.s32.totalorder %s43, %s46
      %p52 = scmp.eq.s32.totalorder %s12, 0
      %p53 = por %p51, %p52
      %p54 = scmp.ne.s32.totalorder %s43, %s46
      %p55 = scmp.eq.s32.totalorder %s17, 1
      %p56 = por %p54, %p55
      %p57 = scmp.ne.s32.totalorder %s46, %s47
      %p58 = scmp.eq.s32.totalorder %s17, 0
      %p59 = por %p57, %p58
      %p60 = scmp.ne.s32.totalorder %s46, %s47
      %p61 = scmp.eq.s32.totalorder %s18, 1
      %p62 = por %p60, %p61
      %p64 = scmp.ne.s32.totalorder %s47, %s63
      %p65 = scmp.eq.s32.totalorder %s18, 0
      %p66 = por %p64, %p65
      %s68 = sadd.s32 %s67, 1
      %p71 = scmp.eq.s32.totalorder %s12, 1
      %p72 = scmp.ne.s32.totalorder %s67, %s69
      %p73 = scmp.eq.s32.totalorder %s12, 0
      %p74 = por %p72, %p73
      %p75 = scmp.ne.s32.totalorder %s67, %s69
      %p76 = scmp.eq.s32.totalorder %s17, 1
      %p77 = por %p75, %p76
      %p78 = scmp.ne.s32.totalorder %s69, %s70
      %p79 = scmp.eq.s32.totalorder %s17, 0
      %p80 = por %p78, %p79
      %p81 = scmp.ne.s32.totalorder %s69, %s70
      %p82 = scmp.eq.s32.totalorder %s18, 1
      %p83 = por %p81, %p82
      %p85 = scmp.ne.s32.totalorder %s70, %s84
      %p86 = scmp.eq.s32.totalorder %s18, 0
      %p87 = por %p85, %p86
      %s88 = ssub.s32 %s12, %s19
      %p89 = scmp.eq.s32.totalorder %s88, 0
      %s91 = sadd.s32 %s90, 1
      %s92 = scalar_select %p89, %s90, %s91
      %p95 = pneg %p89
      %p96 = scmp.eq.s32.totalorder %s12, 1
      %p97 = por %p95, %p96
      %p98 = scmp.ne.s32.totalorder %s90, %s93
      %p99 = scmp.eq.s32.totalorder %s12, 0
      %p100 = por %p98, %p99
      %p101 = scmp.ne.s32.totalorder %s90, %s93
      %p102 = scmp.eq.s32.totalorder %s17, 1
      %p103 = por %p101, %p102
      %p104 = scmp.ne.s32.totalorder %s93, %s94
      %p105 = scmp.eq.s32.totalorder %s17, 0
      %p106 = por %p104, %p105
      %p107 = scmp.ne.s32.totalorder %s93, %s94
      %p108 = scmp.eq.s32.totalorder %s18, 1
      %p109 = por %p107, %p108
      %p111 = scmp.ne.s32.totalorder %s94, %s110
      %p112 = scmp.eq.s32.totalorder %s18, 0
      %p113 = por %p111, %p112
      %s114 = ssub.s32 %s12, %s19
      %p115 = scmp.eq.s32.totalorder %s114, 0
      %s117 = sadd.s32 %s116, 1
      %s118 = scalar_select %p115, %s116, %s117
      %p121 = pneg %p115
      %p122 = scmp.eq.s32.totalorder %s12, 1
      %p123 = por %p121, %p122
      %p124 = scmp.ne.s32.totalorder %s116, %s119
      %p125 = scmp.eq.s32.totalorder %s12, 0
      %p126 = por %p124, %p125
      %p127 = scmp.ne.s32.totalorder %s116, %s119
      %p128 = scmp.eq.s32.totalorder %s17, 1
      %p129 = por %p127, %p128
      %p130 = scmp.ne.s32.totalorder %s119, %s120
      %p131 = scmp.eq.s32.totalorder %s17, 0
      %p132 = por %p130, %p131
      %p133 = scmp.ne.s32.totalorder %s119, %s120
      %p134 = scmp.eq.s32.totalorder %s18, 1
      %p135 = por %p133, %p134
      %p137 = scmp.ne.s32.totalorder %s120, %s136
      %p138 = scmp.eq.s32.totalorder %s18, 0
      %p139 = por %p137, %p138
      %s140 = ssub.s32 %s12, %s19
      %p141 = scmp.eq.s32.totalorder %s140, 0
      %s143 = sadd.s32 %s142, 1
      %s144 = scalar_select %p141, %s142, %s143
      %p147 = pneg %p141
      %p148 = scmp.eq.s32.totalorder %s12, 1
      %p149 = por %p147, %p148
      %p150 = scmp.ne.s32.totalorder %s142, %s145
      %p151 = scmp.eq.s32.totalorder %s12, 0
      %p152 = por %p150, %p151
      %p153 = scmp.ne.s32.totalorder %s142, %s145
      %p154 = scmp.eq.s32.totalorder %s17, 1
      %p155 = por %p153, %p154
      %p156 = scmp.ne.s32.totalorder %s145, %s146
      %p157 = scmp.eq.s32.totalorder %s17, 0
      %p158 = por %p156, %p157
      %p159 = scmp.ne.s32.totalorder %s145, %s146
      %p160 = scmp.eq.s32.totalorder %s18, 1
      %p161 = por %p159, %p160
      %p163 = scmp.ne.s32.totalorder %s146, %s162
      %p164 = scmp.eq.s32.totalorder %s18, 0
      %p165 = por %p163, %p164
      %p166 = scmp.le.s32.totalorder 1, %s12
      %p167 = scmp.lt.s32.totalorder %s12, 3
      %p168 = pnand %p166, %p167
      %p169 = pneg %p168
      // Predicated region
      $region9: #{decoder_forward.15} parent=5 // pred_check
        _
      $region10: #{decoder_forward.15} parent=5 // pred_check_branch
        %171 = sbr.rel (%p168) target = $region12
      $region11: #{decoder_forward.15} parent=5 // pred_region
        %s172 = ssub.s32 %s12, 1
        // Predicated region
        $region13: #{decoder_forward.15} parent=11 // pred_check
          %p173 = pneg %p33
        $region14: #{decoder_forward.15} parent=11 // pred_check_branch
          %175 = sbr.rel (%p173) target = $region16
        $region15: #{decoder_forward.15} parent=11 // pred_region
          _
        $region16: #{decoder_forward.15} parent=11 // pred_fallthru
          _
        // Predicated region
        $region17: #{decoder_forward.15} parent=11 // pred_check
          %p176 = pneg %p80
        $region18: #{decoder_forward.15} parent=11 // pred_check_branch
          %178 = sbr.rel (%p176) target = $region20
        $region19: #{decoder_forward.15} parent=11 // pred_region
          _
        $region20: #{decoder_forward.15} parent=11 // pred_fallthru
          _
      $region12: #{decoder_forward.15} parent=5 // pred_fallthru
        _
      %p179 = scmp.lt.s32.totalorder %s12, 2
      // Predicated region
      $region21: #{decoder_forward.15} parent=5 // pred_check
        %p180 = pneg %p179
      $region22: #{decoder_forward.15} parent=5 // pred_check_branch
        %182 = sbr.rel (%p180) target = $region24
      $region23: #{decoder_forward.15} parent=5 // pred_region
        // Predicated region
        $region25: #{decoder_forward.15} parent=23 // pred_check
          %p183 = pneg %p53
        $region26: #{decoder_forward.15} parent=23 // pred_check_branch
          %185 = sbr.rel (%p183) target = $region28
        $region27: #{decoder_forward.15} parent=23 // pred_region
          %s186 = sand.u32 %s43, 1
          %s187 = sand.u32 %s43, 1
          %s188 = smul.addr %s187, 72
          %s189 = scalar_lea.vmem [#allocation2], %s188
          %s190 = smul.u32 2, %s12
          %s191 = smul.addr %s190, 4
          %s192 = scalar_lea.vmem %s1, %s191
          // Predicated region
          $region29: #{decoder_forward.15} parent=27 // pred_check
            _
          $region30: #{decoder_forward.15} parent=27 // pred_check_branch
            %194 = sbr.rel (0) target = $region32
          $region31: #{decoder_forward.15} parent=27 // pred_region
            // Predicated region
            $region33: #{decoder_forward.15} parent=31 // pred_check
              _
            $region34: #{decoder_forward.15} parent=31 // pred_check_branch
              %196 = sbr.rel (0) target = $region36
            $region35: #{decoder_forward.15} parent=31 // pred_region
              // Predicated region
              $region48: #{decoder_forward.15} parent=35 // pred_check
                _
              $region49: #{decoder_forward.15} parent=35 // pred_check_branch
                %227 = sbr.rel (0) target = $region51
              $region50: #{decoder_forward.15} parent=35 // pred_region
                loop: start=0, step=1, limit=1
                $region52: #{decoder_forward.15} parent=50 // loop_pre_header
                  _
                $region53: #{decoder_forward.15} parent=50 // loop_header
                  %s229 = sphi 0, %s233
                  %p230 = scmp.ge.s32.totalorder %s229, 1
                  %s234 = sphi %s192, %s192
                  %s235 = sphi %s189, %s189
                $region54: #{decoder_forward.15} parent=50 // loop_header_branch
                  %232 = sbr.rel (%p230) target = $region58
                $region55: #{decoder_forward.15} parent=50 // loop_body
                  %v236 = vld [vmem:[%s234] sm:$0xff]
                  %237 = vst [vmem:[%s235] sm:$0xff] %v236
                  %v238 = vld [vmem:[%s234 + $0x10] sm:$0xff]
                  %239 = vst [vmem:[%s235 + $0x8] sm:$0xff] %v238
                  %v240 = vld [vmem:[%s234 + $0x20] sm:$0xff]
                  %241 = vst [vmem:[%s235 + $0x10] sm:$0xff] %v240
                  %v242 = vld [vmem:[%s234 + $0x30] sm:$0xff]
                  %243 = vst [vmem:[%s235 + $0x18] sm:$0xff] %v242
                  %v244 = vld [vmem:[%s234 + $0x40] sm:$0xff]
                  %245 = vst [vmem:[%s235 + $0x20] sm:$0xff] %v244
                  %v246 = vld [vmem:[%s234 + $0x50] sm:$0xff]
                  %247 = vst [vmem:[%s235 + $0x28] sm:$0xff] %v246
                  %v248 = vld [vmem:[%s234 + $0x60] sm:$0xff]
                  %249 = vst [vmem:[%s235 + $0x30] sm:$0xff] %v248
                  %v250 = vld [vmem:[%s234 + $0x70] sm:$0xff]
                  %251 = vst [vmem:[%s235 + $0x38] sm:$0xff] %v250
                  %v252 = vld [vmem:[%s234 + $0x80] sm:$0xff]
                  %253 = vst [vmem:[%s235 + $0x40] sm:$0xff] %v252
                $region56: #{decoder_forward.15} parent=50 // loop_footer
                  %s233 = sadd.s32 1, %s229
                $region57: #{decoder_forward.15} parent=50 // loop_footer_branch
                  %228 = sbr.rel target = $region53
                $region58: #{decoder_forward.15} parent=50 // loop_exit
                  _
              $region51: #{decoder_forward.15} parent=35 // pred_fallthru
                _
              // Predicated region
              $region59: #{decoder_forward.15} parent=35 // pred_check
                _
              $region60: #{decoder_forward.15} parent=35 // pred_check_branch
                %255 = sbr.rel target = $region62
              $region61: #{decoder_forward.15} parent=35 // pred_region
                _
              $region62: #{decoder_forward.15} parent=35 // pred_fallthru
                _
            $region36: #{decoder_forward.15} parent=31 // pred_fallthru
              _
            // Predicated region
            $region37: #{decoder_forward.15} parent=31 // pred_check
              _
            $region38: #{decoder_forward.15} parent=31 // pred_check_branch
              %198 = sbr.rel target = $region40
            $region39: #{decoder_forward.15} parent=31 // pred_region
              loop: start=0, step=1, limit=1
              $region41: #{decoder_forward.15} parent=39 // loop_pre_header
                _
              $region42: #{decoder_forward.15} parent=39 // loop_header
                %s201 = sphi 0, %s205
                %p202 = scmp.ge.s32.totalorder %s201, 1
                %s206 = sphi %s192, %s192
                %s207 = sphi %s189, %s189
              $region43: #{decoder_forward.15} parent=39 // loop_header_branch
                %204 = sbr.rel (%p202) target = $region47
              $region44: #{decoder_forward.15} parent=39 // loop_body
                %v208 = vld [vmem:[%s206] sm:$0xff]
                %209 = vst [vmem:[%s207] sm:$0xff] %v208
                %v210 = vld [vmem:[%s206 + $0x10] sm:$0xff]
                %211 = vst [vmem:[%s207 + $0x8] sm:$0xff] %v210
                %v212 = vld [vmem:[%s206 + $0x20] sm:$0xff]
                %213 = vst [vmem:[%s207 + $0x10] sm:$0xff] %v212
                %v214 = vld [vmem:[%s206 + $0x30] sm:$0xff]
                %215 = vst [vmem:[%s207 + $0x18] sm:$0xff] %v214
                %v216 = vld [vmem:[%s206 + $0x40] sm:$0xff]
                %217 = vst [vmem:[%s207 + $0x20] sm:$0xff] %v216
                %v218 = vld [vmem:[%s206 + $0x50] sm:$0xff]
                %219 = vst [vmem:[%s207 + $0x28] sm:$0xff] %v218
                %v220 = vld [vmem:[%s206 + $0x60] sm:$0xff]
                %221 = vst [vmem:[%s207 + $0x30] sm:$0xff] %v220
                %v222 = vld [vmem:[%s206 + $0x70] sm:$0xff]
                %223 = vst [vmem:[%s207 + $0x38] sm:$0xff] %v222
                %v224 = vld [vmem:[%s206 + $0x80] sm:$0xff]
                %225 = vst [vmem:[%s207 + $0x40] sm:$0xff] %v224
              $region45: #{decoder_forward.15} parent=39 // loop_footer
                %s205 = sadd.s32 1, %s201
              $region46: #{decoder_forward.15} parent=39 // loop_footer_branch
                %200 = sbr.rel target = $region42
              $region47: #{decoder_forward.15} parent=39 // loop_exit
                _
            $region40: #{decoder_forward.15} parent=31 // pred_fallthru
              _
          $region32: #{decoder_forward.15} parent=27 // pred_fallthru
            _
          %256 = vnop
        $region28: #{decoder_forward.15} parent=23 // pred_fallthru
          _
      $region24: #{decoder_forward.15} parent=5 // pred_fallthru
        _
      %p257 = scmp.le.s32.totalorder 1, %s12
      %p258 = scmp.lt.s32.totalorder %s12, 3
      %p259 = pnand %p257, %p258
      %p260 = pneg %p259
      // Predicated region
      $region63: #{decoder_forward.15} parent=5 // pred_check
        _
      $region64: #{decoder_forward.15} parent=5 // pred_check_branch
        %262 = sbr.rel (%p259) target = $region66
      $region65: #{decoder_forward.15} parent=5 // pred_region
        %s263 = ssub.s32 %s12, 1
        %s264 = sand.u32 %s46, 1
        %s265 = sand.u32 %s46, 1
        %s266 = smul.addr %s265, 72
        %s267 = scalar_lea.vmem [#allocation2], %s266
        // Predicated region
        $region67: #{decoder_forward.15} parent=65 // pred_check
          %p268 = pneg %p59
        $region68: #{decoder_forward.15} parent=65 // pred_check_branch
          %270 = sbr.rel (%p268) target = $region70
        $region69: #{decoder_forward.15} parent=65 // pred_region
          _
        $region70: #{decoder_forward.15} parent=65 // pred_fallthru
          _
        %p271 = pneg %p33
        %p272 = pneg %p30
        %s273 = sand.u32 %s46, 1
        %s274 = sand.u32 %s46, 1
        %s275 = smul.addr %s274, 72
        %s276 = scalar_lea.vmem [#allocation2], %s275
        %p277 = pneg %p59
        %p278 = pneg %p56
        %p279 = pneg %p80
        %p280 = pneg %p77
        %p281 = pneg %p106
        %p282 = pneg %p103
        %s283 = smul.u32 2, %s17
        %p284 = scmp.lt.s32.totalorder %s283, 3
        %s285 = scalar_select %p284, %s283, 3
        %s286 = smul.addr %s285, 2
        %s287 = scalar_lea.vmem %s3, %s286
        %p288 = pneg %p132
        %p289 = pneg %p129
        %p290 = scmp.lt.s32.totalorder %s17, 1
        %s291 = scalar_select %p290, %s17, 1
        %s292 = smul.addr %s291, 2
        %s293 = scalar_lea.vmem %s4, %s292
        %p294 = pneg %p158
        %p295 = pneg %p155
        %p296 = scmp.lt.s32.totalorder %s17, 1
        %s297 = scalar_select %p296, %s17, 1
        %s298 = smul.addr %s297, 2
        %s299 = scalar_lea.vmem %s5, %s298
        %s300 = smul.u32 2, %s17
        %s301 = smul.u32 2, %s17
        %p302 = scmp.lt.s32.totalorder %s301, 3
        %s303 = scalar_select %p302, %s301, 3
        %s304 = smul.addr %s303, 2
        %s305 = scalar_lea.vmem %s3, %s304
        %s306 = smul.u32 2, %s17
        %p307 = scmp.lt.s32.totalorder %s17, 1
        %s308 = scalar_select %p307, %s17, 1
        %s309 = smul.addr %s308, 2
        %s310 = scalar_lea.vmem %s4, %s309
        %p311 = scmp.lt.s32.totalorder %s17, 1
        %s312 = scalar_select %p311, %s17, 1
        %s313 = smul.addr %s312, 2
        %s314 = scalar_lea.vmem %s5, %s313
        %v316 = vld [vmem:[%s267] sm:$0xff]
        %v317 = vld [vmem:[%s267 + $0x8] sm:$0xff]
        %v318 = vld [vmem:[%s267 + $0x10] sm:$0xff]
        %v319 = vld [vmem:[%s267 + $0x18] sm:$0xff]
        %v320 = vld [vmem:[%s267 + $0x20] sm:$0xff]
        %v321 = vld [vmem:[%s267 + $0x28] sm:$0xff]
        %v322 = vld [vmem:[%s267 + $0x30] sm:$0xff]
        %v323 = vld [vmem:[%s267 + $0x38] sm:$0xff]
        %v324 = vld [vmem:[%s267 + $0x40] sm:$0xff]
        %v325 = vld [vmem:[%s0] sm:$0x1]
        %v326 = vld [vmem:[%s2] sm:$0x3]
        %328 = vset.pattern.permute.xlu0 0
        %329 = vperm.xlu0 %328, %v326
        %v330 = vpop.permute.xlu0 %329
        %v341 = vunpack.c.l.b16 %v316
        %v342 = vunpack.c.h.b16 %v316
        %v343 = vunpack.c.l.b16 %v317
        %v344 = vunpack.c.h.b16 %v317
        %v345 = vunpack.c.l.b16 %v318
        %v346 = vunpack.c.h.b16 %v318
        %v347 = vunpack.c.l.b16 %v319
        %v348 = vunpack.c.h.b16 %v319
        %v349 = vunpack.c.l.b16 %v320
        %v350 = vunpack.c.h.b16 %v320
        %v351 = vunpack.c.l.b16 %v321
        %v352 = vunpack.c.h.b16 %v321
        %v353 = vunpack.c.l.b16 %v322
        %v354 = vunpack.c.h.b16 %v322
        %v355 = vunpack.c.l.b16 %v323
        %v356 = vunpack.c.h.b16 %v323
        %v357 = vunpack.c.l.b16 %v324
        %v358 = vunpack.c.h.b16 %v324
        %v359 = vpack.c.b16 %v343, %v341
        %v360 = vpack.c.b16 %v344, %v342
        %v361 = vpack.c.b16 %v347, %v345
        %v362 = vpack.c.b16 %v348, %v346
        %v363 = vpack.c.b16 %v351, %v349
        %v364 = vpack.c.b16 %v352, %v350
        %v365 = vpack.c.b16 %v355, %v353
        %v366 = vpack.c.b16 %v356, %v354
        %v367 = vpack.c.b16 %v357, %v357
        %v368 = vpack.c.b16 %v358, %v358
        %vm377 = vcmask 588800
        %v379 = vsel %vm377, %v325, 0
        %vm381 = vcmask 1043456
        %v383 = vsel %vm381, %v367, 0
        %v386 = vsel %vm381, %v368, 0
        %388 = vmatprep.subr.bf16.mxu0 %v360
        %389 = vmatpush1.bf16.msra.mxu0 %v359
        %390 = vmatprep.subr.bf16.mxu0 %v362
        %391 = vmatpush1.bf16.msra.mxu0 %v361
        %392 = vmatprep.subr.bf16.mxu0 %v364
        %393 = vmatpush1.bf16.msra.mxu0 %v363
        %394 = vmatprep.subr.bf16.mxu0 %v366
        %395 = vmatpush1.bf16.msra.mxu0 %v365
        %396 = vmatprep.subr.bf16.mxu0 %v386
        %397 = vmatpush1.bf16.msra.mxu0 %v383
        %398 = vmatprep.subr.bf16.mxu0 0
        %399 = vmatpush1.bf16.msra.mxu0 0
        %400 = vmatprep.subr.bf16.mxu0 0
        %401 = vmatpush1.bf16.msra.mxu0 0
        %402 = vmatprep.subr.bf16.mxu0 0
        %403 = vmatpush1.bf16.msra.mxu0 0
        %404 = vmatprep.subr.bf16.mxu0 0
        %405 = vmatpush1.bf16.msra.mxu0 0
        %406 = vmatprep.subr.bf16.mxu0 0
        %407 = vmatpush1.bf16.msra.mxu0 0
        %408 = vmatprep.subr.bf16.mxu0 0
        %409 = vmatpush1.bf16.msra.mxu0 0
        %410 = vmatprep.subr.bf16.mxu0 0
        %411 = vmatpush1.bf16.msra.mxu0 0
        %412 = vmatprep.subr.bf16.mxu0 0
        %413 = vmatpush1.bf16.msra.mxu0 0
        %414 = vmatprep.subr.bf16.mxu0 0
        %415 = vmatpush1.bf16.msra.mxu0 0
        %416 = vmatprep.subr.bf16.mxu0 0
        %417 = vmatpush1.bf16.msra.mxu0 0
        %418 = vmatprep.subr.bf16.mxu0 0
        %419 = vmatpush1.bf16.msra.mxu0 0
        %420 = vmatprep.mubr.bf16.mxu0 0
        %421 = vmatmul.mubr.bf16.gmra.mrb[0].mxu0 %v379
        %v422 = vpop.f32.mrb[0].mxu0
        %v423 = vadd.f32 %v330, %v422
        %v424 = vpop.f32.mrb[0].mxu0
        %v425 = vadd.f32 %v330, %v424
        %v426 = vpop.f32.mrb[0].mxu0
        %v427 = vpop.f32.mrb[0].mxu0
        %428 = vdwg.mxu0
        %v431 = vcombine.low %v423, %v425
        %v433 = vunpack.c.l.s4 1983009808
        %v434 = vunpack.c.0.s8 %v433
        %v435 = vlaneseq
        %v436 = vshrl.u32 %v435, 7
        %v437 = vsub.s32 %v434, %v436
        %v438 = vrot.slane %v431, %v437
        %440 = vst [vmem:[%s305] sm:$0xf] %v438
        %v441 = vlaneseq
        %v442 = vand.u32 %v441, 127
        %v443 = vadd.s32 %v442, 128
        %s444 = smul.u32 %s17, 256
        %v445 = vstv %s444
        %v446 = vadd.s32 %v442, %v445
        %v447 = vadd.s32 %v443, %v445
        %vm448 = vcmp.lt.s32.totalorder %v446, 512
        %vm449 = vcmp.lt.s32.totalorder %v447, 512
        %v450 = vsel %vm448, %v423, 0.0
        %v451 = vsel %vm449, %v425, 0.0
        %vm452 = vcmask 1041408
        %v453 = vsel %vm452, %v450, 0.0
        %v454 = vsel %vm452, %v451, 0.0
        %v455 = vadd.f32 %v453, %v454
        %456 = vadd.xlane.f32.xlu0 %v455
        %v457 = vpop.xlane.xlu0 %456
        %vm458 = vcmask 1024
        %459 = vst.msk [vmem:[%s310] sm:$0x3] %vm458, %v457
        %v460 = vmul.f32 %v450, %v450
        %v461 = vmul.f32 %v451, %v451
        %v462 = vsel %vm452, %v460, 0.0
        %v463 = vsel %vm452, %v461, 0.0
        %v464 = vadd.f32 %v462, %v463
        %465 = vadd.xlane.f32.xlu0 %v464
        %v466 = vpop.xlane.xlu0 %465
        %467 = vst.msk [vmem:[%s314] sm:$0x3] %vm458, %v466
        %s468 = smul.u32 2, %s17
        %p469 = scmp.lt.s32.totalorder %s468, 3
        %s470 = scalar_select %p469, %s468, 3
        %s471 = smul.addr %s470, 2
        %s472 = scalar_lea.vmem %s3, %s471
        %p473 = scmp.lt.s32.totalorder %s17, 1
        %s474 = scalar_select %p473, %s17, 1
        %s475 = smul.addr %s474, 2
        %s476 = scalar_lea.vmem %s4, %s475
        %p477 = scmp.lt.s32.totalorder %s17, 1
        %s478 = scalar_select %p477, %s17, 1
        %s479 = smul.addr %s478, 2
        %s480 = scalar_lea.vmem %s5, %s479
        // Predicated region
        $region71: #{decoder_forward.15} parent=65 // pred_check
          %p481 = pneg %p103
        $region72: #{decoder_forward.15} parent=65 // pred_check_branch
          %483 = sbr.rel (%p481) target = $region74
        $region73: #{decoder_forward.15} parent=65 // pred_region
          %s484 = smul.u32 2, %s17
        $region74: #{decoder_forward.15} parent=65 // pred_fallthru
          _
        // Predicated region
        $region75: #{decoder_forward.15} parent=65 // pred_check
          %p485 = pneg %p129
        $region76: #{decoder_forward.15} parent=65 // pred_check_branch
          %487 = sbr.rel (%p485) target = $region78
        $region77: #{decoder_forward.15} parent=65 // pred_region
          _
        $region78: #{decoder_forward.15} parent=65 // pred_fallthru
          _
        // Predicated region
        $region79: #{decoder_forward.15} parent=65 // pred_check
          %p488 = pneg %p155
        $region80: #{decoder_forward.15} parent=65 // pred_check_branch
          %490 = sbr.rel (%p488) target = $region82
        $region81: #{decoder_forward.15} parent=65 // pred_region
          _
        $region82: #{decoder_forward.15} parent=65 // pred_fallthru
          _
      $region66: #{decoder_forward.15} parent=5 // pred_fallthru
        _
      %p491 = scmp.le.s32.totalorder 2, %s12
      // Predicated region
      $region83: #{decoder_forward.15} parent=5 // pred_check
        %p492 = pneg %p491
      $region84: #{decoder_forward.15} parent=5 // pred_check_branch
        %494 = sbr.rel (%p492) target = $region86
      $region85: #{decoder_forward.15} parent=5 // pred_region
        %s495 = ssub.s32 %s12, 2
        // Predicated region
        $region87: #{decoder_forward.15} parent=85 // pred_check
          %p496 = pneg %p109
        $region88: #{decoder_forward.15} parent=85 // pred_check_branch
          %498 = sbr.rel (%p496) target = $region90
        $region89: #{decoder_forward.15} parent=85 // pred_region
          %s499 = smul.u32 2, %s18
          %p500 = scmp.lt.s32.totalorder %s499, 3
          %s501 = scalar_select %p500, %s499, 3
          %s502 = smul.addr %s501, 2
          %s503 = scalar_lea.vmem %s3, %s502
        $region90: #{decoder_forward.15} parent=85 // pred_fallthru
          _
        // Predicated region
        $region91: #{decoder_forward.15} parent=85 // pred_check
          %p504 = pneg %p135
        $region92: #{decoder_forward.15} parent=85 // pred_check_branch
          %506 = sbr.rel (%p504) target = $region94
        $region93: #{decoder_forward.15} parent=85 // pred_region
          %p507 = scmp.lt.s32.totalorder %s18, 1
          %s508 = scalar_select %p507, %s18, 1
          %s509 = smul.addr %s508, 2
          %s510 = scalar_lea.vmem %s4, %s509
        $region94: #{decoder_forward.15} parent=85 // pred_fallthru
          _
        // Predicated region
        $region95: #{decoder_forward.15} parent=85 // pred_check
          %p511 = pneg %p161
        $region96: #{decoder_forward.15} parent=85 // pred_check_branch
          %513 = sbr.rel (%p511) target = $region98
        $region97: #{decoder_forward.15} parent=85 // pred_region
          %p514 = scmp.lt.s32.totalorder %s18, 1
          %s515 = scalar_select %p514, %s18, 1
          %s516 = smul.addr %s515, 2
          %s517 = scalar_lea.vmem %s5, %s516
        $region98: #{decoder_forward.15} parent=85 // pred_fallthru
          _
      $region86: #{decoder_forward.15} parent=5 // pred_fallthru
        _
    $region6: #{decoder_forward.15} parent=1 // loop_footer
      %s16 = sadd.s32 1, %s12
    $region7: #{decoder_forward.15} parent=1 // loop_footer_branch
      %11 = sbr.rel target = $region3
    $region8: #{decoder_forward.15} parent=1 // loop_exit
      _

// kernel: decoder_forward.18
$region0: #{decoder_forward.18}
  #allocation0 [shape = 'u32[]', space=smem, size = 0x4, offset = 0x4, fixed_abs, tag = 'smem constant byte address 0x4 - core index']
  #allocation1 [shape = 'u32[144,128]{1,0:T(1,128)}', space=vmem, size = 0x12000, scoped, tag = 'internal scratch']
  %s0 = inlined_call_operand.vmem [shape: bf16[16,72], index: 0, kind: input, shape index: {}]
  %s1 = inlined_call_operand.vmem [shape: bf16[72,512], index: 1, kind: input, shape index: {}]
  %s2 = inlined_call_operand.vmem [shape: f32[16,1], index: 2, kind: input, shape index: {}]
  %s3 = inlined_call_operand.vmem [shape: f32[16,512], index: 3, kind: output, shape index: {0}]
  %s4 = inlined_call_operand.vmem [shape: f32[2,16,1], index: 4, kind: output, shape index: {1}]
  %s5 = inlined_call_operand.vmem [shape: f32[2,16,1], index: 5, kind: output, shape index: {2}]
  %6 = xla_tuple %s3, %s4, %s5
  %s7 = sld [smem:[#allocation0]]
  $region118: #{decoder_forward.18} parent=0
    _
  %s9 = ssub.s32 1, %s7
  %s10 = scalar_select 0, %s9, %s7
  $region1: #{decoder_forward.18} parent=0
    #allocation2 [shape = 'u8[73728]{0}', space=vmem, size = 0x12000, scoped, tag = 'input window, operand 1']
    #allocation3 [shape = 'u8[32768]{0}', space=vmem, size = 0x8000, scoped, tag = 'output window, operand 0']
    loop: start=0, step=1, limit=4
    $region2: #{decoder_forward.18} parent=1 // loop_pre_header
      _
    $region3: #{decoder_forward.18} parent=1 // loop_header
      %s12 = sphi 0, %s16
      %p13 = scmp.ge.s32.totalorder %s12, 4
      %s20 = sphi 0, %s20
      %s22 = sphi 0, %s20
      %s23 = sphi 0, %s22
      %s37 = sphi 0, %s23
      %s43 = sphi 0, %s45
      %s46 = sphi 0, %s43
      %s47 = sphi 0, %s46
      %s63 = sphi 0, %s47
      %s67 = sphi 0, %s67
      %s69 = sphi 0, %s67
      %s70 = sphi 0, %s69
      %s84 = sphi 0, %s70
      %s90 = sphi 0, %s92
      %s93 = sphi 0, %s90
      %s94 = sphi 0, %s93
      %s110 = sphi 0, %s94
      %s116 = sphi 0, %s118
      %s119 = sphi 0, %s116
      %s120 = sphi 0, %s119
      %s136 = sphi 0, %s120
      %s142 = sphi 0, %s144
      %s145 = sphi 0, %s142
      %s146 = sphi 0, %s145
      %s162 = sphi 0, %s146
    $region4: #{decoder_forward.18} parent=1 // loop_header_branch
      %15 = sbr.rel (%p13) target = $region8
    $region5: #{decoder_forward.18} parent=1 // loop_body
      %s17 = ssub.s32 %s12, 1
      %s18 = ssub.s32 %s12, 2
      %s19 = sadd.s32 %s12, 1
      %s21 = sadd.s32 %s20, 1
      %p24 = scmp.eq.s32.totalorder %s12, 1
      %p25 = scmp.ne.s32.totalorder %s20, %s22
      %p26 = scmp.eq.s32.totalorder %s12, 0
      %p27 = por %p25, %p26
      %p28 = scmp.ne.s32.totalorder %s20, %s22
      %p29 = scmp.eq.s32.totalorder %s17, 1
      %p30 = por %p28, %p29
      %p31 = scmp.ne.s32.totalorder %s22, %s23
      %p32 = scmp.eq.s32.totalorder %s17, 0
      %p33 = por %p31, %p32
      %p34 = scmp.ne.s32.totalorder %s22, %s23
      %p35 = scmp.eq.s32.totalorder %s18, 1
      %p36 = por %p34, %p35
      %p38 = scmp.ne.s32.totalorder %s23, %s37
      %p39 = scmp.eq.s32.totalorder %s18, 0
      %p40 = por %p38, %p39
      %s41 = ssub.s32 %s12, %s19
      %p42 = scmp.eq.s32.totalorder %s41, 0
      %s44 = sadd.s32 %s43, 1
      %s45 = scalar_select %p42, %s43, %s44
      %p48 = pneg %p42
      %p49 = scmp.eq.s32.totalorder %s12, 1
      %p50 = por %p48, %p49
      %p51 = scmp.ne.s32.totalorder %s43, %s46
      %p52 = scmp.eq.s32.totalorder %s12, 0
      %p53 = por %p51, %p52
      %p54 = scmp.ne.s32.totalorder %s43, %s46
      %p55 = scmp.eq.s32.totalorder %s17, 1
      %p56 = por %p54, %p55
      %p57 = scmp.ne.s32.totalorder %s46, %s47
      %p58 = scmp.eq.s32.totalorder %s17, 0
      %p59 = por %p57, %p58
      %p60 = scmp.ne.s32.totalorder %s46, %s47
      %p61 = scmp.eq.s32.totalorder %s18, 1
      %p62 = por %p60, %p61
      %p64 = scmp.ne.s32.totalorder %s47, %s63
      %p65 = scmp.eq.s32.totalorder %s18, 0
      %p66 = por %p64, %p65
      %s68 = sadd.s32 %s67, 1
      %p71 = scmp.eq.s32.totalorder %s12, 1
      %p72 = scmp.ne.s32.totalorder %s67, %s69
      %p73 = scmp.eq.s32.totalorder %s12, 0
      %p74 = por %p72, %p73
      %p75 = scmp.ne.s32.totalorder %s67, %s69
      %p76 = scmp.eq.s32.totalorder %s17, 1
      %p77 = por %p75, %p76
      %p78 = scmp.ne.s32.totalorder %s69, %s70
      %p79 = scmp.eq.s32.totalorder %s17, 0
      %p80 = por %p78, %p79
      %p81 = scmp.ne.s32.totalorder %s69, %s70
      %p82 = scmp.eq.s32.totalorder %s18, 1
      %p83 = por %p81, %p82
      %p85 = scmp.ne.s32.totalorder %s70, %s84
      %p86 = scmp.eq.s32.totalorder %s18, 0
      %p87 = por %p85, %p86
      %s88 = ssub.s32 %s12, %s19
      %p89 = scmp.eq.s32.totalorder %s88, 0
      %s91 = sadd.s32 %s90, 1
      %s92 = scalar_select %p89, %s90, %s91
      %p95 = pneg %p89
      %p96 = scmp.eq.s32.totalorder %s12, 1
      %p97 = por %p95, %p96
      %p98 = scmp.ne.s32.totalorder %s90, %s93
      %p99 = scmp.eq.s32.totalorder %s12, 0
      %p100 = por %p98, %p99
      %p101 = scmp.ne.s32.totalorder %s90, %s93
      %p102 = scmp.eq.s32.totalorder %s17, 1
      %p103 = por %p101, %p102
      %p104 = scmp.ne.s32.totalorder %s93, %s94
      %p105 = scmp.eq.s32.totalorder %s17, 0
      %p106 = por %p104, %p105
      %p107 = scmp.ne.s32.totalorder %s93, %s94
      %p108 = scmp.eq.s32.totalorder %s18, 1
      %p109 = por %p107, %p108
      %p111 = scmp.ne.s32.totalorder %s94, %s110
      %p112 = scmp.eq.s32.totalorder %s18, 0
      %p113 = por %p111, %p112
      %s114 = ssub.s32 %s12, %s19
      %p115 = scmp.eq.s32.totalorder %s114, 0
      %s117 = sadd.s32 %s116, 1
      %s118 = scalar_select %p115, %s116, %s117
      %p121 = pneg %p115
      %p122 = scmp.eq.s32.totalorder %s12, 1
      %p123 = por %p121, %p122
      %p124 = scmp.ne.s32.totalorder %s116, %s119
      %p125 = scmp.eq.s32.totalorder %s12, 0
      %p126 = por %p124, %p125
      %p127 = scmp.ne.s32.totalorder %s116, %s119
      %p128 = scmp.eq.s32.totalorder %s17, 1
      %p129 = por %p127, %p128
      %p130 = scmp.ne.s32.totalorder %s119, %s120
      %p131 = scmp.eq.s32.totalorder %s17, 0
      %p132 = por %p130, %p131
      %p133 = scmp.ne.s32.totalorder %s119, %s120
      %p134 = scmp.eq.s32.totalorder %s18, 1
      %p135 = por %p133, %p134
      %p137 = scmp.ne.s32.totalorder %s120, %s136
      %p138 = scmp.eq.s32.totalorder %s18, 0
      %p139 = por %p137, %p138
      %s140 = ssub.s32 %s12, %s19
      %p141 = scmp.eq.s32.totalorder %s140, 0
      %s143 = sadd.s32 %s142, 1
      %s144 = scalar_select %p141, %s142, %s143
      %p147 = pneg %p141
      %p148 = scmp.eq.s32.totalorder %s12, 1
      %p149 = por %p147, %p148
      %p150 = scmp.ne.s32.totalorder %s142, %s145
      %p151 = scmp.eq.s32.totalorder %s12, 0
      %p152 = por %p150, %p151
      %p153 = scmp.ne.s32.totalorder %s142, %s145
      %p154 = scmp.eq.s32.totalorder %s17, 1
      %p155 = por %p153, %p154
      %p156 = scmp.ne.s32.totalorder %s145, %s146
      %p157 = scmp.eq.s32.totalorder %s17, 0
      %p158 = por %p156, %p157
      %p159 = scmp.ne.s32.totalorder %s145, %s146
      %p160 = scmp.eq.s32.totalorder %s18, 1
      %p161 = por %p159, %p160
      %p163 = scmp.ne.s32.totalorder %s146, %s162
      %p164 = scmp.eq.s32.totalorder %s18, 0
      %p165 = por %p163, %p164
      %p166 = scmp.le.s32.totalorder 1, %s12
      %p167 = scmp.lt.s32.totalorder %s12, 3
      %p168 = pnand %p166, %p167
      %p169 = pneg %p168
      // Predicated region
      $region9: #{decoder_forward.18} parent=5 // pred_check
        _
      $region10: #{decoder_forward.18} parent=5 // pred_check_branch
        %171 = sbr.rel (%p168) target = $region12
      $region11: #{decoder_forward.18} parent=5 // pred_region
        %s172 = ssub.s32 %s12, 1
        // Predicated region
        $region13: #{decoder_forward.18} parent=11 // pred_check
          %p173 = pneg %p33
        $region14: #{decoder_forward.18} parent=11 // pred_check_branch
          %175 = sbr.rel (%p173) target = $region16
        $region15: #{decoder_forward.18} parent=11 // pred_region
          _
        $region16: #{decoder_forward.18} parent=11 // pred_fallthru
          _
        // Predicated region
        $region17: #{decoder_forward.18} parent=11 // pred_check
          %p176 = pneg %p80
        $region18: #{decoder_forward.18} parent=11 // pred_check_branch
          %178 = sbr.rel (%p176) target = $region20
        $region19: #{decoder_forward.18} parent=11 // pred_region
          _
        $region20: #{decoder_forward.18} parent=11 // pred_fallthru
          _
      $region12: #{decoder_forward.18} parent=5 // pred_fallthru
        _
      %p179 = scmp.lt.s32.totalorder %s12, 2
      // Predicated region
      $region21: #{decoder_forward.18} parent=5 // pred_check
        %p180 = pneg %p179
      $region22: #{decoder_forward.18} parent=5 // pred_check_branch
        %182 = sbr.rel (%p180) target = $region24
      $region23: #{decoder_forward.18} parent=5 // pred_region
        // Predicated region
        $region25: #{decoder_forward.18} parent=23 // pred_check
          %p183 = pneg %p53
        $region26: #{decoder_forward.18} parent=23 // pred_check_branch
          %185 = sbr.rel (%p183) target = $region28
        $region27: #{decoder_forward.18} parent=23 // pred_region
          %s186 = sand.u32 %s43, 1
          %s187 = sand.u32 %s43, 1
          %s188 = smul.addr %s187, 72
          %s189 = scalar_lea.vmem [#allocation2], %s188
          %s190 = smul.u32 2, %s12
          %s191 = smul.addr %s190, 4
          %s192 = scalar_lea.vmem %s1, %s191
          // Predicated region
          $region29: #{decoder_forward.18} parent=27 // pred_check
            _
          $region30: #{decoder_forward.18} parent=27 // pred_check_branch
            %194 = sbr.rel (0) target = $region32
          $region31: #{decoder_forward.18} parent=27 // pred_region
            // Predicated region
            $region33: #{decoder_forward.18} parent=31 // pred_check
              _
            $region34: #{decoder_forward.18} parent=31 // pred_check_branch
              %196 = sbr.rel (0) target = $region36
            $region35: #{decoder_forward.18} parent=31 // pred_region
              // Predicated region
              $region48: #{decoder_forward.18} parent=35 // pred_check
                _
              $region49: #{decoder_forward.18} parent=35 // pred_check_branch
                %227 = sbr.rel (0) target = $region51
              $region50: #{decoder_forward.18} parent=35 // pred_region
                loop: start=0, step=1, limit=1
                $region52: #{decoder_forward.18} parent=50 // loop_pre_header
                  _
                $region53: #{decoder_forward.18} parent=50 // loop_header
                  %s229 = sphi 0, %s233
                  %p230 = scmp.ge.s32.totalorder %s229, 1
                  %s234 = sphi %s192, %s192
                  %s235 = sphi %s189, %s189
                $region54: #{decoder_forward.18} parent=50 // loop_header_branch
                  %232 = sbr.rel (%p230) target = $region58
                $region55: #{decoder_forward.18} parent=50 // loop_body
                  %v236 = vld [vmem:[%s234] sm:$0xff]
                  %237 = vst [vmem:[%s235] sm:$0xff] %v236
                  %v238 = vld [vmem:[%s234 + $0x10] sm:$0xff]
                  %239 = vst [vmem:[%s235 + $0x8] sm:$0xff] %v238
                  %v240 = vld [vmem:[%s234 + $0x20] sm:$0xff]
                  %241 = vst [vmem:[%s235 + $0x10] sm:$0xff] %v240
                  %v242 = vld [vmem:[%s234 + $0x30] sm:$0xff]
                  %243 = vst [vmem:[%s235 + $0x18] sm:$0xff] %v242
                  %v244 = vld [vmem:[%s234 + $0x40] sm:$0xff]
                  %245 = vst [vmem:[%s235 + $0x20] sm:$0xff] %v244
                  %v246 = vld [vmem:[%s234 + $0x50] sm:$0xff]
                  %247 = vst [vmem:[%s235 + $0x28] sm:$0xff] %v246
                  %v248 = vld [vmem:[%s234 + $0x60] sm:$0xff]
                  %249 = vst [vmem:[%s235 + $0x30] sm:$0xff] %v248
                  %v250 = vld [vmem:[%s234 + $0x70] sm:$0xff]
                  %251 = vst [vmem:[%s235 + $0x38] sm:$0xff] %v250
                  %v252 = vld [vmem:[%s234 + $0x80] sm:$0xff]
                  %253 = vst [vmem:[%s235 + $0x40] sm:$0xff] %v252
                $region56: #{decoder_forward.18} parent=50 // loop_footer
                  %s233 = sadd.s32 1, %s229
                $region57: #{decoder_forward.18} parent=50 // loop_footer_branch
                  %228 = sbr.rel target = $region53
                $region58: #{decoder_forward.18} parent=50 // loop_exit
                  _
              $region51: #{decoder_forward.18} parent=35 // pred_fallthru
                _
              // Predicated region
              $region59: #{decoder_forward.18} parent=35 // pred_check
                _
              $region60: #{decoder_forward.18} parent=35 // pred_check_branch
                %255 = sbr.rel target = $region62
              $region61: #{decoder_forward.18} parent=35 // pred_region
                _
              $region62: #{decoder_forward.18} parent=35 // pred_fallthru
                _
            $region36: #{decoder_forward.18} parent=31 // pred_fallthru
              _
            // Predicated region
            $region37: #{decoder_forward.18} parent=31 // pred_check
              _
            $region38: #{decoder_forward.18} parent=31 // pred_check_branch
              %198 = sbr.rel target = $region40
            $region39: #{decoder_forward.18} parent=31 // pred_region
              loop: start=0, step=1, limit=1
              $region41: #{decoder_forward.18} parent=39 // loop_pre_header
                _
              $region42: #{decoder_forward.18} parent=39 // loop_header
                %s201 = sphi 0, %s205
                %p202 = scmp.ge.s32.totalorder %s201, 1
                %s206 = sphi %s192, %s192
                %s207 = sphi %s189, %s189
              $region43: #{decoder_forward.18} parent=39 // loop_header_branch
                %204 = sbr.rel (%p202) target = $region47
              $region44: #{decoder_forward.18} parent=39 // loop_body
                %v208 = vld [vmem:[%s206] sm:$0xff]
                %209 = vst [vmem:[%s207] sm:$0xff] %v208
                %v210 = vld [vmem:[%s206 + $0x10] sm:$0xff]
                %211 = vst [vmem:[%s207 + $0x8] sm:$0xff] %v210
                %v212 = vld [vmem:[%s206 + $0x20] sm:$0xff]
                %213 = vst [vmem:[%s207 + $0x10] sm:$0xff] %v212
                %v214 = vld [vmem:[%s206 + $0x30] sm:$0xff]
                %215 = vst [vmem:[%s207 + $0x18] sm:$0xff] %v214
                %v216 = vld [vmem:[%s206 + $0x40] sm:$0xff]
                %217 = vst [vmem:[%s207 + $0x20] sm:$0xff] %v216
                %v218 = vld [vmem:[%s206 + $0x50] sm:$0xff]
                %219 = vst [vmem:[%s207 + $0x28] sm:$0xff] %v218
                %v220 = vld [vmem:[%s206 + $0x60] sm:$0xff]
                %221 = vst [vmem:[%s207 + $0x30] sm:$0xff] %v220
                %v222 = vld [vmem:[%s206 + $0x70] sm:$0xff]
                %223 = vst [vmem:[%s207 + $0x38] sm:$0xff] %v222
                %v224 = vld [vmem:[%s206 + $0x80] sm:$0xff]
                %225 = vst [vmem:[%s207 + $0x40] sm:$0xff] %v224
              $region45: #{decoder_forward.18} parent=39 // loop_footer
                %s205 = sadd.s32 1, %s201
              $region46: #{decoder_forward.18} parent=39 // loop_footer_branch
                %200 = sbr.rel target = $region42
              $region47: #{decoder_forward.18} parent=39 // loop_exit
                _
            $region40: #{decoder_forward.18} parent=31 // pred_fallthru
              _
          $region32: #{decoder_forward.18} parent=27 // pred_fallthru
            _
          %256 = vnop
        $region28: #{decoder_forward.18} parent=23 // pred_fallthru
          _
      $region24: #{decoder_forward.18} parent=5 // pred_fallthru
        _
      %p257 = scmp.le.s32.totalorder 1, %s12
      %p258 = scmp.lt.s32.totalorder %s12, 3
      %p259 = pnand %p257, %p258
      %p260 = pneg %p259
      // Predicated region
      $region63: #{decoder_forward.18} parent=5 // pred_check
        _
      $region64: #{decoder_forward.18} parent=5 // pred_check_branch
        %262 = sbr.rel (%p259) target = $region66
      $region65: #{decoder_forward.18} parent=5 // pred_region
        %s263 = ssub.s32 %s12, 1
        %s264 = sand.u32 %s46, 1
        %s265 = sand.u32 %s46, 1
        %s266 = smul.addr %s265, 72
        %s267 = scalar_lea.vmem [#allocation2], %s266
        // Predicated region
        $region67: #{decoder_forward.18} parent=65 // pred_check
          %p268 = pneg %p59
        $region68: #{decoder_forward.18} parent=65 // pred_check_branch
          %270 = sbr.rel (%p268) target = $region70
        $region69: #{decoder_forward.18} parent=65 // pred_region
          _
        $region70: #{decoder_forward.18} parent=65 // pred_fallthru
          _
        %p271 = pneg %p33
        %p272 = pneg %p30
        %s273 = sand.u32 %s46, 1
        %s274 = sand.u32 %s46, 1
        %s275 = smul.addr %s274, 72
        %s276 = scalar_lea.vmem [#allocation2], %s275
        %p277 = pneg %p59
        %p278 = pneg %p56
        %p279 = pneg %p80
        %p280 = pneg %p77
        %p281 = pneg %p106
        %p282 = pneg %p103
        %s283 = sand.u32 %s93, 1
        %s284 = sand.u32 %s93, 1
        %s285 = smul.addr %s284, 32
        %s286 = scalar_lea.vmem [#allocation3], %s285
        %p287 = pneg %p132
        %p288 = pneg %p129
        %p289 = scmp.lt.s32.totalorder %s17, 1
        %s290 = scalar_select %p289, %s17, 1
        %s291 = smul.addr %s290, 2
        %s292 = smul.addr %s291, 8
        %s293 = scalar_lea.vmem %s4, %s292
        %p294 = pneg %p158
        %p295 = pneg %p155
        %p296 = scmp.lt.s32.totalorder %s17, 1
        %s297 = scalar_select %p296, %s17, 1
        %s298 = smul.addr %s297, 2
        %s299 = smul.addr %s298, 8
        %s300 = scalar_lea.vmem %s5, %s299
        %s301 = smul.u32 2, %s17
        %s302 = smul.u32 2, %s17
        %p303 = scmp.lt.s32.totalorder %s17, 1
        %s304 = scalar_select %p303, %s17, 1
        %s305 = smul.addr %s304, 2
        %s306 = smul.addr %s305, 8
        %s307 = scalar_lea.vmem %s4, %s306
        %p308 = scmp.lt.s32.totalorder %s17, 1
        %s309 = scalar_select %p308, %s17, 1
        %s310 = smul.addr %s309, 2
        %s311 = smul.addr %s310, 8
        %s312 = scalar_lea.vmem %s5, %s311
        %v314 = vld [vmem:[%s267] sm:$0xff]
        %v315 = vld [vmem:[%s267 + $0x8] sm:$0xff]
        %v316 = vld [vmem:[%s267 + $0x10] sm:$0xff]
        %v317 = vld [vmem:[%s267 + $0x18] sm:$0xff]
        %v318 = vld [vmem:[%s267 + $0x20] sm:$0xff]
        %v319 = vld [vmem:[%s267 + $0x28] sm:$0xff]
        %v320 = vld [vmem:[%s267 + $0x30] sm:$0xff]
        %v321 = vld [vmem:[%s267 + $0x38] sm:$0xff]
        %v322 = vld [vmem:[%s267 + $0x40] sm:$0xff]
        %v323 = vld [vmem:[%s0] sm:$0xf]
        %v324 = vld [vmem:[%s0 + $0x4] sm:$0xf]
        %v325 = vld [vmem:[%s2] sm:$0xff]
        %v326 = vld [vmem:[%s2 + $0x8] sm:$0xff]
        %328 = vset.pattern.permute.xlu0 0
        %329 = vperm.xlu0 %328, %v325
        %v330 = vpop.permute.xlu0 %329
        %333 = vset.pattern.permute.xlu0 0
        %334 = vperm.xlu0 %333, %v326
        %v335 = vpop.permute.xlu0 %334
        %v339 = vunpack.c.l.b16 %v323
        %v340 = vunpack.c.l.b16 %v324
        %v341 = vpack.c.b16 %v340, %v339
        %v351 = vunpack.c.l.b16 %v314
        %v352 = vunpack.c.h.b16 %v314
        %v353 = vunpack.c.l.b16 %v315
        %v354 = vunpack.c.h.b16 %v315
        %v355 = vunpack.c.l.b16 %v316
        %v356 = vunpack.c.h.b16 %v316
        %v357 = vunpack.c.l.b16 %v317
        %v358 = vunpack.c.h.b16 %v317
        %v359 = vunpack.c.l.b16 %v318
        %v360 = vunpack.c.h.b16 %v318
        %v361 = vunpack.c.l.b16 %v319
        %v362 = vunpack.c.h.b16 %v319
        %v363 = vunpack.c.l.b16 %v320
        %v364 = vunpack.c.h.b16 %v320
        %v365 = vunpack.c.l.b16 %v321
        %v366 = vunpack.c.h.b16 %v321
        %v367 = vunpack.c.l.b16 %v322
        %v368 = vunpack.c.h.b16 %v322
        %v369 = vpack.c.b16 %v353, %v351
        %v370 = vpack.c.b16 %v354, %v352
        %v371 = vpack.c.b16 %v357, %v355
        %v372 = vpack.c.b16 %v358, %v356
        %v373 = vpack.c.b16 %v361, %v359
        %v374 = vpack.c.b16 %v362, %v360
        %v375 = vpack.c.b16 %v365, %v363
        %v376 = vpack.c.b16 %v366, %v364
        %v377 = vpack.c.b16 %v367, %v367
        %v378 = vpack.c.b16 %v368, %v368
        %vm387 = vcmask 588800
        %v389 = vsel %vm387, %v341, 0
        %vm391 = vcmask 1043456
        %v393 = vsel %vm391, %v377, 0
        %v396 = vsel %vm391, %v378, 0
        %398 = vmatprep.subr.bf16.mxu0 %v370
        %399 = vmatpush1.bf16.msra.mxu0 %v369
        %400 = vmatprep.subr.bf16.mxu0 %v372
        %401 = vmatpush1.bf16.msra.mxu0 %v371
        %402 = vmatprep.subr.bf16.mxu0 %v374
        %403 = vmatpush1.bf16.msra.mxu0 %v373
        %404 = vmatprep.subr.bf16.mxu0 %v376
        %405 = vmatpush1.bf16.msra.mxu0 %v375
        %406 = vmatprep.subr.bf16.mxu0 %v396
        %407 = vmatpush1.bf16.msra.mxu0 %v393
        %408 = vmatprep.subr.bf16.mxu0 0
        %409 = vmatpush1.bf16.msra.mxu0 0
        %410 = vmatprep.subr.bf16.mxu0 0
        %411 = vmatpush1.bf16.msra.mxu0 0
        %412 = vmatprep.subr.bf16.mxu0 0
        %413 = vmatpush1.bf16.msra.mxu0 0
        %414 = vmatprep.subr.bf16.mxu0 0
        %415 = vmatpush1.bf16.msra.mxu0 0
        %416 = vmatprep.subr.bf16.mxu0 0
        %417 = vmatpush1.bf16.msra.mxu0 0
        %418 = vmatprep.subr.bf16.mxu0 0
        %419 = vmatpush1.bf16.msra.mxu0 0
        %420 = vmatprep.subr.bf16.mxu0 0
        %421 = vmatpush1.bf16.msra.mxu0 0
        %422 = vmatprep.subr.bf16.mxu0 0
        %423 = vmatpush1.bf16.msra.mxu0 0
        %424 = vmatprep.subr.bf16.mxu0 0
        %425 = vmatpush1.bf16.msra.mxu0 0
        %426 = vmatprep.subr.bf16.mxu0 0
        %427 = vmatpush1.bf16.msra.mxu0 0
        %428 = vmatprep.subr.bf16.mxu0 0
        %429 = vmatpush1.bf16.msra.mxu0 0
        %430 = vmatprep.mubr.bf16.mxu0 0
        %431 = vmatmul.mubr.bf16.gmra.mrb[0].mxu0 %v389
        %v432 = vpop.f32.mrb[0].mxu0
        %v433 = vadd.f32 %v330, %v432
        %v434 = vpop.f32.mrb[0].mxu0
        %v435 = vadd.f32 %v330, %v434
        %v436 = vpop.f32.mrb[0].mxu0
        %v437 = vadd.f32 %v335, %v436
        %v438 = vpop.f32.mrb[0].mxu0
        %v439 = vadd.f32 %v335, %v438
        %440 = vdwg.mxu0
        %441 = vst [vmem:[%s286] sm:$0xff] %v433
        %442 = vst [vmem:[%s286 + $0x8] sm:$0xff] %v435
        %443 = vst [vmem:[%s286 + $0x10] sm:$0xff] %v437
        %444 = vst [vmem:[%s286 + $0x18] sm:$0xff] %v439
        %v445 = vlaneseq
        %v446 = vand.u32 %v445, 127
        %v447 = vadd.s32 %v446, 128
        %s448 = smul.u32 %s17, 256
        %v449 = vstv %s448
        %v450 = vadd.s32 %v446, %v449
        %v451 = vadd.s32 %v447, %v449
        %vm452 = vcmp.lt.s32.totalorder %v450, 512
        %vm453 = vcmp.lt.s32.totalorder %v451, 512
        %v454 = vsel %vm452, %v433, 0.0
        %v455 = vsel %vm453, %v435, 0.0
        %v456 = vsel %vm452, %v437, 0.0
        %v457 = vsel %vm453, %v439, 0.0
        %v458 = vadd.f32 %v454, %v455
        %459 = vadd.xlane.f32.xlu0 %v458
        %v460 = vpop.xlane.xlu0 %459
        %v461 = vadd.f32 %v456, %v457
        %462 = vadd.xlane.f32.xlu0 %v461
        %v463 = vpop.xlane.xlu0 %462
        %vm464 = vcmask 7168
        %465 = vst.msk [vmem:[%s307] sm:$0xff] %vm464, %v460
        %466 = vst.msk [vmem:[%s307 + $0x8] sm:$0xff] %vm464, %v463
        %v467 = vmul.f32 %v454, %v454
        %v468 = vmul.f32 %v455, %v455
        %v469 = vmul.f32 %v456, %v456
        %v470 = vmul.f32 %v457, %v457
        %v471 = vadd.f32 %v467, %v468
        %472 = vadd.xlane.f32.xlu0 %v471
        %v473 = vpop.xlane.xlu0 %472
        %v474 = vadd.f32 %v469, %v470
        %475 = vadd.xlane.f32.xlu0 %v474
        %v476 = vpop.xlane.xlu0 %475
        %477 = vst.msk [vmem:[%s312] sm:$0xff] %vm464, %v473
        %478 = vst.msk [vmem:[%s312 + $0x8] sm:$0xff] %vm464, %v476
        %s479 = sand.u32 %s93, 1
        %s480 = sand.u32 %s93, 1
        %s481 = smul.addr %s480, 32
        %s482 = scalar_lea.vmem [#allocation3], %s481
        %p483 = scmp.lt.s32.totalorder %s17, 1
        %s484 = scalar_select %p483, %s17, 1
        %s485 = smul.addr %s484, 2
        %s486 = smul.addr %s485, 8
        %s487 = scalar_lea.vmem %s4, %s486
        %p488 = scmp.lt.s32.totalorder %s17, 1
        %s489 = scalar_select %p488, %s17, 1
        %s490 = smul.addr %s489, 2
        %s491 = smul.addr %s490, 8
        %s492 = scalar_lea.vmem %s5, %s491
        // Predicated region
        $region71: #{decoder_forward.18} parent=65 // pred_check
          %p493 = pneg %p103
        $region72: #{decoder_forward.18} parent=65 // pred_check_branch
          %495 = sbr.rel (%p493) target = $region74
        $region73: #{decoder_forward.18} parent=65 // pred_region
          %s496 = smul.u32 2, %s17
          %s497 = smul.addr %s496, 8
          %s498 = scalar_lea.vmem %s3, %s497
          // Predicated region
          $region75: #{decoder_forward.18} parent=73 // pred_check
            _
          $region76: #{decoder_forward.18} parent=73 // pred_check_branch
            %500 = sbr.rel (0) target = $region78
          $region77: #{decoder_forward.18} parent=73 // pred_region
            // Predicated region
            $region79: #{decoder_forward.18} parent=77 // pred_check
              _
            $region80: #{decoder_forward.18} parent=77 // pred_check_branch
              %502 = sbr.rel (0) target = $region82
            $region81: #{decoder_forward.18} parent=77 // pred_region
              loop: start=0, step=1, limit=1
              $region83: #{decoder_forward.18} parent=81 // loop_pre_header
                _
              $region84: #{decoder_forward.18} parent=81 // loop_header
                %s504 = sphi 0, %s508
                %p505 = scmp.ge.s32.totalorder %s504, 1
                %s509 = sphi %s482, %s482
                %s510 = sphi %s498, %s498
              $region85: #{decoder_forward.18} parent=81 // loop_header_branch
                %507 = sbr.rel (%p505) target = $region89
              $region86: #{decoder_forward.18} parent=81 // loop_body
                %v511 = vld [vmem:[%s509] sm:$0xff]
                %512 = vst [vmem:[%s510] sm:$0xff] %v511
                %v513 = vld [vmem:[%s509 + $0x8] sm:$0xff]
                %514 = vst [vmem:[%s510 + $0x8] sm:$0xff] %v513
                %v515 = vld [vmem:[%s509 + $0x10] sm:$0xff]
                %516 = vst [vmem:[%s510 + $0x20] sm:$0xff] %v515
                %v517 = vld [vmem:[%s509 + $0x18] sm:$0xff]
                %518 = vst [vmem:[%s510 + $0x28] sm:$0xff] %v517
              $region87: #{decoder_forward.18} parent=81 // loop_footer
                %s508 = sadd.s32 1, %s504
              $region88: #{decoder_forward.18} parent=81 // loop_footer_branch
                %503 = sbr.rel target = $region84
              $region89: #{decoder_forward.18} parent=81 // loop_exit
                _
            $region82: #{decoder_forward.18} parent=77 // pred_fallthru
              _
            // Predicated region
            $region90: #{decoder_forward.18} parent=77 // pred_check
              _
            $region91: #{decoder_forward.18} parent=77 // pred_check_branch
              %520 = sbr.rel target = $region93
            $region92: #{decoder_forward.18} parent=77 // pred_region
              _
            $region93: #{decoder_forward.18} parent=77 // pred_fallthru
              _
          $region78: #{decoder_forward.18} parent=73 // pred_fallthru
            _
          %521 = vnop
        $region74: #{decoder_forward.18} parent=65 // pred_fallthru
          _
        // Predicated region
        $region94: #{decoder_forward.18} parent=65 // pred_check
          %p522 = pneg %p129
        $region95: #{decoder_forward.18} parent=65 // pred_check_branch
          %524 = sbr.rel (%p522) target = $region97
        $region96: #{decoder_forward.18} parent=65 // pred_region
          _
        $region97: #{decoder_forward.18} parent=65 // pred_fallthru
          _
        // Predicated region
        $region98: #{decoder_forward.18} parent=65 // pred_check
          %p525 = pneg %p155
        $region99: #{decoder_forward.18} parent=65 // pred_check_branch
          %527 = sbr.rel (%p525) target = $region101
        $region100: #{decoder_forward.18} parent=65 // pred_region
          _
        $region101: #{decoder_forward.18} parent=65 // pred_fallthru
          _
      $region66: #{decoder_forward.18} parent=5 // pred_fallthru
        _
      %p528 = scmp.le.s32.totalorder 2, %s12
      // Predicated region
      $region102: #{decoder_forward.18} parent=5 // pred_check
        %p529 = pneg %p528
      $region103: #{decoder_forward.18} parent=5 // pred_check_branch
        %531 = sbr.rel (%p529) target = $region105
      $region104: #{decoder_forward.18} parent=5 // pred_region
        %s532 = ssub.s32 %s12, 2
        // Predicated region
        $region106: #{decoder_forward.18} parent=104 // pred_check
          %p533 = pneg %p109
        $region107: #{decoder_forward.18} parent=104 // pred_check_branch
          %535 = sbr.rel (%p533) target = $region109
        $region108: #{decoder_forward.18} parent=104 // pred_region
          %s536 = sand.u32 %s94, 1
          %s537 = sand.u32 %s94, 1
          %s538 = smul.addr %s537, 32
          %s539 = scalar_lea.vmem [#allocation3], %s538
        $region109: #{decoder_forward.18} parent=104 // pred_fallthru
          _
        // Predicated region
        $region110: #{decoder_forward.18} parent=104 // pred_check
          %p540 = pneg %p135
        $region111: #{decoder_forward.18} parent=104 // pred_check_branch
          %542 = sbr.rel (%p540) target = $region113
        $region112: #{decoder_forward.18} parent=104 // pred_region
          %p543 = scmp.lt.s32.totalorder %s18, 1
          %s544 = scalar_select %p543, %s18, 1
          %s545 = smul.addr %s544, 2
          %s546 = smul.addr %s545, 8
          %s547 = scalar_lea.vmem %s4, %s546
        $region113: #{decoder_forward.18} parent=104 // pred_fallthru
          _
        // Predicated region
        $region114: #{decoder_forward.18} parent=104 // pred_check
          %p548 = pneg %p161
        $region115: #{decoder_forward.18} parent=104 // pred_check_branch
          %550 = sbr.rel (%p548) target = $region117
        $region116: #{decoder_forward.18} parent=104 // pred_region
          %p551 = scmp.lt.s32.totalorder %s18, 1
          %s552 = scalar_select %p551, %s18, 1
          %s553 = smul.addr %s552, 2
          %s554 = smul.addr %s553, 8
          %s555 = scalar_lea.vmem %s5, %s554
        $region117: #{decoder_forward.18} parent=104 // pred_fallthru
          _
      $region105: #{decoder_forward.18} parent=5 // pred_fallthru
        _
    $region6: #{decoder_forward.18} parent=1 // loop_footer
      %s16 = sadd.s32 1, %s12
    $region7: #{decoder_forward.18} parent=1 // loop_footer_branch
      %11 = sbr.rel target = $region3
    $region8: #{decoder_forward.18} parent=1 // loop_exit
      _

// kernel: decoder_forward.19
$region0: #{decoder_forward.19}
  #allocation0 [shape = 'u32[]', space=smem, size = 0x4, offset = 0x4, fixed_abs, tag = 'smem constant byte address 0x4 - core index']
  #allocation1 [shape = 'u32[144,128]{1,0:T(1,128)}', space=vmem, size = 0x12000, scoped, tag = 'internal scratch']
  %s0 = inlined_call_operand.vmem [shape: f32[16,512], index: 0, kind: input, shape index: {}]
  %s1 = inlined_call_operand.vmem [shape: f32[16,1], index: 1, kind: input, shape index: {}]
  %s2 = inlined_call_operand.vmem [shape: f32[16,1], index: 2, kind: input, shape index: {}]
  %s3 = inlined_call_operand.vmem [shape: f32[16,512], index: 3, kind: output, shape index: {}]
  %s4 = sld [smem:[#allocation0]]
  $region87: #{decoder_forward.19} parent=0
    _
  %s6 = ssub.s32 1, %s4
  %s7 = scalar_select 0, %s6, %s4
  $region1: #{decoder_forward.19} parent=0
    #allocation2 [shape = 'u8[32768]{0}', space=vmem, size = 0x8000, scoped, tag = 'input window, operand 0']
    #allocation3 [shape = 'u8[32768]{0}', space=vmem, size = 0x8000, scoped, tag = 'output window, operand 0']
    loop: start=0, step=1, limit=4
    $region2: #{decoder_forward.19} parent=1 // loop_pre_header
      _
    $region3: #{decoder_forward.19} parent=1 // loop_header
      %s9 = sphi 0, %s13
      %p10 = scmp.ge.s32.totalorder %s9, 4
      %s19 = sphi 0, %s21
      %s22 = sphi 0, %s19
      %s23 = sphi 0, %s22
      %s39 = sphi 0, %s23
      %s43 = sphi 0, %s43
      %s45 = sphi 0, %s43
      %s46 = sphi 0, %s45
      %s60 = sphi 0, %s46
      %s64 = sphi 0, %s64
      %s66 = sphi 0, %s64
      %s67 = sphi 0, %s66
      %s81 = sphi 0, %s67
      %s87 = sphi 0, %s89
      %s90 = sphi 0, %s87
      %s91 = sphi 0, %s90
      %s107 = sphi 0, %s91
    $region4: #{decoder_forward.19} parent=1 // loop_header_branch
      %12 = sbr.rel (%p10) target = $region8
    $region5: #{decoder_forward.19} parent=1 // loop_body
      %s14 = ssub.s32 %s9, 1
      %s15 = ssub.s32 %s9, 2
      %s16 = sadd.s32 %s9, 1
      %s17 = ssub.s32 %s9, %s16
      %p18 = scmp.eq.s32.totalorder %s17, 0
      %s20 = sadd.s32 %s19, 1
      %s21 = scalar_select %p18, %s19, %s20
      %p24 = pneg %p18
      %p25 = scmp.eq.s32.totalorder %s9, 1
      %p26 = por %p24, %p25
      %p27 = scmp.ne.s32.totalorder %s19, %s22
      %p28 = scmp.eq.s32.totalorder %s9, 0
      %p29 = por %p27, %p28
      %p30 = scmp.ne.s32.totalorder %s19, %s22
      %p31 = scmp.eq.s32.totalorder %s14, 1
      %p32 = por %p30, %p31
      %p33 = scmp.ne.s32.totalorder %s22, %s23
      %p34 = scmp.eq.s32.totalorder %s14, 0
      %p35 = por %p33, %p34
      %p36 = scmp.ne.s32.totalorder %s22, %s23
      %p37 = scmp.eq.s32.totalorder %s15, 1
      %p38 = por %p36, %p37
      %p40 = scmp.ne.s32.totalorder %s23, %s39
      %p41 = scmp.eq.s32.totalorder %s15, 0
      %p42 = por %p40, %p41
      %s44 = sadd.s32 %s43, 1
      %p47 = scmp.eq.s32.totalorder %s9, 1
      %p48 = scmp.ne.s32.totalorder %s43, %s45
      %p49 = scmp.eq.s32.totalorder %s9, 0
      %p50 = por %p48, %p49
      %p51 = scmp.ne.s32.totalorder %s43, %s45
      %p52 = scmp.eq.s32.totalorder %s14, 1
      %p53 = por %p51, %p52
      %p54 = scmp.ne.s32.totalorder %s45, %s46
      %p55 = scmp.eq.s32.totalorder %s14, 0
      %p56 = por %p54, %p55
      %p57 = scmp.ne.s32.totalorder %s45, %s46
      %p58 = scmp.eq.s32.totalorder %s15, 1
      %p59 = por %p57, %p58
      %p61 = scmp.ne.s32.totalorder %s46, %s60
      %p62 = scmp.eq.s32.totalorder %s15, 0
      %p63 = por %p61, %p62
      %s65 = sadd.s32 %s64, 1
      %p68 = scmp.eq.s32.totalorder %s9, 1
      %p69 = scmp.ne.s32.totalorder %s64, %s66
      %p70 = scmp.eq.s32.totalorder %s9, 0
      %p71 = por %p69, %p70
      %p72 = scmp.ne.s32.totalorder %s64, %s66
      %p73 = scmp.eq.s32.totalorder %s14, 1
      %p74 = por %p72, %p73
      %p75 = scmp.ne.s32.totalorder %s66, %s67
      %p76 = scmp.eq.s32.totalorder %s14, 0
      %p77 = por %p75, %p76
      %p78 = scmp.ne.s32.totalorder %s66, %s67
      %p79 = scmp.eq.s32.totalorder %s15, 1
      %p80 = por %p78, %p79
      %p82 = scmp.ne.s32.totalorder %s67, %s81
      %p83 = scmp.eq.s32.totalorder %s15, 0
      %p84 = por %p82, %p83
      %s85 = ssub.s32 %s9, %s16
      %p86 = scmp.eq.s32.totalorder %s85, 0
      %s88 = sadd.s32 %s87, 1
      %s89 = scalar_select %p86, %s87, %s88
      %p92 = pneg %p86
      %p93 = scmp.eq.s32.totalorder %s9, 1
      %p94 = por %p92, %p93
      %p95 = scmp.ne.s32.totalorder %s87, %s90
      %p96 = scmp.eq.s32.totalorder %s9, 0
      %p97 = por %p95, %p96
      %p98 = scmp.ne.s32.totalorder %s87, %s90
      %p99 = scmp.eq.s32.totalorder %s14, 1
      %p100 = por %p98, %p99
      %p101 = scmp.ne.s32.totalorder %s90, %s91
      %p102 = scmp.eq.s32.totalorder %s14, 0
      %p103 = por %p101, %p102
      %p104 = scmp.ne.s32.totalorder %s90, %s91
      %p105 = scmp.eq.s32.totalorder %s15, 1
      %p106 = por %p104, %p105
      %p108 = scmp.ne.s32.totalorder %s91, %s107
      %p109 = scmp.eq.s32.totalorder %s15, 0
      %p110 = por %p108, %p109
      %p111 = scmp.le.s32.totalorder 1, %s9
      %p112 = scmp.lt.s32.totalorder %s9, 3
      %p113 = pnand %p111, %p112
      %p114 = pneg %p113
      // Predicated region
      $region9: #{decoder_forward.19} parent=5 // pred_check
        _
      $region10: #{decoder_forward.19} parent=5 // pred_check_branch
        %116 = sbr.rel (%p113) target = $region12
      $region11: #{decoder_forward.19} parent=5 // pred_region
        %s117 = ssub.s32 %s9, 1
        // Predicated region
        $region13: #{decoder_forward.19} parent=11 // pred_check
          %p118 = pneg %p56
        $region14: #{decoder_forward.19} parent=11 // pred_check_branch
          %120 = sbr.rel (%p118) target = $region16
        $region15: #{decoder_forward.19} parent=11 // pred_region
          _
        $region16: #{decoder_forward.19} parent=11 // pred_fallthru
          _
        // Predicated region
        $region17: #{decoder_forward.19} parent=11 // pred_check
          %p121 = pneg %p77
        $region18: #{decoder_forward.19} parent=11 // pred_check_branch
          %123 = sbr.rel (%p121) target = $region20
        $region19: #{decoder_forward.19} parent=11 // pred_region
          _
        $region20: #{decoder_forward.19} parent=11 // pred_fallthru
          _
      $region12: #{decoder_forward.19} parent=5 // pred_fallthru
        _
      %p124 = scmp.lt.s32.totalorder %s9, 2
      // Predicated region
      $region21: #{decoder_forward.19} parent=5 // pred_check
        %p125 = pneg %p124
      $region22: #{decoder_forward.19} parent=5 // pred_check_branch
        %127 = sbr.rel (%p125) target = $region24
      $region23: #{decoder_forward.19} parent=5 // pred_region
        // Predicated region
        $region25: #{decoder_forward.19} parent=23 // pred_check
          %p128 = pneg %p29
        $region26: #{decoder_forward.19} parent=23 // pred_check_branch
          %130 = sbr.rel (%p128) target = $region28
        $region27: #{decoder_forward.19} parent=23 // pred_region
          %s131 = sand.u32 %s19, 1
          %s132 = sand.u32 %s19, 1
          %s133 = smul.addr %s132, 32
          %s134 = scalar_lea.vmem [#allocation2], %s133
          %s135 = smul.u32 2, %s9
          %s136 = smul.addr %s135, 8
          %s137 = scalar_lea.vmem %s0, %s136
          // Predicated region
          $region29: #{decoder_forward.19} parent=27 // pred_check
            _
          $region30: #{decoder_forward.19} parent=27 // pred_check_branch
            %139 = sbr.rel (0) target = $region32
          $region31: #{decoder_forward.19} parent=27 // pred_region
            // Predicated region
            $region33: #{decoder_forward.19} parent=31 // pred_check
              _
            $region34: #{decoder_forward.19} parent=31 // pred_check_branch
              %141 = sbr.rel (0) target = $region36
            $region35: #{decoder_forward.19} parent=31 // pred_region
              loop: start=0, step=1, limit=1
              $region37: #{decoder_forward.19} parent=35 // loop_pre_header
                _
              $region38: #{decoder_forward.19} parent=35 // loop_header
                %s143 = sphi 0, %s147
                %p144 = scmp.ge.s32.totalorder %s143, 1
                %s148 = sphi %s137, %s137
                %s149 = sphi %s134, %s134
              $region39: #{decoder_forward.19} parent=35 // loop_header_branch
                %146 = sbr.rel (%p144) target = $region43
              $region40: #{decoder_forward.19} parent=35 // loop_body
                %v150 = vld [vmem:[%s148] sm:$0xff]
                %151 = vst [vmem:[%s149] sm:$0xff] %v150
                %v152 = vld [vmem:[%s148 + $0x8] sm:$0xff]
                %153 = vst [vmem:[%s149 + $0x8] sm:$0xff] %v152
                %v154 = vld [vmem:[%s148 + $0x20] sm:$0xff]
                %155 = vst [vmem:[%s149 + $0x10] sm:$0xff] %v154
                %v156 = vld [vmem:[%s148 + $0x28] sm:$0xff]
                %157 = vst [vmem:[%s149 + $0x18] sm:$0xff] %v156
              $region41: #{decoder_forward.19} parent=35 // loop_footer
                %s147 = sadd.s32 1, %s143
              $region42: #{decoder_forward.19} parent=35 // loop_footer_branch
                %142 = sbr.rel target = $region38
              $region43: #{decoder_forward.19} parent=35 // loop_exit
                _
            $region36: #{decoder_forward.19} parent=31 // pred_fallthru
              _
            // Predicated region
            $region44: #{decoder_forward.19} parent=31 // pred_check
              _
            $region45: #{decoder_forward.19} parent=31 // pred_check_branch
              %159 = sbr.rel target = $region47
            $region46: #{decoder_forward.19} parent=31 // pred_region
              _
            $region47: #{decoder_forward.19} parent=31 // pred_fallthru
              _
          $region32: #{decoder_forward.19} parent=27 // pred_fallthru
            _
          %160 = vnop
        $region28: #{decoder_forward.19} parent=23 // pred_fallthru
          _
      $region24: #{decoder_forward.19} parent=5 // pred_fallthru
        _
      %p161 = scmp.le.s32.totalorder 1, %s9
      %p162 = scmp.lt.s32.totalorder %s9, 3
      %p163 = pnand %p161, %p162
      %p164 = pneg %p163
      // Predicated region
      $region48: #{decoder_forward.19} parent=5 // pred_check
        _
      $region49: #{decoder_forward.19} parent=5 // pred_check_branch
        %166 = sbr.rel (%p163) target = $region51
      $region50: #{decoder_forward.19} parent=5 // pred_region
        %s167 = ssub.s32 %s9, 1
        %s168 = sand.u32 %s22, 1
        %s169 = sand.u32 %s22, 1
        %s170 = smul.addr %s169, 32
        %s171 = scalar_lea.vmem [#allocation2], %s170
        // Predicated region
        $region52: #{decoder_forward.19} parent=50 // pred_check
          %p172 = pneg %p35
        $region53: #{decoder_forward.19} parent=50 // pred_check_branch
          %174 = sbr.rel (%p172) target = $region55
        $region54: #{decoder_forward.19} parent=50 // pred_region
          _
        $region55: #{decoder_forward.19} parent=50 // pred_fallthru
          _
        %s175 = sand.u32 %s22, 1
        %s176 = sand.u32 %s22, 1
        %s177 = smul.addr %s176, 32
        %s178 = scalar_lea.vmem [#allocation2], %s177
        %p179 = pneg %p35
        %p180 = pneg %p32
        %p181 = pneg %p56
        %p182 = pneg %p53
        %p183 = pneg %p77
        %p184 = pneg %p74
        %p185 = pneg %p103
        %p186 = pneg %p100
        %s187 = sand.u32 %s90, 1
        %s188 = sand.u32 %s90, 1
        %s189 = smul.addr %s188, 32
        %s190 = scalar_lea.vmem [#allocation3], %s189
        %s191 = smul.u32 2, %s14
        %s192 = smul.u32 2, %s14
        %v193 = vld [vmem:[%s171] sm:$0xff]
        %v194 = vld [vmem:[%s171 + $0x8] sm:$0xff]
        %v195 = vld [vmem:[%s171 + $0x10] sm:$0xff]
        %v196 = vld [vmem:[%s171 + $0x18] sm:$0xff]
        %v197 = vld [vmem:[%s1] sm:$0xff]
        %v198 = vld [vmem:[%s1 + $0x8] sm:$0xff]
        %200 = vset.pattern.permute.xlu0 0
        %201 = vperm.xlu0 %200, %v197
        %v202 = vpop.permute.xlu0 %201
        %205 = vset.pattern.permute.xlu0 0
        %206 = vperm.xlu0 %205, %v198
        %v207 = vpop.permute.xlu0 %206
        %v209 = vmul.f32 %v193, %v202
        %v210 = vmul.f32 %v194, %v202
        %v211 = vmul.f32 %v195, %v207
        %v212 = vmul.f32 %v196, %v207
        %v213 = vld [vmem:[%s2] sm:$0xff]
        %v214 = vld [vmem:[%s2 + $0x8] sm:$0xff]
        %216 = vset.pattern.permute.xlu0 0
        %217 = vperm.xlu0 %216, %v213
        %v218 = vpop.permute.xlu0 %217
        %221 = vset.pattern.permute.xlu0 0
        %222 = vperm.xlu0 %221, %v214
        %v223 = vpop.permute.xlu0 %222
        %v225 = vadd.f32 %v209, %v218
        %v226 = vadd.f32 %v210, %v218
        %v227 = vadd.f32 %v211, %v223
        %v228 = vadd.f32 %v212, %v223
        %v229 = vmax.f32 %v225, 0.0
        %v230 = vmax.f32 %v226, 0.0
        %v231 = vmax.f32 %v227, 0.0
        %v232 = vmax.f32 %v228, 0.0
        %233 = vst [vmem:[%s190] sm:$0xff] %v229
        %234 = vst [vmem:[%s190 + $0x8] sm:$0xff] %v230
        %235 = vst [vmem:[%s190 + $0x10] sm:$0xff] %v231
        %236 = vst [vmem:[%s190 + $0x18] sm:$0xff] %v232
        %s237 = sand.u32 %s90, 1
        %s238 = sand.u32 %s90, 1
        %s239 = smul.addr %s238, 32
        %s240 = scalar_lea.vmem [#allocation3], %s239
        // Predicated region
        $region56: #{decoder_forward.19} parent=50 // pred_check
          %p241 = pneg %p100
        $region57: #{decoder_forward.19} parent=50 // pred_check_branch
          %243 = sbr.rel (%p241) target = $region59
        $region58: #{decoder_forward.19} parent=50 // pred_region
          %s244 = smul.u32 2, %s14
          %s245 = smul.addr %s244, 8
          %s246 = scalar_lea.vmem %s3, %s245
          // Predicated region
          $region60: #{decoder_forward.19} parent=58 // pred_check
            _
          $region61: #{decoder_forward.19} parent=58 // pred_check_branch
            %248 = sbr.rel (0) target = $region63
          $region62: #{decoder_forward.19} parent=58 // pred_region
            // Predicated region
            $region64: #{decoder_forward.19} parent=62 // pred_check
              _
            $region65: #{decoder_forward.19} parent=62 // pred_check_branch
              %250 = sbr.rel (0) target = $region67
            $region66: #{decoder_forward.19} parent=62 // pred_region
              loop: start=0, step=1, limit=1
              $region68: #{decoder_forward.19} parent=66 // loop_pre_header
                _
              $region69: #{decoder_forward.19} parent=66 // loop_header
                %s252 = sphi 0, %s256
                %p253 = scmp.ge.s32.totalorder %s252, 1
                %s257 = sphi %s240, %s240
                %s258 = sphi %s246, %s246
              $region70: #{decoder_forward.19} parent=66 // loop_header_branch
                %255 = sbr.rel (%p253) target = $region74
              $region71: #{decoder_forward.19} parent=66 // loop_body
                %v259 = vld [vmem:[%s257] sm:$0xff]
                %260 = vst [vmem:[%s258] sm:$0xff] %v259
                %v261 = vld [vmem:[%s257 + $0x8] sm:$0xff]
                %262 = vst [vmem:[%s258 + $0x8] sm:$0xff] %v261
                %v263 = vld [vmem:[%s257 + $0x10] sm:$0xff]
                %264 = vst [vmem:[%s258 + $0x20] sm:$0xff] %v263
                %v265 = vld [vmem:[%s257 + $0x18] sm:$0xff]
                %266 = vst [vmem:[%s258 + $0x28] sm:$0xff] %v265
              $region72: #{decoder_forward.19} parent=66 // loop_footer
                %s256 = sadd.s32 1, %s252
              $region73: #{decoder_forward.19} parent=66 // loop_footer_branch
                %251 = sbr.rel target = $region69
              $region74: #{decoder_forward.19} parent=66 // loop_exit
                _
            $region67: #{decoder_forward.19} parent=62 // pred_fallthru
              _
            // Predicated region
            $region75: #{decoder_forward.19} parent=62 // pred_check
              _
            $region76: #{decoder_forward.19} parent=62 // pred_check_branch
              %268 = sbr.rel target = $region78
            $region77: #{decoder_forward.19} parent=62 // pred_region
              _
            $region78: #{decoder_forward.19} parent=62 // pred_fallthru
              _
          $region63: #{decoder_forward.19} parent=58 // pred_fallthru
            _
          %269 = vnop
        $region59: #{decoder_forward.19} parent=50 // pred_fallthru
          _
      $region51: #{decoder_forward.19} parent=5 // pred_fallthru
        _
      %p270 = scmp.le.s32.totalorder 2, %s9
      // Predicated region
      $region79: #{decoder_forward.19} parent=5 // pred_check
        %p271 = pneg %p270
      $region80: #{decoder_forward.19} parent=5 // pred_check_branch
        %273 = sbr.rel (%p271) target = $region82
      $region81: #{decoder_forward.19} parent=5 // pred_region
        %s274 = ssub.s32 %s9, 2
        // Predicated region
        $region83: #{decoder_forward.19} parent=81 // pred_check
          %p275 = pneg %p106
        $region84: #{decoder_forward.19} parent=81 // pred_check_branch
          %277 = sbr.rel (%p275) target = $region86
        $region85: #{decoder_forward.19} parent=81 // pred_region
          %s278 = sand.u32 %s91, 1
          %s279 = sand.u32 %s91, 1
          %s280 = smul.addr %s279, 32
          %s281 = scalar_lea.vmem [#allocation3], %s280
        $region86: #{decoder_forward.19} parent=81 // pred_fallthru
          _
      $region82: #{decoder_forward.19} parent=5 // pred_fallthru
        _
    $region6: #{decoder_forward.19} parent=1 // loop_footer
      %s13 = sadd.s32 1, %s9
    $region7: #{decoder_forward.19} parent=1 // loop_footer_branch
      %8 = sbr.rel target = $region3
    $region8: #{decoder_forward.19} parent=1 // loop_exit
      _

// kernel: decoder_forward.20
$region0: #{decoder_forward.20}
  #allocation0 [shape = 'u32[]', space=smem, size = 0x4, offset = 0x4, fixed_abs, tag = 'smem constant byte address 0x4 - core index']
  #allocation1 [shape = 'u32[144,128]{1,0:T(1,128)}', space=vmem, size = 0x12000, scoped, tag = 'internal scratch']
  %s0 = inlined_call_operand.vmem [shape: bf16[12,36], index: 0, kind: input, shape index: {}]
  %s1 = inlined_call_operand.vmem [shape: bf16[36,2048], index: 1, kind: input, shape index: {}]
  %s2 = inlined_call_operand.vmem [shape: f32[12,1], index: 2, kind: input, shape index: {}]
  %s3 = inlined_call_operand.vmem [shape: f32[12,2048], index: 3, kind: output, shape index: {0}]
  %s4 = inlined_call_operand.vmem [shape: f32[4,12,1], index: 4, kind: output, shape index: {1}]
  %s5 = inlined_call_operand.vmem [shape: f32[4,12,1], index: 5, kind: output, shape index: {2}]
  %6 = xla_tuple %s3, %s4, %s5
  %s7 = sld [smem:[#allocation0]]
  $region103: #{decoder_forward.20} parent=0
    _
  %s9 = ssub.s32 1, %s7
  %s10 = scalar_select 0, %s9, %s7
  $region1: #{decoder_forward.20} parent=0
    #allocation2 [shape = 'u8[81920]{0}', space=vmem, size = 0x14000, scoped, tag = 'input window, operand 1']
    #allocation3 [shape = 'u8[65536]{0}', space=vmem, size = 0x10000, scoped, tag = 'output window, operand 0']
    loop: start=0, step=1, limit=6
    $region2: #{decoder_forward.20} parent=1 // loop_pre_header
      _
    $region3: #{decoder_forward.20} parent=1 // loop_header
      %s12 = sphi 0, %s16
      %p13 = scmp.ge.s32.totalorder %s12, 6
      %s20 = sphi 0, %s20
      %s22 = sphi 0, %s20
      %s23 = sphi 0, %s22
      %s37 = sphi 0, %s23
      %s43 = sphi 0, %s45
      %s46 = sphi 0, %s43
      %s47 = sphi 0, %s46
      %s63 = sphi 0, %s47
      %s67 = sphi 0, %s67
      %s69 = sphi 0, %s67
      %s70 = sphi 0, %s69
      %s84 = sphi 0, %s70
      %s90 = sphi 0, %s92
      %s93 = sphi 0, %s90
      %s94 = sphi 0, %s93
      %s110 = sphi 0, %s94
      %s116 = sphi 0, %s118
      %s119 = sphi 0, %s116
      %s120 = sphi 0, %s119
      %s136 = sphi 0, %s120
      %s142 = sphi 0, %s144
      %s145 = sphi 0, %s142
      %s146 = sphi 0, %s145
      %s162 = sphi 0, %s146
    $region4: #{decoder_forward.20} parent=1 // loop_header_branch
      %15 = sbr.rel (%p13) target = $region8
    $region5: #{decoder_forward.20} parent=1 // loop_body
      %s17 = ssub.s32 %s12, 1
      %s18 = ssub.s32 %s12, 2
      %s19 = sadd.s32 %s12, 1
      %s21 = sadd.s32 %s20, 1
      %p24 = scmp.eq.s32.totalorder %s12, 3
      %p25 = scmp.ne.s32.totalorder %s20, %s22
      %p26 = scmp.eq.s32.totalorder %s12, 0
      %p27 = por %p25, %p26
      %p28 = scmp.ne.s32.totalorder %s20, %s22
      %p29 = scmp.eq.s32.totalorder %s17, 3
      %p30 = por %p28, %p29
      %p31 = scmp.ne.s32.totalorder %s22, %s23
      %p32 = scmp.eq.s32.totalorder %s17, 0
      %p33 = por %p31, %p32
      %p34 = scmp.ne.s32.totalorder %s22, %s23
      %p35 = scmp.eq.s32.totalorder %s18, 3
      %p36 = por %p34, %p35
      %p38 = scmp.ne.s32.totalorder %s23, %s37
      %p39 = scmp.eq.s32.totalorder %s18, 0
      %p40 = por %p38, %p39
      %s41 = ssub.s32 %s12, %s19
      %p42 = scmp.eq.s32.totalorder %s41, 0
      %s44 = sadd.s32 %s43, 1
      %s45 = scalar_select %p42, %s43, %s44
      %p48 = pneg %p42
      %p49 = scmp.eq.s32.totalorder %s12, 3
      %p50 = por %p48, %p49
      %p51 = scmp.ne.s32.totalorder %s43, %s46
      %p52 = scmp.eq.s32.totalorder %s12, 0
      %p53 = por %p51, %p52
      %p54 = scmp.ne.s32.totalorder %s43, %s46
      %p55 = scmp.eq.s32.totalorder %s17, 3
      %p56 = por %p54, %p55
      %p57 = scmp.ne.s32.totalorder %s46, %s47
      %p58 = scmp.eq.s32.totalorder %s17, 0
      %p59 = por %p57, %p58
      %p60 = scmp.ne.s32.totalorder %s46, %s47
      %p61 = scmp.eq.s32.totalorder %s18, 3
      %p62 = por %p60, %p61
      %p64 = scmp.ne.s32.totalorder %s47, %s63
      %p65 = scmp.eq.s32.totalorder %s18, 0
      %p66 = por %p64, %p65
      %s68 = sadd.s32 %s67, 1
      %p71 = scmp.eq.s32.totalorder %s12, 3
      %p72 = scmp.ne.s32.totalorder %s67, %s69
      %p73 = scmp.eq.s32.totalorder %s12, 0
      %p74 = por %p72, %p73
      %p75 = scmp.ne.s32.totalorder %s67, %s69
      %p76 = scmp.eq.s32.totalorder %s17, 3
      %p77 = por %p75, %p76
      %p78 = scmp.ne.s32.totalorder %s69, %s70
      %p79 = scmp.eq.s32.totalorder %s17, 0
      %p80 = por %p78, %p79
      %p81 = scmp.ne.s32.totalorder %s69, %s70
      %p82 = scmp.eq.s32.totalorder %s18, 3
      %p83 = por %p81, %p82
      %p85 = scmp.ne.s32.totalorder %s70, %s84
      %p86 = scmp.eq.s32.totalorder %s18, 0
      %p87 = por %p85, %p86
      %s88 = ssub.s32 %s12, %s19
      %p89 = scmp.eq.s32.totalorder %s88, 0
      %s91 = sadd.s32 %s90, 1
      %s92 = scalar_select %p89, %s90, %s91
      %p95 = pneg %p89
      %p96 = scmp.eq.s32.totalorder %s12, 3
      %p97 = por %p95, %p96
      %p98 = scmp.ne.s32.totalorder %s90, %s93
      %p99 = scmp.eq.s32.totalorder %s12, 0
      %p100 = por %p98, %p99
      %p101 = scmp.ne.s32.totalorder %s90, %s93
      %p102 = scmp.eq.s32.totalorder %s17, 3
      %p103 = por %p101, %p102
      %p104 = scmp.ne.s32.totalorder %s93, %s94
      %p105 = scmp.eq.s32.totalorder %s17, 0
      %p106 = por %p104, %p105
      %p107 = scmp.ne.s32.totalorder %s93, %s94
      %p108 = scmp.eq.s32.totalorder %s18, 3
      %p109 = por %p107, %p108
      %p111 = scmp.ne.s32.totalorder %s94, %s110
      %p112 = scmp.eq.s32.totalorder %s18, 0
      %p113 = por %p111, %p112
      %s114 = ssub.s32 %s12, %s19
      %p115 = scmp.eq.s32.totalorder %s114, 0
      %s117 = sadd.s32 %s116, 1
      %s118 = scalar_select %p115, %s116, %s117
      %p121 = pneg %p115
      %p122 = scmp.eq.s32.totalorder %s12, 3
      %p123 = por %p121, %p122
      %p124 = scmp.ne.s32.totalorder %s116, %s119
      %p125 = scmp.eq.s32.totalorder %s12, 0
      %p126 = por %p124, %p125
      %p127 = scmp.ne.s32.totalorder %s116, %s119
      %p128 = scmp.eq.s32.totalorder %s17, 3
      %p129 = por %p127, %p128
      %p130 = scmp.ne.s32.totalorder %s119, %s120
      %p131 = scmp.eq.s32.totalorder %s17, 0
      %p132 = por %p130, %p131
      %p133 = scmp.ne.s32.totalorder %s119, %s120
      %p134 = scmp.eq.s32.totalorder %s18, 3
      %p135 = por %p133, %p134
      %p137 = scmp.ne.s32.totalorder %s120, %s136
      %p138 = scmp.eq.s32.totalorder %s18, 0
      %p139 = por %p137, %p138
      %s140 = ssub.s32 %s12, %s19
      %p141 = scmp.eq.s32.totalorder %s140, 0
      %s143 = sadd.s32 %s142, 1
      %s144 = scalar_select %p141, %s142, %s143
      %p147 = pneg %p141
      %p148 = scmp.eq.s32.totalorder %s12, 3
      %p149 = por %p147, %p148
      %p150 = scmp.ne.s32.totalorder %s142, %s145
      %p151 = scmp.eq.s32.totalorder %s12, 0
      %p152 = por %p150, %p151
      %p153 = scmp.ne.s32.totalorder %s142, %s145
      %p154 = scmp.eq.s32.totalorder %s17, 3
      %p155 = por %p153, %p154
      %p156 = scmp.ne.s32.totalorder %s145, %s146
      %p157 = scmp.eq.s32.totalorder %s17, 0
      %p158 = por %p156, %p157
      %p159 = scmp.ne.s32.totalorder %s145, %s146
      %p160 = scmp.eq.s32.totalorder %s18, 3
      %p161 = por %p159, %p160
      %p163 = scmp.ne.s32.totalorder %s146, %s162
      %p164 = scmp.eq.s32.totalorder %s18, 0
      %p165 = por %p163, %p164
      %p166 = scmp.le.s32.totalorder 1, %s12
      %p167 = scmp.lt.s32.totalorder %s12, 5
      %p168 = pnand %p166, %p167
      %p169 = pneg %p168
      // Predicated region
      $region9: #{decoder_forward.20} parent=5 // pred_check
        _
      $region10: #{decoder_forward.20} parent=5 // pred_check_branch
        %171 = sbr.rel (%p168) target = $region12
      $region11: #{decoder_forward.20} parent=5 // pred_region
        %s172 = ssub.s32 %s12, 1
        // Predicated region
        $region13: #{decoder_forward.20} parent=11 // pred_check
          %p173 = pneg %p33
        $region14: #{decoder_forward.20} parent=11 // pred_check_branch
          %175 = sbr.rel (%p173) target = $region16
        $region15: #{decoder_forward.20} parent=11 // pred_region
          _
        $region16: #{decoder_forward.20} parent=11 // pred_fallthru
          _
        // Predicated region
        $region17: #{decoder_forward.20} parent=11 // pred_check
          %p176 = pneg %p80
        $region18: #{decoder_forward.20} parent=11 // pred_check_branch
          %178 = sbr.rel (%p176) target = $region20
        $region19: #{decoder_forward.20} parent=11 // pred_region
          _
        $region20: #{decoder_forward.20} parent=11 // pred_fallthru
          _
      $region12: #{decoder_forward.20} parent=5 // pred_fallthru
        _
      %p179 = scmp.lt.s32.totalorder %s12, 4
      // Predicated region
      $region21: #{decoder_forward.20} parent=5 // pred_check
        %p180 = pneg %p179
      $region22: #{decoder_forward.20} parent=5 // pred_check_branch
        %182 = sbr.rel (%p180) target = $region24
      $region23: #{decoder_forward.20} parent=5 // pred_region
        // Predicated region
        $region25: #{decoder_forward.20} parent=23 // pred_check
          %p183 = pneg %p53
        $region26: #{decoder_forward.20} parent=23 // pred_check_branch
          %185 = sbr.rel (%p183) target = $region28
        $region27: #{decoder_forward.20} parent=23 // pred_region
          %s186 = sand.u32 %s43, 1
          %s187 = sand.u32 %s43, 1
          %s188 = smul.addr %s187, 80
          %s189 = scalar_lea.vmem [#allocation2], %s188
          %s190 = smul.u32 4, %s12
          %s191 = smul.addr %s190, 4
          %s192 = scalar_lea.vmem %s1, %s191
          // Predicated region
          $region29: #{decoder_forward.20} parent=27 // pred_check
            _
          $region30: #{decoder_forward.20} parent=27 // pred_check_branch
            %194 = sbr.rel (0) target = $region32
          $region31: #{decoder_forward.20} parent=27 // pred_region
            // Predicated region
            $region33: #{decoder_forward.20} parent=31 // pred_check
              _
            $region34: #{decoder_forward.20} parent=31 // pred_check_branch
              %196 = sbr.rel (0) target = $region36
            $region35: #{decoder_forward.20} parent=31 // pred_region
              loop: start=0, step=1, limit=1
              $region37: #{decoder_forward.20} parent=35 // loop_pre_header
                _
              $region38: #{decoder_forward.20} parent=35 // loop_header
                %s198 = sphi 0, %s202
                %p199 = scmp.ge.s32.totalorder %s198, 1
                %s203 = sphi %s192, %s192
                %s204 = sphi %s189, %s189
              $region39: #{decoder_forward.20} parent=35 // loop_header_branch
                %201 = sbr.rel (%p199) target = $region43
              $region40: #{decoder_forward.20} parent=35 // loop_body
                %v205 = vld [vmem:[%s203] sm:$0xff]
                %206 = vst [vmem:[%s204] sm:$0xff] %v205
                %v207 = vld [vmem:[%s203 + $0x8] sm:$0xff]
                %208 = vst [vmem:[%s204 + $0x8] sm:$0xff] %v207
                %v209 = vld [vmem:[%s203 + $0x40] sm:$0xff]
                %210 = vst [vmem:[%s204 + $0x10] sm:$0xff] %v209
                %v211 = vld [vmem:[%s203 + $0x48] sm:$0xff]
                %212 = vst [vmem:[%s204 + $0x18] sm:$0xff] %v211
                %v213 = vld [vmem:[%s203 + $0x80] sm:$0xff]
                %214 = vst [vmem:[%s204 + $0x20] sm:$0xff] %v213
                %v215 = vld [vmem:[%s203 + $0x88] sm:$0xff]
                %216 = vst [vmem:[%s204 + $0x28] sm:$0xff] %v215
                %v217 = vld [vmem:[%s203 + $0xc0] sm:$0xff]
                %218 = vst [vmem:[%s204 + $0x30] sm:$0xff] %v217
                %v219 = vld [vmem:[%s203 + $0xc8] sm:$0xff]
                %220 = vst [vmem:[%s204 + $0x38] sm:$0xff] %v219
                %v221 = vld [vmem:[%s203 + $0x100] sm:$0xff]
                %222 = vst [vmem:[%s204 + $0x40] sm:$0xff] %v221
                %v223 = vld [vmem:[%s203 + $0x108] sm:$0xff]
                %224 = vst [vmem:[%s204 + $0x48] sm:$0xff] %v223
              $region41: #{decoder_forward.20} parent=35 // loop_footer
                %s202 = sadd.s32 1, %s198
              $region42: #{decoder_forward.20} parent=35 // loop_footer_branch
                %197 = sbr.rel target = $region38
              $region43: #{decoder_forward.20} parent=35 // loop_exit
                _
            $region36: #{decoder_forward.20} parent=31 // pred_fallthru
              _
            // Predicated region
            $region44: #{decoder_forward.20} parent=31 // pred_check
              _
            $region45: #{decoder_forward.20} parent=31 // pred_check_branch
              %226 = sbr.rel target = $region47
            $region46: #{decoder_forward.20} parent=31 // pred_region
              _
            $region47: #{decoder_forward.20} parent=31 // pred_fallthru
              _
          $region32: #{decoder_forward.20} parent=27 // pred_fallthru
            _
          %227 = vnop
        $region28: #{decoder_forward.20} parent=23 // pred_fallthru
          _
      $region24: #{decoder_forward.20} parent=5 // pred_fallthru
        _
      %p228 = scmp.le.s32.totalorder 1, %s12
      %p229 = scmp.lt.s32.totalorder %s12, 5
      %p230 = pnand %p228, %p229
      %p231 = pneg %p230
      // Predicated region
      $region48: #{decoder_forward.20} parent=5 // pred_check
        _
      $region49: #{decoder_forward.20} parent=5 // pred_check_branch
        %233 = sbr.rel (%p230) target = $region51
      $region50: #{decoder_forward.20} parent=5 // pred_region
        %s234 = ssub.s32 %s12, 1
        %s235 = sand.u32 %s46, 1
        %s236 = sand.u32 %s46, 1
        %s237 = smul.addr %s236, 80
        %s238 = scalar_lea.vmem [#allocation2], %s237
        // Predicated region
        $region52: #{decoder_forward.20} parent=50 // pred_check
          %p239 = pneg %p59
        $region53: #{decoder_forward.20} parent=50 // pred_check_branch
          %241 = sbr.rel (%p239) target = $region55
        $region54: #{decoder_forward.20} parent=50 // pred_region
          _
        $region55: #{decoder_forward.20} parent=50 // pred_fallthru
          _
        %p242 = pneg %p33
        %p243 = pneg %p30
        %s244 = sand.u32 %s46, 1
        %s245 = sand.u32 %s46, 1
        %s246 = smul.addr %s245, 80
        %s247 = scalar_lea.vmem [#allocation2], %s246
        %p248 = pneg %p59
        %p249 = pneg %p56
        %p250 = pneg %p80
        %p251 = pneg %p77
        %p252 = pneg %p106
        %p253 = pneg %p103
        %s254 = sand.u32 %s93, 1
        %s255 = sand.u32 %s93, 1
        %s256 = smul.addr %s255, 64
        %s257 = scalar_lea.vmem [#allocation3], %s256
        %p258 = pneg %p132
        %p259 = pneg %p129
        %p260 = scmp.lt.s32.totalorder %s17, 3
        %s261 = scalar_select %p260, %s17, 3
        %s262 = smul.addr %s261, 2
        %s263 = smul.addr %s262, 8
        %s264 = scalar_lea.vmem %s4, %s263
        %p265 = pneg %p158
        %p266 = pneg %p155
        %p267 = scmp.lt.s32.totalorder %s17, 3
        %s268 = scalar_select %p267, %s17, 3
        %s269 = smul.addr %s268, 2
        %s270 = smul.addr %s269, 8
        %s271 = scalar_lea.vmem %s5, %s270
        %s272 = smul.u32 4, %s17
        %s273 = smul.u32 4, %s17
        %p274 = scmp.lt.s32.totalorder %s17, 3
        %s275 = scalar_select %p274, %s17, 3
        %s276 = smul.addr %s275, 2
        %s277 = smul.addr %s276, 8
        %s278 = scalar_lea.vmem %s4, %s277
        %p279 = scmp.lt.s32.totalorder %s17, 3
        %s280 = scalar_select %p279, %s17, 3
        %s281 = smul.addr %s280, 2
        %s282 = smul.addr %s281, 8
        %s283 = scalar_lea.vmem %s5, %s282
        %v285 = vld [vmem:[%s238] sm:$0xff]
        %v286 = vld [vmem:[%s238 + $0x8] sm:$0xff]
        %v287 = vld [vmem:[%s238 + $0x10] sm:$0xff]
        %v288 = vld [vmem:[%s238 + $0x18] sm:$0xff]
        %v289 = vld [vmem:[%s238 + $0x20] sm:$0xff]
        %v290 = vld [vmem:[%s238 + $0x28] sm:$0xff]
        %v291 = vld [vmem:[%s238 + $0x30] sm:$0xff]
        %v292 = vld [vmem:[%s238 + $0x38] sm:$0xff]
        %v293 = vld [vmem:[%s238 + $0x40] sm:$0x33]
        %v294 = vld [vmem:[%s238 + $0x48] sm:$0x33]
        %v295 = vld [vmem:[%s0] sm:$0xf]
        %v296 = vld [vmem:[%s0 + $0x4] sm:$0x3]
        %v297 = vld [vmem:[%s2] sm:$0xff]
        %v298 = vld [vmem:[%s2 + $0x8] sm:$0xf]
        %300 = vset.pattern.permute.xlu0 0
        %301 = vperm.xlu0 %300, %v297
        %v302 = vpop.permute.xlu0 %301
        %305 = vset.pattern.permute.xlu0 0
        %306 = vperm.xlu0 %305, %v298
        %v307 = vpop.permute.xlu0 %306
        %v311 = vunpack.c.l.b16 %v295
        %v312 = vunpack.c.l.b16 %v296
        %v313 = vpack.c.b16 %v312, %v311
        %v324 = vunpack.c.l.b16 %v285
        %v325 = vunpack.c.h.b16 %v285
        %v326 = vunpack.c.l.b16 %v286
        %v327 = vunpack.c.h.b16 %v286
        %v328 = vunpack.c.l.b16 %v287
        %v329 = vunpack.c.h.b16 %v287
        %v330 = vunpack.c.l.b16 %v288
        %v331 = vunpack.c.h.b16 %v288
        %v332 = vunpack.c.l.b16 %v289
        %v333 = vunpack.c.h.b16 %v289
        %v334 = vunpack.c.l.b16 %v290
        %v335 = vunpack.c.h.b16 %v290
        %v336 = vunpack.c.l.b16 %v291
        %v337 = vunpack.c.h.b16 %v291
        %v338 = vunpack.c.l.b16 %v292
        %v339 = vunpack.c.h.b16 %v292
        %v340 = vunpack.c.l.b16 %v293
        %v341 = vunpack.c.h.b16 %v293
        %v342 = vunpack.c.l.b16 %v294
        %v343 = vunpack.c.h.b16 %v294
        %v344 = vpack.c.b16 %v328, %v324
        %v345 = vpack.c.b16 %v329, %v325
        %v346 = vpack.c.b16 %v330, %v326
        %v347 = vpack.c.b16 %v331, %v327
        %v348 = vpack.c.b16 %v336, %v332
        %v349 = vpack.c.b16 %v337, %v333
        %v350 = vpack.c.b16 %v338, %v334
        %v351 = vpack.c.b16 %v339, %v335
        %v352 = vpack.c.b16 %v340, %v340
        %v353 = vpack.c.b16 %v341, %v341
        %v354 = vpack.c.b16 %v342, %v342
        %v355 = vpack.c.b16 %v343, %v343
        %vm364 = vcmask 293888
        %v366 = vsel %vm364, %v313, 0
        %vm368 = vcmask 1041408
        %v370 = vsel %vm368, %v352, 0
        %v373 = vsel %vm368, %v353, 0
        %v376 = vsel %vm368, %v354, 0
        %v379 = vsel %vm368, %v355, 0
        %381 = vmatprep.subr.bf16.mxu0 %v345
        %382 = vmatpush1.bf16.msra.mxu0 %v344
        %383 = vmatprep.subr.bf16.mxu0 %v349
        %384 = vmatpush1.bf16.msra.mxu0 %v348
        %385 = vmatprep.subr.bf16.mxu0 %v373
        %386 = vmatpush1.bf16.msra.mxu0 %v370
        %387 = vmatprep.subr.bf16.mxu0 0
        %388 = vmatpush1.bf16.msra.mxu0 0
        %389 = vmatprep.subr.bf16.mxu0 0
        %390 = vmatpush1.bf16.msra.mxu0 0
        %391 = vmatprep.subr.bf16.mxu0 0
        %392 = vmatpush1.bf16.msra.mxu0 0
        %393 = vmatprep.subr.bf16.mxu0 0
        %394 = vmatpush1.bf16.msra.mxu0 0
        %395 = vmatprep.subr.bf16.mxu0 0
        %396 = vmatpush1.bf16.msra.mxu0 0
        %397 = vmatprep.subr.bf16.mxu0 0
        %398 = vmatpush1.bf16.msra.mxu0 0
        %399 = vmatprep.subr.bf16.mxu0 0
        %400 = vmatpush1.bf16.msra.mxu0 0
        %401 = vmatprep.subr.bf16.mxu0 0
        %402 = vmatpush1.bf16.msra.mxu0 0
        %403 = vmatprep.subr.bf16.mxu0 0
        %404 = vmatpush1.bf16.msra.mxu0 0
        %405 = vmatprep.subr.bf16.mxu0 0
        %406 = vmatpush1.bf16.msra.mxu0 0
        %407 = vmatprep.subr.bf16.mxu0 0
        %408 = vmatpush1.bf16.msra.mxu0 0
        %409 = vmatprep.subr.bf16.mxu0 0
        %410 = vmatpush1.bf16.msra.mxu0 0
        %411 = vmatprep.subr.bf16.mxu0 0
        %412 = vmatpush1.bf16.msra.mxu0 0
        %413 = vmatprep.mubr.bf16.mxu0 0
        %414 = vmatmul.mubr.bf16.gmra.mrb[0].mxu0 %v366
        %v415 = vpop.f32.mrb[0].mxu0
        %v416 = vadd.f32 %v302, %v415
        %v417 = vpop.f32.mrb[0].mxu0
        %v418 = vadd.f32 %v302, %v417
        %v419 = vpop.f32.mrb[0].mxu0
        %v420 = vadd.f32 %v307, %v419
        %v421 = vpop.f32.mrb[0].mxu0
        %v422 = vadd.f32 %v307, %v421
        %423 = vdwg.mxu0
        %424 = vmatprep.subr.bf16.mxu0 %v347
        %425 = vmatpush1.bf16.msra.mxu0 %v346
        %426 = vmatprep.subr.bf16.mxu0 %v351
        %427 = vmatpush1.bf16.msra.mxu0 %v350
        %428 = vmatprep.subr.bf16.mxu0 %v379
        %429 = vmatpush1.bf16.msra.mxu0 %v376
        %430 = vmatprep.subr.bf16.mxu0 0
        %431 = vmatpush1.bf16.msra.mxu0 0
        %432 = vmatprep.subr.bf16.mxu0 0
        %433 = vmatpush1.bf16.msra.mxu0 0
        %434 = vmatprep.subr.bf16.mxu0 0
        %435 = vmatpush1.bf16.msra.mxu0 0
        %436 = vmatprep.subr.bf16.mxu0 0
        %437 = vmatpush1.bf16.msra.mxu0 0
        %438 = vmatprep.subr.bf16.mxu0 0
        %439 = vmatpush1.bf16.msra.mxu0 0
        %440 = vmatprep.subr.bf16.mxu0 0
        %441 = vmatpush1.bf16.msra.mxu0 0
        %442 = vmatprep.subr.bf16.mxu0 0
        %443 = vmatpush1.bf16.msra.mxu0 0
        %444 = vmatprep.subr.bf16.mxu0 0
        %445 = vmatpush1.bf16.msra.mxu0 0
        %446 = vmatprep.subr.bf16.mxu0 0
        %447 = vmatpush1.bf16.msra.mxu0 0
        %448 = vmatprep.subr.bf16.mxu0 0
        %449 = vmatpush1.bf16.msra.mxu0 0
        %450 = vmatprep.subr.bf16.mxu0 0
        %451 = vmatpush1.bf16.msra.mxu0 0
        %452 = vmatprep.subr.bf16.mxu0 0
        %453 = vmatpush1.bf16.msra.mxu0 0
        %454 = vmatprep.subr.bf16.mxu0 0
        %455 = vmatpush1.bf16.msra.mxu0 0
        %456 = vmatprep.mubr.bf16.mxu0 0
        %457 = vmatmul.mubr.bf16.gmra.mrb[0].mxu0 %v366
        %v458 = vpop.f32.mrb[0].mxu0
        %v459 = vadd.f32 %v302, %v458
        %v460 = vpop.f32.mrb[0].mxu0
        %v461 = vadd.f32 %v302, %v460
        %v462 = vpop.f32.mrb[0].mxu0
        %v463 = vadd.f32 %v307, %v462
        %v464 = vpop.f32.mrb[0].mxu0
        %v465 = vadd.f32 %v307, %v464
        %466 = vdwg.mxu0
        %467 = vst [vmem:[%s257] sm:$0xff] %v416
        %468 = vst [vmem:[%s257 + $0x8] sm:$0xff] %v418
        %469 = vst [vmem:[%s257 + $0x10] sm:$0xff] %v459
        %470 = vst [vmem:[%s257 + $0x18] sm:$0xff] %v461
        %471 = vst [vmem:[%s257 + $0x20] sm:$0xf] %v420
        %472 = vst [vmem:[%s257 + $0x28] sm:$0xf] %v422
        %473 = vst [vmem:[%s257 + $0x30] sm:$0xf] %v463
        %474 = vst [vmem:[%s257 + $0x38] sm:$0xf] %v465
        %v475 = vlaneseq
        %v476 = vand.u32 %v475, 127
        %v477 = vadd.s32 %v476, 128
        %v478 = vadd.s32 %v476, 256
        %v479 = vadd.s32 %v476, 384
        %s480 = smul.u32 %s17, 512
        %v481 = vstv %s480
        %v482 = vadd.s32 %v476, %v481
        %v483 = vadd.s32 %v477, %v481
        %v484 = vadd.s32 %v478, %v481
        %v485 = vadd.s32 %v479, %v481
        %vm486 = vcmp.lt.s32.totalorder %v482, 2048
        %vm487 = vcmp.lt.s32.totalorder %v483, 2048
        %vm488 = vcmp.lt.s32.totalorder %v484, 2048
        %vm489 = vcmp.lt.s32.totalorder %v485, 2048
        %v490 = vsel %vm486, %v416, 0.0
        %v491 = vsel %vm487, %v418, 0.0
        %v492 = vsel %vm488, %v459, 0.0
        %v493 = vsel %vm489, %v461, 0.0
        %v494 = vsel %vm486, %v420, 0.0
        %v495 = vsel %vm487, %v422, 0.0
        %v496 = vsel %vm488, %v463, 0.0
        %v497 = vsel %vm489, %v465, 0.0
        %v498 = vadd.f32 %v490, %v491
        %v499 = vadd.f32 %v498, %v492
        %v500 = vadd.f32 %v499, %v493
        %501 = vadd.xlane.f32.xlu0 %v500
        %v502 = vpop.xlane.xlu0 %501
        %vm503 = vcmask 1043456
        %v504 = vsel %vm503, %v494, 0.0
        %v505 = vsel %vm503, %v495, 0.0
        %v506 = vadd.f32 %v504, %v505
        %v507 = vsel %vm503, %v496, 0.0
        %v508 = vadd.f32 %v506, %v507
        %v509 = vsel %vm503, %v497, 0.0
        %v510 = vadd.f32 %v508, %v509
        %511 = vadd.xlane.f32.xlu0 %v510
        %v512 = vpop.xlane.xlu0 %511
        %vm513 = vcmask 7168
        %514 = vst.msk [vmem:[%s278] sm:$0xff] %vm513, %v502
        %vm515 = vcmask 3072
        %516 = vst.msk [vmem:[%s278 + $0x8] sm:$0xf] %vm515, %v512
        %v517 = vmul.f32 %v490, %v490
        %v518 = vmul.f32 %v491, %v491
        %v519 = vmul.f32 %v492, %v492
        %v520 = vmul.f32 %v493, %v493
        %v521 = vmul.f32 %v494, %v494
        %v522 = vmul.f32 %v495, %v495
        %v523 = vmul.f32 %v496, %v496
        %v524 = vmul.f32 %v497, %v497
        %v525 = vadd.f32 %v517, %v518
        %v526 = vadd.f32 %v525, %v519
        %v527 = vadd.f32 %v526, %v520
        %528 = vadd.xlane.f32.xlu0 %v527
        %v529 = vpop.xlane.xlu0 %528
        %v530 = vsel %vm503, %v521, 0.0
        %v531 = vsel %vm503, %v522, 0.0
        %v532 = vadd.f32 %v530, %v531
        %v533 = vsel %vm503, %v523, 0.0
        %v534 = vadd.f32 %v532, %v533
        %v535 = vsel %vm503, %v524, 0.0
        %v536 = vadd.f32 %v534, %v535
        %537 = vadd.xlane.f32.xlu0 %v536
        %v538 = vpop.xlane.xlu0 %537
        %539 = vst.msk [vmem:[%s283] sm:$0xff] %vm513, %v529
        %540 = vst.msk [vmem:[%s283 + $0x8] sm:$0xf] %vm515, %v538
        %s541 = sand.u32 %s93, 1
        %s542 = sand.u32 %s93, 1
        %s543 = smul.addr %s542, 64
        %s544 = scalar_lea.vmem [#allocation3], %s543
        %p545 = scmp.lt.s32.totalorder %s17, 3
        %s546 = scalar_select %p545, %s17, 3
        %s547 = smul.addr %s546, 2
        %s548 = smul.addr %s547, 8
        %s549 = scalar_lea.vmem %s4, %s548
        %p550 = scmp.lt.s32.totalorder %s17, 3
        %s551 = scalar_select %p550, %s17, 3
        %s552 = smul.addr %s551, 2
        %s553 = smul.addr %s552, 8
        %s554 = scalar_lea.vmem %s5, %s553
        // Predicated region
        $region56: #{decoder_forward.20} parent=50 // pred_check
          %p555 = pneg %p103
        $region57: #{decoder_forward.20} parent=50 // pred_check_branch
          %557 = sbr.rel (%p555) target = $region59
        $region58: #{decoder_forward.20} parent=50 // pred_region
          %s558 = smul.u32 4, %s17
          %s559 = smul.addr %s558, 8
          %s560 = scalar_lea.vmem %s3, %s559
          // Predicated region
          $region60: #{decoder_forward.20} parent=58 // pred_check
            _
          $region61: #{decoder_forward.20} parent=58 // pred_check_branch
            %562 = sbr.rel (0) target = $region63
          $region62: #{decoder_forward.20} parent=58 // pred_region
            // Predicated region
            $region64: #{decoder_forward.20} parent=62 // pred_check
              _
            $region65: #{decoder_forward.20} parent=62 // pred_check_branch
              %564 = sbr.rel (0) target = $region67
            $region66: #{decoder_forward.20} parent=62 // pred_region
              loop: start=0, step=1, limit=1
              $region68: #{decoder_forward.20} parent=66 // loop_pre_header
                _
              $region69: #{decoder_forward.20} parent=66 // loop_header
                %s566 = sphi 0, %s570
                %p567 = scmp.ge.s32.totalorder %s566, 1
                %s571 = sphi %s544, %s544
                %s572 = sphi %s560, %s560
              $region70: #{decoder_forward.20} parent=66 // loop_header_branch
                %569 = sbr.rel (%p567) target = $region74
              $region71: #{decoder_forward.20} parent=66 // loop_body
                %v573 = vld [vmem:[%s571] sm:$0xff]
                %574 = vst [vmem:[%s572] sm:$0xff] %v573
                %v575 = vld [vmem:[%s571 + $0x8] sm:$0xff]
                %576 = vst [vmem:[%s572 + $0x8] sm:$0xff] %v575
                %v577 = vld [vmem:[%s571 + $0x10] sm:$0xff]
                %578 = vst [vmem:[%s572 + $0x10] sm:$0xff] %v577
                %v579 = vld [vmem:[%s571 + $0x18] sm:$0xff]
                %580 = vst [vmem:[%s572 + $0x18] sm:$0xff] %v579
                %v581 = vld [vmem:[%s571 + $0x20] sm:$0xff]
                %582 = vst [vmem:[%s572 + $0x80] sm:$0xff] %v581
                %v583 = vld [vmem:[%s571 + $0x28] sm:$0xff]
                %584 = vst [vmem:[%s572 + $0x88] sm:$0xff] %v583
                %v585 = vld [vmem:[%s571 + $0x30] sm:$0xff]
                %586 = vst [vmem:[%s572 + $0x90] sm:$0xff] %v585
                %v587 = vld [vmem:[%s571 + $0x38] sm:$0xff]
                %588 = vst [vmem:[%s572 + $0x98] sm:$0xff] %v587
              $region72: #{decoder_forward.20} parent=66 // loop_footer
                %s570 = sadd.s32 1, %s566
              $region73: #{decoder_forward.20} parent=66 // loop_footer_branch
                %565 = sbr.rel target = $region69
              $region74: #{decoder_forward.20} parent=66 // loop_exit
                _
            $region67: #{decoder_forward.20} parent=62 // pred_fallthru
              _
            // Predicated region
            $region75: #{decoder_forward.20} parent=62 // pred_check
              _
            $region76: #{decoder_forward.20} parent=62 // pred_check_branch
              %590 = sbr.rel target = $region78
            $region77: #{decoder_forward.20} parent=62 // pred_region
              _
            $region78: #{decoder_forward.20} parent=62 // pred_fallthru
              _
          $region63: #{decoder_forward.20} parent=58 // pred_fallthru
            _
          %591 = vnop
        $region59: #{decoder_forward.20} parent=50 // pred_fallthru
          _
        // Predicated region
        $region79: #{decoder_forward.20} parent=50 // pred_check
          %p592 = pneg %p129
        $region80: #{decoder_forward.20} parent=50 // pred_check_branch
          %594 = sbr.rel (%p592) target = $region82
        $region81: #{decoder_forward.20} parent=50 // pred_region
          _
        $region82: #{decoder_forward.20} parent=50 // pred_fallthru
          _
        // Predicated region
        $region83: #{decoder_forward.20} parent=50 // pred_check
          %p595 = pneg %p155
        $region84: #{decoder_forward.20} parent=50 // pred_check_branch
          %597 = sbr.rel (%p595) target = $region86
        $region85: #{decoder_forward.20} parent=50 // pred_region
          _
        $region86: #{decoder_forward.20} parent=50 // pred_fallthru
          _
      $region51: #{decoder_forward.20} parent=5 // pred_fallthru
        _
      %p598 = scmp.le.s32.totalorder 2, %s12
      // Predicated region
      $region87: #{decoder_forward.20} parent=5 // pred_check
        %p599 = pneg %p598
      $region88: #{decoder_forward.20} parent=5 // pred_check_branch
        %601 = sbr.rel (%p599) target = $region90
      $region89: #{decoder_forward.20} parent=5 // pred_region
        %s602 = ssub.s32 %s12, 2
        // Predicated region
        $region91: #{decoder_forward.20} parent=89 // pred_check
          %p603 = pneg %p109
        $region92: #{decoder_forward.20} parent=89 // pred_check_branch
          %605 = sbr.rel (%p603) target = $region94
        $region93: #{decoder_forward.20} parent=89 // pred_region
          %s606 = sand.u32 %s94, 1
          %s607 = sand.u32 %s94, 1
          %s608 = smul.addr %s607, 64
          %s609 = scalar_lea.vmem [#allocation3], %s608
        $region94: #{decoder_forward.20} parent=89 // pred_fallthru
          _
        // Predicated region
        $region95: #{decoder_forward.20} parent=89 // pred_check
          %p610 = pneg %p135
        $region96: #{decoder_forward.20} parent=89 // pred_check_branch
          %612 = sbr.rel (%p610) target = $region98
        $region97: #{decoder_forward.20} parent=89 // pred_region
          %p613 = scmp.lt.s32.totalorder %s18, 3
          %s614 = scalar_select %p613, %s18, 3
          %s615 = smul.addr %s614, 2
          %s616 = smul.addr %s615, 8
          %s617 = scalar_lea.vmem %s4, %s616
        $region98: #{decoder_forward.20} parent=89 // pred_fallthru
          _
        // Predicated region
        $region99: #{decoder_forward.20} parent=89 // pred_check
          %p618 = pneg %p161
        $region100: #{decoder_forward.20} parent=89 // pred_check_branch
          %620 = sbr.rel (%p618) target = $region102
        $region101: #{decoder_forward.20} parent=89 // pred_region
          %p621 = scmp.lt.s32.totalorder %s18, 3
          %s622 = scalar_select %p621, %s18, 3
          %s623 = smul.addr %s622, 2
          %s624 = smul.addr %s623, 8
          %s625 = scalar_lea.vmem %s5, %s624
        $region102: #{decoder_forward.20} parent=89 // pred_fallthru
          _
      $region90: #{decoder_forward.20} parent=5 // pred_fallthru
        _
    $region6: #{decoder_forward.20} parent=1 // loop_footer
      %s16 = sadd.s32 1, %s12
    $region7: #{decoder_forward.20} parent=1 // loop_footer_branch
      %11 = sbr.rel target = $region3
    $region8: #{decoder_forward.20} parent=1 // loop_exit
      _

// kernel: decoder_forward.21
$region0: #{decoder_forward.21}
  #allocation0 [shape = 'u32[]', space=smem, size = 0x4, offset = 0x4, fixed_abs, tag = 'smem constant byte address 0x4 - core index']
  #allocation1 [shape = 'u32[144,128]{1,0:T(1,128)}', space=vmem, size = 0x12000, scoped, tag = 'internal scratch']
  %s0 = inlined_call_operand.vmem [shape: f32[12,2048], index: 0, kind: input, shape index: {}]
  %s1 = inlined_call_operand.vmem [shape: f32[12,1], index: 1, kind: input, shape index: {}]
  %s2 = inlined_call_operand.vmem [shape: f32[12,1], index: 2, kind: input, shape index: {}]
  %s3 = inlined_call_operand.vmem [shape: f32[12,2048], index: 3, kind: output, shape index: {}]
  %s4 = sld [smem:[#allocation0]]
  $region87: #{decoder_forward.21} parent=0
    _
  %s6 = ssub.s32 1, %s4
  %s7 = scalar_select 0, %s6, %s4
  $region1: #{decoder_forward.21} parent=0
    #allocation2 [shape = 'u8[65536]{0}', space=vmem, size = 0x10000, scoped, tag = 'input window, operand 0']
    #allocation3 [shape = 'u8[65536]{0}', space=vmem, size = 0x10000, scoped, tag = 'output window, operand 0']
    loop: start=0, step=1, limit=6
    $region2: #{decoder_forward.21} parent=1 // loop_pre_header
      _
    $region3: #{decoder_forward.21} parent=1 // loop_header
      %s9 = sphi 0, %s13
      %p10 = scmp.ge.s32.totalorder %s9, 6
      %s19 = sphi 0, %s21
      %s22 = sphi 0, %s19
      %s23 = sphi 0, %s22
      %s39 = sphi 0, %s23
      %s43 = sphi 0, %s43
      %s45 = sphi 0, %s43
      %s46 = sphi 0, %s45
      %s60 = sphi 0, %s46
      %s64 = sphi 0, %s64
      %s66 = sphi 0, %s64
      %s67 = sphi 0, %s66
      %s81 = sphi 0, %s67
      %s87 = sphi 0, %s89
      %s90 = sphi 0, %s87
      %s91 = sphi 0, %s90
      %s107 = sphi 0, %s91
    $region4: #{decoder_forward.21} parent=1 // loop_header_branch
      %12 = sbr.rel (%p10) target = $region8
    $region5: #{decoder_forward.21} parent=1 // loop_body
      %s14 = ssub.s32 %s9, 1
      %s15 = ssub.s32 %s9, 2
      %s16 = sadd.s32 %s9, 1
      %s17 = ssub.s32 %s9, %s16
      %p18 = scmp.eq.s32.totalorder %s17, 0
      %s20 = sadd.s32 %s19, 1
      %s21 = scalar_select %p18, %s19, %s20
      %p24 = pneg %p18
      %p25 = scmp.eq.s32.totalorder %s9, 3
      %p26 = por %p24, %p25
      %p27 = scmp.ne.s32.totalorder %s19, %s22
      %p28 = scmp.eq.s32.totalorder %s9, 0
      %p29 = por %p27, %p28
      %p30 = scmp.ne.s32.totalorder %s19, %s22
      %p31 = scmp.eq.s32.totalorder %s14, 3
      %p32 = por %p30, %p31
      %p33 = scmp.ne.s32.totalorder %s22, %s23
      %p34 = scmp.eq.s32.totalorder %s14, 0
      %p35 = por %p33, %p34
      %p36 = scmp.ne.s32.totalorder %s22, %s23
      %p37 = scmp.eq.s32.totalorder %s15, 3
      %p38 = por %p36, %p37
      %p40 = scmp.ne.s32.totalorder %s23, %s39
      %p41 = scmp.eq.s32.totalorder %s15, 0
      %p42 = por %p40, %p41
      %s44 = sadd.s32 %s43, 1
      %p47 = scmp.eq.s32.totalorder %s9, 3
      %p48 = scmp.ne.s32.totalorder %s43, %s45
      %p49 = scmp.eq.s32.totalorder %s9, 0
      %p50 = por %p48, %p49
      %p51 = scmp.ne.s32.totalorder %s43, %s45
      %p52 = scmp.eq.s32.totalorder %s14, 3
      %p53 = por %p51, %p52
      %p54 = scmp.ne.s32.totalorder %s45, %s46
      %p55 = scmp.eq.s32.totalorder %s14, 0
      %p56 = por %p54, %p55
      %p57 = scmp.ne.s32.totalorder %s45, %s46
      %p58 = scmp.eq.s32.totalorder %s15, 3
      %p59 = por %p57, %p58
      %p61 = scmp.ne.s32.totalorder %s46, %s60
      %p62 = scmp.eq.s32.totalorder %s15, 0
      %p63 = por %p61, %p62
      %s65 = sadd.s32 %s64, 1
      %p68 = scmp.eq.s32.totalorder %s9, 3
      %p69 = scmp.ne.s32.totalorder %s64, %s66
      %p70 = scmp.eq.s32.totalorder %s9, 0
      %p71 = por %p69, %p70
      %p72 = scmp.ne.s32.totalorder %s64, %s66
      %p73 = scmp.eq.s32.totalorder %s14, 3
      %p74 = por %p72, %p73
      %p75 = scmp.ne.s32.totalorder %s66, %s67
      %p76 = scmp.eq.s32.totalorder %s14, 0
      %p77 = por %p75, %p76
      %p78 = scmp.ne.s32.totalorder %s66, %s67
      %p79 = scmp.eq.s32.totalorder %s15, 3
      %p80 = por %p78, %p79
      %p82 = scmp.ne.s32.totalorder %s67, %s81
      %p83 = scmp.eq.s32.totalorder %s15, 0
      %p84 = por %p82, %p83
      %s85 = ssub.s32 %s9, %s16
      %p86 = scmp.eq.s32.totalorder %s85, 0
      %s88 = sadd.s32 %s87, 1
      %s89 = scalar_select %p86, %s87, %s88
      %p92 = pneg %p86
      %p93 = scmp.eq.s32.totalorder %s9, 3
      %p94 = por %p92, %p93
      %p95 = scmp.ne.s32.totalorder %s87, %s90
      %p96 = scmp.eq.s32.totalorder %s9, 0
      %p97 = por %p95, %p96
      %p98 = scmp.ne.s32.totalorder %s87, %s90
      %p99 = scmp.eq.s32.totalorder %s14, 3
      %p100 = por %p98, %p99
      %p101 = scmp.ne.s32.totalorder %s90, %s91
      %p102 = scmp.eq.s32.totalorder %s14, 0
      %p103 = por %p101, %p102
      %p104 = scmp.ne.s32.totalorder %s90, %s91
      %p105 = scmp.eq.s32.totalorder %s15, 3
      %p106 = por %p104, %p105
      %p108 = scmp.ne.s32.totalorder %s91, %s107
      %p109 = scmp.eq.s32.totalorder %s15, 0
      %p110 = por %p108, %p109
      %p111 = scmp.le.s32.totalorder 1, %s9
      %p112 = scmp.lt.s32.totalorder %s9, 5
      %p113 = pnand %p111, %p112
      %p114 = pneg %p113
      // Predicated region
      $region9: #{decoder_forward.21} parent=5 // pred_check
        _
      $region10: #{decoder_forward.21} parent=5 // pred_check_branch
        %116 = sbr.rel (%p113) target = $region12
      $region11: #{decoder_forward.21} parent=5 // pred_region
        %s117 = ssub.s32 %s9, 1
        // Predicated region
        $region13: #{decoder_forward.21} parent=11 // pred_check
          %p118 = pneg %p56
        $region14: #{decoder_forward.21} parent=11 // pred_check_branch
          %120 = sbr.rel (%p118) target = $region16
        $region15: #{decoder_forward.21} parent=11 // pred_region
          _
        $region16: #{decoder_forward.21} parent=11 // pred_fallthru
          _
        // Predicated region
        $region17: #{decoder_forward.21} parent=11 // pred_check
          %p121 = pneg %p77
        $region18: #{decoder_forward.21} parent=11 // pred_check_branch
          %123 = sbr.rel (%p121) target = $region20
        $region19: #{decoder_forward.21} parent=11 // pred_region
          _
        $region20: #{decoder_forward.21} parent=11 // pred_fallthru
          _
      $region12: #{decoder_forward.21} parent=5 // pred_fallthru
        _
      %p124 = scmp.lt.s32.totalorder %s9, 4
      // Predicated region
      $region21: #{decoder_forward.21} parent=5 // pred_check
        %p125 = pneg %p124
      $region22: #{decoder_forward.21} parent=5 // pred_check_branch
        %127 = sbr.rel (%p125) target = $region24
      $region23: #{decoder_forward.21} parent=5 // pred_region
        // Predicated region
        $region25: #{decoder_forward.21} parent=23 // pred_check
          %p128 = pneg %p29
        $region26: #{decoder_forward.21} parent=23 // pred_check_branch
          %130 = sbr.rel (%p128) target = $region28
        $region27: #{decoder_forward.21} parent=23 // pred_region
          %s131 = sand.u32 %s19, 1
          %s132 = sand.u32 %s19, 1
          %s133 = smul.addr %s132, 64
          %s134 = scalar_lea.vmem [#allocation2], %s133
          %s135 = smul.u32 4, %s9
          %s136 = smul.addr %s135, 8
          %s137 = scalar_lea.vmem %s0, %s136
          // Predicated region
          $region29: #{decoder_forward.21} parent=27 // pred_check
            _
          $region30: #{decoder_forward.21} parent=27 // pred_check_branch
            %139 = sbr.rel (0) target = $region32
          $region31: #{decoder_forward.21} parent=27 // pred_region
            // Predicated region
            $region33: #{decoder_forward.21} parent=31 // pred_check
              _
            $region34: #{decoder_forward.21} parent=31 // pred_check_branch
              %141 = sbr.rel (0) target = $region36
            $region35: #{decoder_forward.21} parent=31 // pred_region
              loop: start=0, step=1, limit=1
              $region37: #{decoder_forward.21} parent=35 // loop_pre_header
                _
              $region38: #{decoder_forward.21} parent=35 // loop_header
                %s143 = sphi 0, %s147
                %p144 = scmp.ge.s32.totalorder %s143, 1
                %s148 = sphi %s137, %s137
                %s149 = sphi %s134, %s134
              $region39: #{decoder_forward.21} parent=35 // loop_header_branch
                %146 = sbr.rel (%p144) target = $region43
              $region40: #{decoder_forward.21} parent=35 // loop_body
                %v150 = vld [vmem:[%s148] sm:$0xff]
                %151 = vst [vmem:[%s149] sm:$0xff] %v150
                %v152 = vld [vmem:[%s148 + $0x8] sm:$0xff]
                %153 = vst [vmem:[%s149 + $0x8] sm:$0xff] %v152
                %v154 = vld [vmem:[%s148 + $0x10] sm:$0xff]
                %155 = vst [vmem:[%s149 + $0x10] sm:$0xff] %v154
                %v156 = vld [vmem:[%s148 + $0x18] sm:$0xff]
                %157 = vst [vmem:[%s149 + $0x18] sm:$0xff] %v156
                %v158 = vld [vmem:[%s148 + $0x80] sm:$0xff]
                %159 = vst [vmem:[%s149 + $0x20] sm:$0xff] %v158
                %v160 = vld [vmem:[%s148 + $0x88] sm:$0xff]
                %161 = vst [vmem:[%s149 + $0x28] sm:$0xff] %v160
                %v162 = vld [vmem:[%s148 + $0x90] sm:$0xff]
                %163 = vst [vmem:[%s149 + $0x30] sm:$0xff] %v162
                %v164 = vld [vmem:[%s148 + $0x98] sm:$0xff]
                %165 = vst [vmem:[%s149 + $0x38] sm:$0xff] %v164
              $region41: #{decoder_forward.21} parent=35 // loop_footer
                %s147 = sadd.s32 1, %s143
              $region42: #{decoder_forward.21} parent=35 // loop_footer_branch
                %142 = sbr.rel target = $region38
              $region43: #{decoder_forward.21} parent=35 // loop_exit
                _
            $region36: #{decoder_forward.21} parent=31 // pred_fallthru
              _
            // Predicated region
            $region44: #{decoder_forward.21} parent=31 // pred_check
              _
            $region45: #{decoder_forward.21} parent=31 // pred_check_branch
              %167 = sbr.rel target = $region47
            $region46: #{decoder_forward.21} parent=31 // pred_region
              _
            $region47: #{decoder_forward.21} parent=31 // pred_fallthru
              _
          $region32: #{decoder_forward.21} parent=27 // pred_fallthru
            _
          %168 = vnop
        $region28: #{decoder_forward.21} parent=23 // pred_fallthru
          _
      $region24: #{decoder_forward.21} parent=5 // pred_fallthru
        _
      %p169 = scmp.le.s32.totalorder 1, %s9
      %p170 = scmp.lt.s32.totalorder %s9, 5
      %p171 = pnand %p169, %p170
      %p172 = pneg %p171
      // Predicated region
      $region48: #{decoder_forward.21} parent=5 // pred_check
        _
      $region49: #{decoder_forward.21} parent=5 // pred_check_branch
        %174 = sbr.rel (%p171) target = $region51
      $region50: #{decoder_forward.21} parent=5 // pred_region
        %s175 = ssub.s32 %s9, 1
        %s176 = sand.u32 %s22, 1
        %s177 = sand.u32 %s22, 1
        %s178 = smul.addr %s177, 64
        %s179 = scalar_lea.vmem [#allocation2], %s178
        // Predicated region
        $region52: #{decoder_forward.21} parent=50 // pred_check
          %p180 = pneg %p35
        $region53: #{decoder_forward.21} parent=50 // pred_check_branch
          %182 = sbr.rel (%p180) target = $region55
        $region54: #{decoder_forward.21} parent=50 // pred_region
          _
        $region55: #{decoder_forward.21} parent=50 // pred_fallthru
          _
        %s183 = sand.u32 %s22, 1
        %s184 = sand.u32 %s22, 1
        %s185 = smul.addr %s184, 64
        %s186 = scalar_lea.vmem [#allocation2], %s185
        %p187 = pneg %p35
        %p188 = pneg %p32
        %p189 = pneg %p56
        %p190 = pneg %p53
        %p191 = pneg %p77
        %p192 = pneg %p74
        %p193 = pneg %p103
        %p194 = pneg %p100
        %s195 = sand.u32 %s90, 1
        %s196 = sand.u32 %s90, 1
        %s197 = smul.addr %s196, 64
        %s198 = scalar_lea.vmem [#allocation3], %s197
        %s199 = smul.u32 4, %s14
        %s200 = smul.u32 4, %s14
        %v201 = vld [vmem:[%s179] sm:$0xff]
        %v202 = vld [vmem:[%s179 + $0x8] sm:$0xff]
        %v203 = vld [vmem:[%s179 + $0x10] sm:$0xff]
        %v204 = vld [vmem:[%s179 + $0x18] sm:$0xff]
        %v205 = vld [vmem:[%s179 + $0x20] sm:$0xf]
        %v206 = vld [vmem:[%s179 + $0x28] sm:$0xf]
        %v207 = vld [vmem:[%s179 + $0x30] sm:$0xf]
        %v208 = vld [vmem:[%s179 + $0x38] sm:$0xf]
        %v209 = vld [vmem:[%s1] sm:$0xff]
        %v210 = vld [vmem:[%s1 + $0x8] sm:$0xf]
        %212 = vset.pattern.permute.xlu0 0
        %213 = vperm.xlu0 %212, %v209
        %v214 = vpop.permute.xlu0 %213
        %217 = vset.pattern.permute.xlu0 0
        %218 = vperm.xlu0 %217, %v210
        %v219 = vpop.permute.xlu0 %218
        %v221 = vmul.f32 %v201, %v214
        %v222 = vmul.f32 %v202, %v214
        %v223 = vmul.f32 %v203, %v214
        %v224 = vmul.f32 %v204, %v214
        %v225 = vmul.f32 %v205, %v219
        %v226 = vmul.f32 %v206, %v219
        %v227 = vmul.f32 %v207, %v219
        %v228 = vmul.f32 %v208, %v219
        %v229 = vld [vmem:[%s2] sm:$0xff]
        %v230 = vld [vmem:[%s2 + $0x8] sm:$0xf]
        %232 = vset.pattern.permute.xlu0 0
        %233 = vperm.xlu0 %232, %v229
        %v234 = vpop.permute.xlu0 %233
        %237 = vset.pattern.permute.xlu0 0
        %238 = vperm.xlu0 %237, %v230
        %v239 = vpop.permute.xlu0 %238
        %v241 = vadd.f32 %v221, %v234
        %v242 = vadd.f32 %v222, %v234
        %v243 = vadd.f32 %v223, %v234
        %v244 = vadd.f32 %v224, %v234
        %v245 = vadd.f32 %v225, %v239
        %v246 = vadd.f32 %v226, %v239
        %v247 = vadd.f32 %v227, %v239
        %v248 = vadd.f32 %v228, %v239
        %v249 = vmax.f32 %v241, 0.0
        %v250 = vmax.f32 %v242, 0.0
        %v251 = vmax.f32 %v243, 0.0
        %v252 = vmax.f32 %v244, 0.0
        %v253 = vmax.f32 %v245, 0.0
        %v254 = vmax.f32 %v246, 0.0
        %v255 = vmax.f32 %v247, 0.0
        %v256 = vmax.f32 %v248, 0.0
        %257 = vst [vmem:[%s198] sm:$0xff] %v249
        %258 = vst [vmem:[%s198 + $0x8] sm:$0xff] %v250
        %259 = vst [vmem:[%s198 + $0x10] sm:$0xff] %v251
        %260 = vst [vmem:[%s198 + $0x18] sm:$0xff] %v252
        %261 = vst [vmem:[%s198 + $0x20] sm:$0xf] %v253
        %262 = vst [vmem:[%s198 + $0x28] sm:$0xf] %v254
        %263 = vst [vmem:[%s198 + $0x30] sm:$0xf] %v255
        %264 = vst [vmem:[%s198 + $0x38] sm:$0xf] %v256
        %s265 = sand.u32 %s90, 1
        %s266 = sand.u32 %s90, 1
        %s267 = smul.addr %s266, 64
        %s268 = scalar_lea.vmem [#allocation3], %s267
        // Predicated region
        $region56: #{decoder_forward.21} parent=50 // pred_check
          %p269 = pneg %p100
        $region57: #{decoder_forward.21} parent=50 // pred_check_branch
          %271 = sbr.rel (%p269) target = $region59
        $region58: #{decoder_forward.21} parent=50 // pred_region
          %s272 = smul.u32 4, %s14
          %s273 = smul.addr %s272, 8
          %s274 = scalar_lea.vmem %s3, %s273
          // Predicated region
          $region60: #{decoder_forward.21} parent=58 // pred_check
            _
          $region61: #{decoder_forward.21} parent=58 // pred_check_branch
            %276 = sbr.rel (0) target = $region63
          $region62: #{decoder_forward.21} parent=58 // pred_region
            // Predicated region
            $region64: #{decoder_forward.21} parent=62 // pred_check
              _
            $region65: #{decoder_forward.21} parent=62 // pred_check_branch
              %278 = sbr.rel (0) target = $region67
            $region66: #{decoder_forward.21} parent=62 // pred_region
              loop: start=0, step=1, limit=1
              $region68: #{decoder_forward.21} parent=66 // loop_pre_header
                _
              $region69: #{decoder_forward.21} parent=66 // loop_header
                %s280 = sphi 0, %s284
                %p281 = scmp.ge.s32.totalorder %s280, 1
                %s285 = sphi %s268, %s268
                %s286 = sphi %s274, %s274
              $region70: #{decoder_forward.21} parent=66 // loop_header_branch
                %283 = sbr.rel (%p281) target = $region74
              $region71: #{decoder_forward.21} parent=66 // loop_body
                %v287 = vld [vmem:[%s285] sm:$0xff]
                %288 = vst [vmem:[%s286] sm:$0xff] %v287
                %v289 = vld [vmem:[%s285 + $0x8] sm:$0xff]
                %290 = vst [vmem:[%s286 + $0x8] sm:$0xff] %v289
                %v291 = vld [vmem:[%s285 + $0x10] sm:$0xff]
                %292 = vst [vmem:[%s286 + $0x10] sm:$0xff] %v291
                %v293 = vld [vmem:[%s285 + $0x18] sm:$0xff]
                %294 = vst [vmem:[%s286 + $0x18] sm:$0xff] %v293
                %v295 = vld [vmem:[%s285 + $0x20] sm:$0xff]
                %296 = vst [vmem:[%s286 + $0x80] sm:$0xff] %v295
                %v297 = vld [vmem:[%s285 + $0x28] sm:$0xff]
                %298 = vst [vmem:[%s286 + $0x88] sm:$0xff] %v297
                %v299 = vld [vmem:[%s285 + $0x30] sm:$0xff]
                %300 = vst [vmem:[%s286 + $0x90] sm:$0xff] %v299
                %v301 = vld [vmem:[%s285 + $0x38] sm:$0xff]
                %302 = vst [vmem:[%s286 + $0x98] sm:$0xff] %v301
              $region72: #{decoder_forward.21} parent=66 // loop_footer
                %s284 = sadd.s32 1, %s280
              $region73: #{decoder_forward.21} parent=66 // loop_footer_branch
                %279 = sbr.rel target = $region69
              $region74: #{decoder_forward.21} parent=66 // loop_exit
                _
            $region67: #{decoder_forward.21} parent=62 // pred_fallthru
              _
            // Predicated region
            $region75: #{decoder_forward.21} parent=62 // pred_check
              _
            $region76: #{decoder_forward.21} parent=62 // pred_check_branch
              %304 = sbr.rel target = $region78
            $region77: #{decoder_forward.21} parent=62 // pred_region
              _
            $region78: #{decoder_forward.21} parent=62 // pred_fallthru
              _
          $region63: #{decoder_forward.21} parent=58 // pred_fallthru
            _
          %305 = vnop
        $region59: #{decoder_forward.21} parent=50 // pred_fallthru
          _
      $region51: #{decoder_forward.21} parent=5 // pred_fallthru
        _
      %p306 = scmp.le.s32.totalorder 2, %s9
      // Predicated region
      $region79: #{decoder_forward.21} parent=5 // pred_check
        %p307 = pneg %p306
      $region80: #{decoder_forward.21} parent=5 // pred_check_branch
        %309 = sbr.rel (%p307) target = $region82
      $region81: #{decoder_forward.21} parent=5 // pred_region
        %s310 = ssub.s32 %s9, 2
        // Predicated region
        $region83: #{decoder_forward.21} parent=81 // pred_check
          %p311 = pneg %p106
        $region84: #{decoder_forward.21} parent=81 // pred_check_branch
          %313 = sbr.rel (%p311) target = $region86
        $region85: #{decoder_forward.21} parent=81 // pred_region
          %s314 = sand.u32 %s91, 1
          %s315 = sand.u32 %s91, 1
          %s316 = smul.addr %s315, 64
          %s317 = scalar_lea.vmem [#allocation3], %s316
        $region86: #{decoder_forward.21} parent=81 // pred_fallthru
          _
      $region82: #{decoder_forward.21} parent=5 // pred_fallthru
        _
    $region6: #{decoder_forward.21} parent=1 // loop_footer
      %s13 = sadd.s32 1, %s9
    $region7: #{decoder_forward.21} parent=1 // loop_footer_branch
      %8 = sbr.rel target = $region3
    $region8: #{decoder_forward.21} parent=1 // loop_exit
      _

</llo_original>
